<compile_context>
chip_gen: v7x
topology: tpu7x:2x2x1
jax: 0.10.0
libtpu: 0.0.40
codegen_flags: <defaults>
</compile_context>

<pallas_src>
import functools

import jax
import jax.numpy as jnp
from jax.experimental import pallas as pl
from jax.experimental.pallas import tpu as pltpu

EPS = 1e-5
_HIGH = jax.lax.Precision.HIGHEST


# --------------------------------- kernel -------------------------------------

def _resblock_kernel(S, W, inv_n,
                     mask_ref, clip_ref, x_ref,
                     wfilm_ref, bfilm_ref,
                     gn1w_ref, gn1b_ref, gn2w_ref, gn2b_ref, A_ref,
                     w1_ref, b1_ref, w2_ref, b2_ref, wr_ref, br_ref,
                     out_ref, hp_ref):
    f32 = jnp.float32
    bf16 = jnp.bfloat16
    C = x_ref.shape[1]

    x = x_ref[0]                      # (C, S) f32, channel-major
    clip = clip_ref[0]                # (Dc, 1) f32
    ml = mask_ref[0:1, :]             # (1, S) 1.0 where x-coord != 0
    mr = mask_ref[1:2, :]             # (1, S) 1.0 where x-coord != W-1

    # ---- FiLM: e = relu(fc(clip)); gamma = e[:C], beta = e[C] (scalar) ----------
    e = jnp.maximum(
        jnp.dot(wfilm_ref[...], clip, preferred_element_type=f32,
                precision=_HIGH) + bfilm_ref[...], 0.0)          # (C+1, 1)
    gamma = e[0:C, :]                                             # (C, 1)
    beta = e[C:C + 1, :]                                          # (1, 1)
    xf = x * gamma + beta                                         # (C, S)

    # ---- helpers ----------------------------------------------------------------
    def conv3x3(h, w9_ref, bias):
        """SAME 3x3 conv on channel-major h (C, S); w9_ref: (9, Cout, Cin) bf16."""
        zpad = jnp.zeros((C, W + 1), bf16)
        hp_ref[:, pl.ds(0, W + 1)] = zpad                         # left zero pad
        hp_ref[:, pl.ds(W + 1 + S, W + 1)] = zpad                 # right zero pad
        hp_ref[:, pl.ds(W + 1, S)] = h.astype(bf16)               # data region
        acc = None
        for dy in (-1, 0, 1):
            for dx in (-1, 0, 1):
                k = (dy + 1) * 3 + (dx + 1)
                tap = hp_ref[:, pl.ds(W + 1 + dy * W + dx, S)]    # (Cin, S) bf16
                d = jnp.dot(w9_ref[k], tap,                       # native bf16 MXU pass
                            preferred_element_type=f32)           # (Cout, S) f32
                if dx == -1:
                    d = d * ml                                    # kill row-wrap at x==0
                elif dx == 1:
                    d = d * mr                                    # kill row-wrap at x==W-1
                acc = d if acc is None else acc + d
        return acc + bias

    def gn_silu(h, gw, gb):
        """Two-pass GroupNorm (biased var, eps=1e-5) + SiLU on (C, S)."""
        s1 = jnp.sum(h, axis=1, keepdims=True)                    # (C, 1)
        mean = jnp.dot(A_ref[...], s1, preferred_element_type=f32,
                       precision=_HIGH) * inv_n                   # group mean per channel
        d = h - mean
        s2 = jnp.sum(d * d, axis=1, keepdims=True)                # (C, 1)
        var = jnp.dot(A_ref[...], s2, preferred_element_type=f32,
                      precision=_HIGH) * inv_n
        y = d * jax.lax.rsqrt(var + EPS) * gw + gb
        return y * (1.0 / (1.0 + jnp.exp(-y)))                    # SiLU

    # ---- block body ---------------------------------------------------------------
    res = conv3x3(xf, wr_ref, br_ref[...])                        # conv_residual(FiLM(x))
    h1 = gn_silu(xf, gn1w_ref[...], gn1b_ref[...])
    c1 = conv3x3(h1, w1_ref, b1_ref[...])
    h2 = gn_silu(c1, gn2w_ref[...], gn2b_ref[...])
    out_ref[0] = res + conv3x3(h2, w2_ref, b2_ref[...])


# --------------------------------- wrapper ------------------------------------

def _w9(w):
    """(Cout, Cin, 3, 3) torch conv weight -> (9, Cout, Cin) bf16 per-tap matrices."""
    return jnp.transpose(w, (2, 3, 0, 1)).reshape(9, w.shape[0], w.shape[1]).astype(jnp.bfloat16)


def resblock_no_attention_forward(x_nchw, clip_emb, params):
    B, C, H, W = x_nchw.shape
    S = H * W
    G = params['num_groups']
    cs = C // G
    inv_n = 1.0 / float(S * cs)
    Dc = clip_emb.shape[1]

    # (C, C) same-group indicator matrix for GroupNorm stat broadcast (tiny, VMEM-resident).
    grp = jnp.arange(C) // cs
    A = (grp[:, None] == grp[None, :]).astype(jnp.float32)

    x_bcs = x_nchw.reshape(B, C, S)                      # channel-major: no transpose needed
    clip3 = clip_emb[:, :, None]                         # (B, Dc, 1)

    fc_w, fc_b = params['fc_w'], params['fc_b']          # (Dc, 2C), (2C,)
    wfilm = jnp.transpose(fc_w[:, :C + 1], (1, 0))       # (C+1, Dc): gamma rows + beta row
    bfilm = fc_b[:C + 1].reshape(C + 1, 1)

    # Boundary masks (valid-left, valid-right) for the flattened-shift SAME-padding trick.
    cols = jnp.arange(S, dtype=jnp.int32) % W
    mask = jnp.stack([(cols != 0), (cols != (W - 1))], axis=0).astype(jnp.float32)  # (2, S)

    kern = functools.partial(_resblock_kernel, S, W, inv_n)
    cst2 = lambda b: (0, 0)
    cst3 = lambda b: (0, 0, 0)

    out = pl.pallas_call(
        kern,
        out_shape=jax.ShapeDtypeStruct((B, C, S), jnp.float32),
        grid=(B,),
        in_specs=[
            pl.BlockSpec((2, S), cst2),                      # boundary masks
            pl.BlockSpec((1, Dc, 1), lambda b: (b, 0, 0)),   # clip embedding (per batch)
            pl.BlockSpec((1, C, S), lambda b: (b, 0, 0)),    # x (per batch, channel-major)
            pl.BlockSpec((C + 1, Dc), cst2),                 # FiLM fc weights
            pl.BlockSpec((C + 1, 1), cst2),                  # FiLM fc bias
            pl.BlockSpec((C, 1), cst2),                      # gn1 weight
            pl.BlockSpec((C, 1), cst2),                      # gn1 bias
            pl.BlockSpec((C, 1), cst2),                      # gn2 weight
            pl.BlockSpec((C, 1), cst2),                      # gn2 bias
            pl.BlockSpec((C, C), cst2),                      # group indicator matrix
            pl.BlockSpec((9, C, C), cst3),                   # conv1 taps (bf16, resident)
            pl.BlockSpec((C, 1), cst2),                      # conv1 bias
            pl.BlockSpec((9, C, C), cst3),                   # conv2 taps
            pl.BlockSpec((C, 1), cst2),                      # conv2 bias
            pl.BlockSpec((9, C, C), cst3),                   # conv_residual taps
            pl.BlockSpec((C, 1), cst2),                      # conv_residual bias
        ],
        out_specs=pl.BlockSpec((1, C, S), lambda b: (b, 0, 0)),
        scratch_shapes=[pltpu.VMEM((C, S + 2 * W + 2), jnp.bfloat16)],  # padded conv input
        compiler_params=pltpu.CompilerParams(dimension_semantics=("parallel",)),
    )(mask, clip3, x_bcs,
      wfilm, bfilm,
      params['gn1_w'].reshape(C, 1), params['gn1_b'].reshape(C, 1),
      params['gn2_w'].reshape(C, 1), params['gn2_b'].reshape(C, 1),
      A,
      _w9(params['conv1_w']), params['conv1_b'].reshape(C, 1),
      _w9(params['conv2_w']), params['conv2_b'].reshape(C, 1),
      _w9(params['conv_residual_w']), params['conv_residual_b'].reshape(C, 1))

    return out.reshape(B, C, H, W)


# ------------------------------ pure-JAX reference -----------------------------

def ref_forward(x_nchw, clip_emb, params):
    B, C, H, W = x_nchw.shape
    G = params['num_groups']

    e = jnp.maximum(jnp.dot(clip_emb, params['fc_w'], precision=_HIGH)
                    + params['fc_b'], 0.0)
    gamma = e[:, :C]
    beta = e[:, C:C + 1]
    xf = x_nchw * gamma[:, :, None, None] + beta[:, :, None, None]

    def gn(x, w, b):
        xg = x.reshape(B, G, C // G, H, W)
        mean = xg.mean(axis=(2, 3, 4), keepdims=True)
        var = ((xg - mean) ** 2).mean(axis=(2, 3, 4), keepdims=True)
        xn = ((xg - mean) * jax.lax.rsqrt(var + EPS)).reshape(B, C, H, W)
        return xn * w[None, :, None, None] + b[None, :, None, None]

    def silu(x):
        return x * (1.0 / (1.0 + jnp.exp(-x)))

    def conv(x, w, b):
        y = jax.lax.conv_general_dilated(
            x, w, (1, 1), 'SAME',
            dimension_numbers=('NCHW', 'OIHW', 'NCHW'), precision=_HIGH)
        return y + b[None, :, None, None]

    h = silu(gn(xf, params['gn1_w'], params['gn1_b']))
    h = conv(h, params['conv1_w'], params['conv1_b'])
    h = silu(gn(h, params['gn2_w'], params['gn2_b']))
    h = conv(h, params['conv2_w'], params['conv2_b'])
    h = h + conv(xf, params['conv_residual_w'], params['conv_residual_b'])
    return h


# ----------------------------------- main --------------------------------------

if __name__ == "__main__":
    B, C, H, W = 2, 4, 16, 16
    clip_dim = 8
    num_groups = min(32, int(abs(C / 4)))     # == 1 for C=4, matches the module

    key = jax.random.PRNGKey(0)
    ks = jax.random.split(key, 12)

    def nrm(k, shape, scale=0.2):
        return (scale * jax.random.normal(k, shape)).astype(jnp.float32)

    params = {
        'num_groups': num_groups,
        'fc_w': nrm(ks[0], (clip_dim, 2 * C)),          # nn.Linear(clip_dim, 2C)
        'fc_b': nrm(ks[1], (2 * C,)),
        'gn1_w': 1.0 + nrm(ks[2], (C,)),
        'gn1_b': nrm(ks[3], (C,)),
        'gn2_w': 1.0 + nrm(ks[4], (C,)),
        'gn2_b': nrm(ks[5], (C,)),
        'conv1_w': nrm(ks[6], (C, C, 3, 3)),            # Conv2d(C, C, 3, padding=1)
        'conv1_b': nrm(ks[7], (C,)),
        'conv2_w': nrm(ks[8], (C, C, 3, 3)),
        'conv2_b': nrm(ks[9], (C,)),
        'conv_residual_w': nrm(ks[10], (C, C, 3, 3)),
        'conv_residual_b': nrm(ks[11], (C,)),
    }

    kx, kc = jax.random.split(jax.random.PRNGKey(42))
    x = jax.random.normal(kx, (B, C, H, W), jnp.float32)          # NCHW, like torch
    clip_emb = jax.random.normal(kc, (B, clip_dim), jnp.float32)

    out = resblock_no_attention_forward(x, clip_emb, params)
    out = jax.block_until_ready(out)

    ref = ref_forward(x, clip_emb, params)
    assert out.shape == (B, C, H, W)
    max_err = float(jnp.max(jnp.abs(out - ref)))
    # bf16 MXU conv path with f32 accumulation vs f32 HIGHEST reference.
    assert jnp.allclose(out, ref, atol=2e-2, rtol=2e-2), f"max abs err {max_err}"
    print("KERNEL_OK")
</pallas_src>

<mosaic_0001>
module attributes {stable_mosaic.version = 11 : i64} {
  func.func @_resblock_kernel(%arg0: i32, %arg1: memref<2x256xf32, #tpu.memory_space<vmem>>, %arg2: memref<1x8x1xf32, #tpu.memory_space<vmem>>, %arg3: memref<1x4x256xf32, #tpu.memory_space<vmem>>, %arg4: memref<5x8xf32, #tpu.memory_space<vmem>>, %arg5: memref<5x1xf32, #tpu.memory_space<vmem>>, %arg6: memref<4x1xf32, #tpu.memory_space<vmem>>, %arg7: memref<4x1xf32, #tpu.memory_space<vmem>>, %arg8: memref<4x1xf32, #tpu.memory_space<vmem>>, %arg9: memref<4x1xf32, #tpu.memory_space<vmem>>, %arg10: memref<4x4xf32, #tpu.memory_space<vmem>>, %arg11: memref<9x4x4xbf16, #tpu.memory_space<vmem>>, %arg12: memref<4x1xf32, #tpu.memory_space<vmem>>, %arg13: memref<9x4x4xbf16, #tpu.memory_space<vmem>>, %arg14: memref<4x1xf32, #tpu.memory_space<vmem>>, %arg15: memref<9x4x4xbf16, #tpu.memory_space<vmem>>, %arg16: memref<4x1xf32, #tpu.memory_space<vmem>>, %arg17: memref<1x4x256xf32, #tpu.memory_space<vmem>>, %arg18: memref<4x290xbf16, #tpu.memory_space<vmem>>) attributes {dimension_semantics = [#tpu.dimension_semantics<parallel>], iteration_bounds = array<i64: 2>, scalar_prefetch = 0 : i64, scratch_operands = 1 : i64, tpu.core_type = #tpu.core_type<tc>, window_params = [{pipeline_mode = #tpu.pipeline_mode<synchronous>, transform_indices = @transform_0, window_bounds = array<i64: 2, 256>}, {transform_indices = @transform_1, window_bounds = array<i64: 1, 8, 1>}, {transform_indices = @transform_2, window_bounds = array<i64: 1, 4, 256>}, {pipeline_mode = #tpu.pipeline_mode<synchronous>, transform_indices = @transform_3, window_bounds = array<i64: 5, 8>}, {pipeline_mode = #tpu.pipeline_mode<synchronous>, transform_indices = @transform_4, window_bounds = array<i64: 5, 1>}, {pipeline_mode = #tpu.pipeline_mode<synchronous>, transform_indices = @transform_5, window_bounds = array<i64: 4, 1>}, {pipeline_mode = #tpu.pipeline_mode<synchronous>, transform_indices = @transform_6, window_bounds = array<i64: 4, 1>}, {pipeline_mode = #tpu.pipeline_mode<synchronous>, transform_indices = @transform_7, window_bounds = array<i64: 4, 1>}, {pipeline_mode = #tpu.pipeline_mode<synchronous>, transform_indices = @transform_8, window_bounds = array<i64: 4, 1>}, {pipeline_mode = #tpu.pipeline_mode<synchronous>, transform_indices = @transform_9, window_bounds = array<i64: 4, 4>}, {pipeline_mode = #tpu.pipeline_mode<synchronous>, transform_indices = @transform_10, window_bounds = array<i64: 9, 4, 4>}, {pipeline_mode = #tpu.pipeline_mode<synchronous>, transform_indices = @transform_11, window_bounds = array<i64: 4, 1>}, {pipeline_mode = #tpu.pipeline_mode<synchronous>, transform_indices = @transform_12, window_bounds = array<i64: 9, 4, 4>}, {pipeline_mode = #tpu.pipeline_mode<synchronous>, transform_indices = @transform_13, window_bounds = array<i64: 4, 1>}, {pipeline_mode = #tpu.pipeline_mode<synchronous>, transform_indices = @transform_14, window_bounds = array<i64: 9, 4, 4>}, {pipeline_mode = #tpu.pipeline_mode<synchronous>, transform_indices = @transform_15, window_bounds = array<i64: 4, 1>}, {transform_indices = @transform_16, window_bounds = array<i64: 1, 4, 256>}]} {
    %c0 = arith.constant 0 : index
    %c0_0 = arith.constant 0 : index
    %c0_1 = arith.constant 0 : index
    %0 = vector.load %arg3[%c0, %c0_0, %c0_1] : memref<1x4x256xf32, #tpu.memory_space<vmem>>, vector<1x4x256xf32>
    %1 = vector.shape_cast %0 : vector<1x4x256xf32> to vector<4x256xf32>
    %c0_2 = arith.constant 0 : index
    %c0_3 = arith.constant 0 : index
    %c0_4 = arith.constant 0 : index
    %2 = vector.load %arg2[%c0_2, %c0_3, %c0_4] : memref<1x8x1xf32, #tpu.memory_space<vmem>>, vector<1x8x1xf32>
    %3 = vector.shape_cast %2 : vector<1x8x1xf32> to vector<8x1xf32>
    %c0_5 = arith.constant 0 : index
    %c0_6 = arith.constant 0 : index
    %4 = vector.load %arg1[%c0_5, %c0_6] : memref<2x256xf32, #tpu.memory_space<vmem>>, vector<1x256xf32>
    %c1 = arith.constant 1 : index
    %c0_7 = arith.constant 0 : index
    %5 = vector.load %arg1[%c1, %c0_7] : memref<2x256xf32, #tpu.memory_space<vmem>>, vector<1x256xf32>
    %c0_8 = arith.constant 0 : index
    %c0_9 = arith.constant 0 : index
    %6 = vector.load %arg4[%c0_8, %c0_9] : memref<5x8xf32, #tpu.memory_space<vmem>>, vector<5x8xf32>
    %cst = arith.constant dense<0.000000e+00> : vector<5x1xf32>
    %7 = tpu.matmul %6, %3, %cst {dimension_numbers = #tpu.dot_dimension_numbers<[1], [0], [0], [1], [0, 0, 1, 1], [], []>, precision = #tpu.contract_precision<fp32>} : vector<5x8xf32>, vector<8x1xf32>, vector<5x1xf32> -> vector<5x1xf32>
    %c0_10 = arith.constant 0 : index
    %c0_11 = arith.constant 0 : index
    %8 = vector.load %arg5[%c0_10, %c0_11] : memref<5x1xf32, #tpu.memory_space<vmem>>, vector<5x1xf32>
    %9 = arith.addf %7, %8 : vector<5x1xf32>
    %cst_12 = arith.constant 0.000000e+00 : f32
    %10 = vector.broadcast %cst_12 : f32 to vector<5x1xf32>
    %11 = arith.maximumf %9, %10 : vector<5x1xf32>
    %12 = vector.extract_strided_slice %11 {offsets = [0, 0], sizes = [4, 1], strides = [1, 1]} : vector<5x1xf32> to vector<4x1xf32>
    %13 = vector.extract_strided_slice %11 {offsets = [4, 0], sizes = [1, 1], strides = [1, 1]} : vector<5x1xf32> to vector<1x1xf32>
    %14 = vector.broadcast %12 : vector<4x1xf32> to vector<4x256xf32>
    %15 = arith.mulf %1, %14 : vector<4x256xf32>
    %16 = vector.broadcast %13 : vector<1x1xf32> to vector<4x256xf32>
    %17 = arith.addf %15, %16 : vector<4x256xf32>
    %c0_13 = arith.constant 0 : index
    %c0_14 = arith.constant 0 : index
    %18 = vector.load %arg16[%c0_13, %c0_14] : memref<4x1xf32, #tpu.memory_space<vmem>>, vector<4x1xf32>
    %cst_15 = arith.constant 0.000000e+00 : bf16
    %19 = vector.broadcast %cst_15 : bf16 to vector<4x17xbf16>
    %c0_16 = arith.constant 0 : index
    %c0_17 = arith.constant 0 : index
    %20 = vector.load %arg18[%c0_16, %c0_17] : memref<4x290xbf16, #tpu.memory_space<vmem>>, vector<4x17xbf16>
    tpu.vector_store %arg18[%c0_16, %c0_17], %19 {strides = array<i32>} : memref<4x290xbf16, #tpu.memory_space<vmem>>, vector<4x17xbf16>,
    %c0_18 = arith.constant 0 : index
    %c273 = arith.constant 273 : index
    %21 = vector.load %arg18[%c0_18, %c273] : memref<4x290xbf16, #tpu.memory_space<vmem>>, vector<4x17xbf16>
    tpu.vector_store %arg18[%c0_18, %c273], %19 {strides = array<i32>} : memref<4x290xbf16, #tpu.memory_space<vmem>>, vector<4x17xbf16>,
    %22 = arith.truncf %17 : vector<4x256xf32> to vector<4x256xbf16>
    %c0_19 = arith.constant 0 : index
    %c17 = arith.constant 17 : index
    %23 = vector.load %arg18[%c0_19, %c17] : memref<4x290xbf16, #tpu.memory_space<vmem>>, vector<4x256xbf16>
    tpu.vector_store %arg18[%c0_19, %c17], %22 {strides = array<i32>} : memref<4x290xbf16, #tpu.memory_space<vmem>>, vector<4x256xbf16>,
    %c0_20 = arith.constant 0 : index
    %c0_21 = arith.constant 0 : index
    %24 = vector.load %arg18[%c0_20, %c0_21] : memref<4x290xbf16, #tpu.memory_space<vmem>>, vector<4x256xbf16>
    %c0_22 = arith.constant 0 : index
    %c0_23 = arith.constant 0 : index
    %c0_24 = arith.constant 0 : index
    %25 = vector.load %arg15[%c0_22, %c0_23, %c0_24] : memref<9x4x4xbf16, #tpu.memory_space<vmem>>, vector<1x4x4xbf16>
    %26 = vector.shape_cast %25 : vector<1x4x4xbf16> to vector<4x4xbf16>
    %cst_25 = arith.constant dense<0.000000e+00> : vector<4x256xf32>
    %27 = tpu.matmul %26, %24, %cst_25 {dimension_numbers = #tpu.dot_dimension_numbers<[1], [0], [0], [1], [0, 0, 1, 1], [], []>} : vector<4x4xbf16>, vector<4x256xbf16>, vector<4x256xf32> -> vector<4x256xf32>
    %28 = vector.broadcast %4 : vector<1x256xf32> to vector<4x256xf32>
    %29 = arith.mulf %27, %28 : vector<4x256xf32>
    %c0_26 = arith.constant 0 : index
    %c1_27 = arith.constant 1 : index
    %30 = vector.load %arg18[%c0_26, %c1_27] : memref<4x290xbf16, #tpu.memory_space<vmem>>, vector<4x256xbf16>
    %c1_28 = arith.constant 1 : index
    %c0_29 = arith.constant 0 : index
    %c0_30 = arith.constant 0 : index
    %31 = vector.load %arg15[%c1_28, %c0_29, %c0_30] : memref<9x4x4xbf16, #tpu.memory_space<vmem>>, vector<1x4x4xbf16>
    %32 = vector.shape_cast %31 : vector<1x4x4xbf16> to vector<4x4xbf16>
    %cst_31 = arith.constant dense<0.000000e+00> : vector<4x256xf32>
    %33 = tpu.matmul %32, %30, %cst_31 {dimension_numbers = #tpu.dot_dimension_numbers<[1], [0], [0], [1], [0, 0, 1, 1], [], []>} : vector<4x4xbf16>, vector<4x256xbf16>, vector<4x256xf32> -> vector<4x256xf32>
    %34 = arith.addf %29, %33 : vector<4x256xf32>
    %c0_32 = arith.constant 0 : index
    %c2 = arith.constant 2 : index
    %35 = vector.load %arg18[%c0_32, %c2] : memref<4x290xbf16, #tpu.memory_space<vmem>>, vector<4x256xbf16>
    %c2_33 = arith.constant 2 : index
    %c0_34 = arith.constant 0 : index
    %c0_35 = arith.constant 0 : index
    %36 = vector.load %arg15[%c2_33, %c0_34, %c0_35] : memref<9x4x4xbf16, #tpu.memory_space<vmem>>, vector<1x4x4xbf16>
    %37 = vector.shape_cast %36 : vector<1x4x4xbf16> to vector<4x4xbf16>
    %cst_36 = arith.constant dense<0.000000e+00> : vector<4x256xf32>
    %38 = tpu.matmul %37, %35, %cst_36 {dimension_numbers = #tpu.dot_dimension_numbers<[1], [0], [0], [1], [0, 0, 1, 1], [], []>} : vector<4x4xbf16>, vector<4x256xbf16>, vector<4x256xf32> -> vector<4x256xf32>
    %39 = vector.broadcast %5 : vector<1x256xf32> to vector<4x256xf32>
    %40 = arith.mulf %38, %39 : vector<4x256xf32>
    %41 = arith.addf %34, %40 : vector<4x256xf32>
    %c0_37 = arith.constant 0 : index
    %c16 = arith.constant 16 : index
    %42 = vector.load %arg18[%c0_37, %c16] : memref<4x290xbf16, #tpu.memory_space<vmem>>, vector<4x256xbf16>
    %c3 = arith.constant 3 : index
    %c0_38 = arith.constant 0 : index
    %c0_39 = arith.constant 0 : index
    %43 = vector.load %arg15[%c3, %c0_38, %c0_39] : memref<9x4x4xbf16, #tpu.memory_space<vmem>>, vector<1x4x4xbf16>
    %44 = vector.shape_cast %43 : vector<1x4x4xbf16> to vector<4x4xbf16>
    %cst_40 = arith.constant dense<0.000000e+00> : vector<4x256xf32>
    %45 = tpu.matmul %44, %42, %cst_40 {dimension_numbers = #tpu.dot_dimension_numbers<[1], [0], [0], [1], [0, 0, 1, 1], [], []>} : vector<4x4xbf16>, vector<4x256xbf16>, vector<4x256xf32> -> vector<4x256xf32>
    %46 = vector.broadcast %4 : vector<1x256xf32> to vector<4x256xf32>
    %47 = arith.mulf %45, %46 : vector<4x256xf32>
    %48 = arith.addf %41, %47 : vector<4x256xf32>
    %c0_41 = arith.constant 0 : index
    %c17_42 = arith.constant 17 : index
    %49 = vector.load %arg18[%c0_41, %c17_42] : memref<4x290xbf16, #tpu.memory_space<vmem>>, vector<4x256xbf16>
    %c4 = arith.constant 4 : index
    %c0_43 = arith.constant 0 : index
    %c0_44 = arith.constant 0 : index
    %50 = vector.load %arg15[%c4, %c0_43, %c0_44] : memref<9x4x4xbf16, #tpu.memory_space<vmem>>, vector<1x4x4xbf16>
    %51 = vector.shape_cast %50 : vector<1x4x4xbf16> to vector<4x4xbf16>
    %cst_45 = arith.constant dense<0.000000e+00> : vector<4x256xf32>
    %52 = tpu.matmul %51, %49, %cst_45 {dimension_numbers = #tpu.dot_dimension_numbers<[1], [0], [0], [1], [0, 0, 1, 1], [], []>} : vector<4x4xbf16>, vector<4x256xbf16>, vector<4x256xf32> -> vector<4x256xf32>
    %53 = arith.addf %48, %52 : vector<4x256xf32>
    %c0_46 = arith.constant 0 : index
    %c18 = arith.constant 18 : index
    %54 = vector.load %arg18[%c0_46, %c18] : memref<4x290xbf16, #tpu.memory_space<vmem>>, vector<4x256xbf16>
    %c5 = arith.constant 5 : index
    %c0_47 = arith.constant 0 : index
    %c0_48 = arith.constant 0 : index
    %55 = vector.load %arg15[%c5, %c0_47, %c0_48] : memref<9x4x4xbf16, #tpu.memory_space<vmem>>, vector<1x4x4xbf16>
    %56 = vector.shape_cast %55 : vector<1x4x4xbf16> to vector<4x4xbf16>
    %cst_49 = arith.constant dense<0.000000e+00> : vector<4x256xf32>
    %57 = tpu.matmul %56, %54, %cst_49 {dimension_numbers = #tpu.dot_dimension_numbers<[1], [0], [0], [1], [0, 0, 1, 1], [], []>} : vector<4x4xbf16>, vector<4x256xbf16>, vector<4x256xf32> -> vector<4x256xf32>
    %58 = vector.broadcast %5 : vector<1x256xf32> to vector<4x256xf32>
    %59 = arith.mulf %57, %58 : vector<4x256xf32>
    %60 = arith.addf %53, %59 : vector<4x256xf32>
    %c0_50 = arith.constant 0 : index
    %c32 = arith.constant 32 : index
    %61 = vector.load %arg18[%c0_50, %c32] : memref<4x290xbf16, #tpu.memory_space<vmem>>, vector<4x256xbf16>
    %c6 = arith.constant 6 : index
    %c0_51 = arith.constant 0 : index
    %c0_52 = arith.constant 0 : index
    %62 = vector.load %arg15[%c6, %c0_51, %c0_52] : memref<9x4x4xbf16, #tpu.memory_space<vmem>>, vector<1x4x4xbf16>
    %63 = vector.shape_cast %62 : vector<1x4x4xbf16> to vector<4x4xbf16>
    %cst_53 = arith.constant dense<0.000000e+00> : vector<4x256xf32>
    %64 = tpu.matmul %63, %61, %cst_53 {dimension_numbers = #tpu.dot_dimension_numbers<[1], [0], [0], [1], [0, 0, 1, 1], [], []>} : vector<4x4xbf16>, vector<4x256xbf16>, vector<4x256xf32> -> vector<4x256xf32>
    %65 = vector.broadcast %4 : vector<1x256xf32> to vector<4x256xf32>
    %66 = arith.mulf %64, %65 : vector<4x256xf32>
    %67 = arith.addf %60, %66 : vector<4x256xf32>
    %c0_54 = arith.constant 0 : index
    %c33 = arith.constant 33 : index
    %68 = vector.load %arg18[%c0_54, %c33] : memref<4x290xbf16, #tpu.memory_space<vmem>>, vector<4x256xbf16>
    %c7 = arith.constant 7 : index
    %c0_55 = arith.constant 0 : index
    %c0_56 = arith.constant 0 : index
    %69 = vector.load %arg15[%c7, %c0_55, %c0_56] : memref<9x4x4xbf16, #tpu.memory_space<vmem>>, vector<1x4x4xbf16>
    %70 = vector.shape_cast %69 : vector<1x4x4xbf16> to vector<4x4xbf16>
    %cst_57 = arith.constant dense<0.000000e+00> : vector<4x256xf32>
    %71 = tpu.matmul %70, %68, %cst_57 {dimension_numbers = #tpu.dot_dimension_numbers<[1], [0], [0], [1], [0, 0, 1, 1], [], []>} : vector<4x4xbf16>, vector<4x256xbf16>, vector<4x256xf32> -> vector<4x256xf32>
    %72 = arith.addf %67, %71 : vector<4x256xf32>
    %c0_58 = arith.constant 0 : index
    %c34 = arith.constant 34 : index
    %73 = vector.load %arg18[%c0_58, %c34] : memref<4x290xbf16, #tpu.memory_space<vmem>>, vector<4x256xbf16>
    %c8 = arith.constant 8 : index
    %c0_59 = arith.constant 0 : index
    %c0_60 = arith.constant 0 : index
    %74 = vector.load %arg15[%c8, %c0_59, %c0_60] : memref<9x4x4xbf16, #tpu.memory_space<vmem>>, vector<1x4x4xbf16>
    %75 = vector.shape_cast %74 : vector<1x4x4xbf16> to vector<4x4xbf16>
    %cst_61 = arith.constant dense<0.000000e+00> : vector<4x256xf32>
    %76 = tpu.matmul %75, %73, %cst_61 {dimension_numbers = #tpu.dot_dimension_numbers<[1], [0], [0], [1], [0, 0, 1, 1], [], []>} : vector<4x4xbf16>, vector<4x256xbf16>, vector<4x256xf32> -> vector<4x256xf32>
    %77 = vector.broadcast %5 : vector<1x256xf32> to vector<4x256xf32>
    %78 = arith.mulf %76, %77 : vector<4x256xf32>
    %79 = arith.addf %72, %78 : vector<4x256xf32>
    %80 = vector.broadcast %18 : vector<4x1xf32> to vector<4x256xf32>
    %81 = arith.addf %79, %80 : vector<4x256xf32>
    %c0_62 = arith.constant 0 : index
    %c0_63 = arith.constant 0 : index
    %82 = vector.load %arg6[%c0_62, %c0_63] : memref<4x1xf32, #tpu.memory_space<vmem>>, vector<4x1xf32>
    %c0_64 = arith.constant 0 : index
    %c0_65 = arith.constant 0 : index
    %83 = vector.load %arg7[%c0_64, %c0_65] : memref<4x1xf32, #tpu.memory_space<vmem>>, vector<4x1xf32>
    %cst_66 = arith.constant dense<0.000000e+00> : vector<4xf32>
    %84 = vector.multi_reduction <add>, %17, %cst_66 [1] : vector<4x256xf32> to vector<4xf32>
    %85 = vector.shape_cast %84 : vector<4xf32> to vector<4x1xf32>
    %c0_67 = arith.constant 0 : index
    %c0_68 = arith.constant 0 : index
    %86 = vector.load %arg10[%c0_67, %c0_68] : memref<4x4xf32, #tpu.memory_space<vmem>>, vector<4x4xf32>
    %cst_69 = arith.constant dense<0.000000e+00> : vector<4x1xf32>
    %87 = tpu.matmul %86, %85, %cst_69 {dimension_numbers = #tpu.dot_dimension_numbers<[1], [0], [0], [1], [0, 0, 1, 1], [], []>, precision = #tpu.contract_precision<fp32>} : vector<4x4xf32>, vector<4x1xf32>, vector<4x1xf32> -> vector<4x1xf32>
    %cst_70 = arith.constant 9.765625E-4 : f32
    %88 = vector.broadcast %cst_70 : f32 to vector<4x1xf32>
    %89 = arith.mulf %87, %88 : vector<4x1xf32>
    %90 = vector.broadcast %89 : vector<4x1xf32> to vector<4x256xf32>
    %91 = arith.subf %17, %90 : vector<4x256xf32>
    %92 = arith.mulf %91, %91 : vector<4x256xf32>
    %cst_71 = arith.constant dense<0.000000e+00> : vector<4xf32>
    %93 = vector.multi_reduction <add>, %92, %cst_71 [1] : vector<4x256xf32> to vector<4xf32>
    %94 = vector.shape_cast %93 : vector<4xf32> to vector<4x1xf32>
    %c0_72 = arith.constant 0 : index
    %c0_73 = arith.constant 0 : index
    %95 = vector.load %arg10[%c0_72, %c0_73] : memref<4x4xf32, #tpu.memory_space<vmem>>, vector<4x4xf32>
    %cst_74 = arith.constant dense<0.000000e+00> : vector<4x1xf32>
    %96 = tpu.matmul %95, %94, %cst_74 {dimension_numbers = #tpu.dot_dimension_numbers<[1], [0], [0], [1], [0, 0, 1, 1], [], []>, precision = #tpu.contract_precision<fp32>} : vector<4x4xf32>, vector<4x1xf32>, vector<4x1xf32> -> vector<4x1xf32>
    %cst_75 = arith.constant 9.765625E-4 : f32
    %97 = vector.broadcast %cst_75 : f32 to vector<4x1xf32>
    %98 = arith.mulf %96, %97 : vector<4x1xf32>
    %cst_76 = arith.constant 9.99999974E-6 : f32
    %99 = vector.broadcast %cst_76 : f32 to vector<4x1xf32>
    %100 = arith.addf %98, %99 : vector<4x1xf32>
    %101 = math.rsqrt %100 : vector<4x1xf32>
    %102 = vector.broadcast %101 : vector<4x1xf32> to vector<4x256xf32>
    %103 = arith.mulf %91, %102 : vector<4x256xf32>
    %104 = vector.broadcast %82 : vector<4x1xf32> to vector<4x256xf32>
    %105 = arith.mulf %103, %104 : vector<4x256xf32>
    %106 = vector.broadcast %83 : vector<4x1xf32> to vector<4x256xf32>
    %107 = arith.addf %105, %106 : vector<4x256xf32>
    %cst_77 = arith.constant 0.000000e+00 : f32
    %108 = vector.broadcast %cst_77 : f32 to vector<4x256xf32>
    %109 = arith.subf %108, %107 : vector<4x256xf32>
    %110 = math.exp %109 : vector<4x256xf32>
    %cst_78 = arith.constant 1.000000e+00 : f32
    %111 = vector.broadcast %cst_78 : f32 to vector<4x256xf32>
    %112 = arith.addf %111, %110 : vector<4x256xf32>
    %cst_79 = arith.constant 1.000000e+00 : f32
    %113 = vector.broadcast %cst_79 : f32 to vector<4x256xf32>
    %114 = arith.divf %113, %112 : vector<4x256xf32>
    %115 = arith.mulf %107, %114 : vector<4x256xf32>
    %c0_80 = arith.constant 0 : index
    %c0_81 = arith.constant 0 : index
    %116 = vector.load %arg12[%c0_80, %c0_81] : memref<4x1xf32, #tpu.memory_space<vmem>>, vector<4x1xf32>
    %cst_82 = arith.constant 0.000000e+00 : bf16
    %117 = vector.broadcast %cst_82 : bf16 to vector<4x17xbf16>
    %c0_83 = arith.constant 0 : index
    %c0_84 = arith.constant 0 : index
    %118 = vector.load %arg18[%c0_83, %c0_84] : memref<4x290xbf16, #tpu.memory_space<vmem>>, vector<4x17xbf16>
    tpu.vector_store %arg18[%c0_83, %c0_84], %117 {strides = array<i32>} : memref<4x290xbf16, #tpu.memory_space<vmem>>, vector<4x17xbf16>,
    %c0_85 = arith.constant 0 : index
    %c273_86 = arith.constant 273 : index
    %119 = vector.load %arg18[%c0_85, %c273_86] : memref<4x290xbf16, #tpu.memory_space<vmem>>, vector<4x17xbf16>
    tpu.vector_store %arg18[%c0_85, %c273_86], %117 {strides = array<i32>} : memref<4x290xbf16, #tpu.memory_space<vmem>>, vector<4x17xbf16>,
    %120 = arith.truncf %115 : vector<4x256xf32> to vector<4x256xbf16>
    %c0_87 = arith.constant 0 : index
    %c17_88 = arith.constant 17 : index
    %121 = vector.load %arg18[%c0_87, %c17_88] : memref<4x290xbf16, #tpu.memory_space<vmem>>, vector<4x256xbf16>
    tpu.vector_store %arg18[%c0_87, %c17_88], %120 {strides = array<i32>} : memref<4x290xbf16, #tpu.memory_space<vmem>>, vector<4x256xbf16>,
    %c0_89 = arith.constant 0 : index
    %c0_90 = arith.constant 0 : index
    %122 = vector.load %arg18[%c0_89, %c0_90] : memref<4x290xbf16, #tpu.memory_space<vmem>>, vector<4x256xbf16>
    %c0_91 = arith.constant 0 : index
    %c0_92 = arith.constant 0 : index
    %c0_93 = arith.constant 0 : index
    %123 = vector.load %arg11[%c0_91, %c0_92, %c0_93] : memref<9x4x4xbf16, #tpu.memory_space<vmem>>, vector<1x4x4xbf16>
    %124 = vector.shape_cast %123 : vector<1x4x4xbf16> to vector<4x4xbf16>
    %cst_94 = arith.constant dense<0.000000e+00> : vector<4x256xf32>
    %125 = tpu.matmul %124, %122, %cst_94 {dimension_numbers = #tpu.dot_dimension_numbers<[1], [0], [0], [1], [0, 0, 1, 1], [], []>} : vector<4x4xbf16>, vector<4x256xbf16>, vector<4x256xf32> -> vector<4x256xf32>
    %126 = vector.broadcast %4 : vector<1x256xf32> to vector<4x256xf32>
    %127 = arith.mulf %125, %126 : vector<4x256xf32>
    %c0_95 = arith.constant 0 : index
    %c1_96 = arith.constant 1 : index
    %128 = vector.load %arg18[%c0_95, %c1_96] : memref<4x290xbf16, #tpu.memory_space<vmem>>, vector<4x256xbf16>
    %c1_97 = arith.constant 1 : index
    %c0_98 = arith.constant 0 : index
    %c0_99 = arith.constant 0 : index
    %129 = vector.load %arg11[%c1_97, %c0_98, %c0_99] : memref<9x4x4xbf16, #tpu.memory_space<vmem>>, vector<1x4x4xbf16>
    %130 = vector.shape_cast %129 : vector<1x4x4xbf16> to vector<4x4xbf16>
    %cst_100 = arith.constant dense<0.000000e+00> : vector<4x256xf32>
    %131 = tpu.matmul %130, %128, %cst_100 {dimension_numbers = #tpu.dot_dimension_numbers<[1], [0], [0], [1], [0, 0, 1, 1], [], []>} : vector<4x4xbf16>, vector<4x256xbf16>, vector<4x256xf32> -> vector<4x256xf32>
    %132 = arith.addf %127, %131 : vector<4x256xf32>
    %c0_101 = arith.constant 0 : index
    %c2_102 = arith.constant 2 : index
    %133 = vector.load %arg18[%c0_101, %c2_102] : memref<4x290xbf16, #tpu.memory_space<vmem>>, vector<4x256xbf16>
    %c2_103 = arith.constant 2 : index
    %c0_104 = arith.constant 0 : index
    %c0_105 = arith.constant 0 : index
    %134 = vector.load %arg11[%c2_103, %c0_104, %c0_105] : memref<9x4x4xbf16, #tpu.memory_space<vmem>>, vector<1x4x4xbf16>
    %135 = vector.shape_cast %134 : vector<1x4x4xbf16> to vector<4x4xbf16>
    %cst_106 = arith.constant dense<0.000000e+00> : vector<4x256xf32>
    %136 = tpu.matmul %135, %133, %cst_106 {dimension_numbers = #tpu.dot_dimension_numbers<[1], [0], [0], [1], [0, 0, 1, 1], [], []>} : vector<4x4xbf16>, vector<4x256xbf16>, vector<4x256xf32> -> vector<4x256xf32>
    %137 = vector.broadcast %5 : vector<1x256xf32> to vector<4x256xf32>
    %138 = arith.mulf %136, %137 : vector<4x256xf32>
    %139 = arith.addf %132, %138 : vector<4x256xf32>
    %c0_107 = arith.constant 0 : index
    %c16_108 = arith.constant 16 : index
    %140 = vector.load %arg18[%c0_107, %c16_108] : memref<4x290xbf16, #tpu.memory_space<vmem>>, vector<4x256xbf16>
    %c3_109 = arith.constant 3 : index
    %c0_110 = arith.constant 0 : index
    %c0_111 = arith.constant 0 : index
    %141 = vector.load %arg11[%c3_109, %c0_110, %c0_111] : memref<9x4x4xbf16, #tpu.memory_space<vmem>>, vector<1x4x4xbf16>
    %142 = vector.shape_cast %141 : vector<1x4x4xbf16> to vector<4x4xbf16>
    %cst_112 = arith.constant dense<0.000000e+00> : vector<4x256xf32>
    %143 = tpu.matmul %142, %140, %cst_112 {dimension_numbers = #tpu.dot_dimension_numbers<[1], [0], [0], [1], [0, 0, 1, 1], [], []>} : vector<4x4xbf16>, vector<4x256xbf16>, vector<4x256xf32> -> vector<4x256xf32>
    %144 = vector.broadcast %4 : vector<1x256xf32> to vector<4x256xf32>
    %145 = arith.mulf %143, %144 : vector<4x256xf32>
    %146 = arith.addf %139, %145 : vector<4x256xf32>
    %c0_113 = arith.constant 0 : index
    %c17_114 = arith.constant 17 : index
    %147 = vector.load %arg18[%c0_113, %c17_114] : memref<4x290xbf16, #tpu.memory_space<vmem>>, vector<4x256xbf16>
    %c4_115 = arith.constant 4 : index
    %c0_116 = arith.constant 0 : index
    %c0_117 = arith.constant 0 : index
    %148 = vector.load %arg11[%c4_115, %c0_116, %c0_117] : memref<9x4x4xbf16, #tpu.memory_space<vmem>>, vector<1x4x4xbf16>
    %149 = vector.shape_cast %148 : vector<1x4x4xbf16> to vector<4x4xbf16>
    %cst_118 = arith.constant dense<0.000000e+00> : vector<4x256xf32>
    %150 = tpu.matmul %149, %147, %cst_118 {dimension_numbers = #tpu.dot_dimension_numbers<[1], [0], [0], [1], [0, 0, 1, 1], [], []>} : vector<4x4xbf16>, vector<4x256xbf16>, vector<4x256xf32> -> vector<4x256xf32>
    %151 = arith.addf %146, %150 : vector<4x256xf32>
    %c0_119 = arith.constant 0 : index
    %c18_120 = arith.constant 18 : index
    %152 = vector.load %arg18[%c0_119, %c18_120] : memref<4x290xbf16, #tpu.memory_space<vmem>>, vector<4x256xbf16>
    %c5_121 = arith.constant 5 : index
    %c0_122 = arith.constant 0 : index
    %c0_123 = arith.constant 0 : index
    %153 = vector.load %arg11[%c5_121, %c0_122, %c0_123] : memref<9x4x4xbf16, #tpu.memory_space<vmem>>, vector<1x4x4xbf16>
    %154 = vector.shape_cast %153 : vector<1x4x4xbf16> to vector<4x4xbf16>
    %cst_124 = arith.constant dense<0.000000e+00> : vector<4x256xf32>
    %155 = tpu.matmul %154, %152, %cst_124 {dimension_numbers = #tpu.dot_dimension_numbers<[1], [0], [0], [1], [0, 0, 1, 1], [], []>} : vector<4x4xbf16>, vector<4x256xbf16>, vector<4x256xf32> -> vector<4x256xf32>
    %156 = vector.broadcast %5 : vector<1x256xf32> to vector<4x256xf32>
    %157 = arith.mulf %155, %156 : vector<4x256xf32>
    %158 = arith.addf %151, %157 : vector<4x256xf32>
    %c0_125 = arith.constant 0 : index
    %c32_126 = arith.constant 32 : index
    %159 = vector.load %arg18[%c0_125, %c32_126] : memref<4x290xbf16, #tpu.memory_space<vmem>>, vector<4x256xbf16>
    %c6_127 = arith.constant 6 : index
    %c0_128 = arith.constant 0 : index
    %c0_129 = arith.constant 0 : index
    %160 = vector.load %arg11[%c6_127, %c0_128, %c0_129] : memref<9x4x4xbf16, #tpu.memory_space<vmem>>, vector<1x4x4xbf16>
    %161 = vector.shape_cast %160 : vector<1x4x4xbf16> to vector<4x4xbf16>
    %cst_130 = arith.constant dense<0.000000e+00> : vector<4x256xf32>
    %162 = tpu.matmul %161, %159, %cst_130 {dimension_numbers = #tpu.dot_dimension_numbers<[1], [0], [0], [1], [0, 0, 1, 1], [], []>} : vector<4x4xbf16>, vector<4x256xbf16>, vector<4x256xf32> -> vector<4x256xf32>
    %163 = vector.broadcast %4 : vector<1x256xf32> to vector<4x256xf32>
    %164 = arith.mulf %162, %163 : vector<4x256xf32>
    %165 = arith.addf %158, %164 : vector<4x256xf32>
    %c0_131 = arith.constant 0 : index
    %c33_132 = arith.constant 33 : index
    %166 = vector.load %arg18[%c0_131, %c33_132] : memref<4x290xbf16, #tpu.memory_space<vmem>>, vector<4x256xbf16>
    %c7_133 = arith.constant 7 : index
    %c0_134 = arith.constant 0 : index
    %c0_135 = arith.constant 0 : index
    %167 = vector.load %arg11[%c7_133, %c0_134, %c0_135] : memref<9x4x4xbf16, #tpu.memory_space<vmem>>, vector<1x4x4xbf16>
    %168 = vector.shape_cast %167 : vector<1x4x4xbf16> to vector<4x4xbf16>
    %cst_136 = arith.constant dense<0.000000e+00> : vector<4x256xf32>
    %169 = tpu.matmul %168, %166, %cst_136 {dimension_numbers = #tpu.dot_dimension_numbers<[1], [0], [0], [1], [0, 0, 1, 1], [], []>} : vector<4x4xbf16>, vector<4x256xbf16>, vector<4x256xf32> -> vector<4x256xf32>
    %170 = arith.addf %165, %169 : vector<4x256xf32>
    %c0_137 = arith.constant 0 : index
    %c34_138 = arith.constant 34 : index
    %171 = vector.load %arg18[%c0_137, %c34_138] : memref<4x290xbf16, #tpu.memory_space<vmem>>, vector<4x256xbf16>
    %c8_139 = arith.constant 8 : index
    %c0_140 = arith.constant 0 : index
    %c0_141 = arith.constant 0 : index
    %172 = vector.load %arg11[%c8_139, %c0_140, %c0_141] : memref<9x4x4xbf16, #tpu.memory_space<vmem>>, vector<1x4x4xbf16>
    %173 = vector.shape_cast %172 : vector<1x4x4xbf16> to vector<4x4xbf16>
    %cst_142 = arith.constant dense<0.000000e+00> : vector<4x256xf32>
    %174 = tpu.matmul %173, %171, %cst_142 {dimension_numbers = #tpu.dot_dimension_numbers<[1], [0], [0], [1], [0, 0, 1, 1], [], []>} : vector<4x4xbf16>, vector<4x256xbf16>, vector<4x256xf32> -> vector<4x256xf32>
    %175 = vector.broadcast %5 : vector<1x256xf32> to vector<4x256xf32>
    %176 = arith.mulf %174, %175 : vector<4x256xf32>
    %177 = arith.addf %170, %176 : vector<4x256xf32>
    %178 = vector.broadcast %116 : vector<4x1xf32> to vector<4x256xf32>
    %179 = arith.addf %177, %178 : vector<4x256xf32>
    %c0_143 = arith.constant 0 : index
    %c0_144 = arith.constant 0 : index
    %180 = vector.load %arg8[%c0_143, %c0_144] : memref<4x1xf32, #tpu.memory_space<vmem>>, vector<4x1xf32>
    %c0_145 = arith.constant 0 : index
    %c0_146 = arith.constant 0 : index
    %181 = vector.load %arg9[%c0_145, %c0_146] : memref<4x1xf32, #tpu.memory_space<vmem>>, vector<4x1xf32>
    %cst_147 = arith.constant dense<0.000000e+00> : vector<4xf32>
    %182 = vector.multi_reduction <add>, %179, %cst_147 [1] : vector<4x256xf32> to vector<4xf32>
    %183 = vector.shape_cast %182 : vector<4xf32> to vector<4x1xf32>
    %c0_148 = arith.constant 0 : index
    %c0_149 = arith.constant 0 : index
    %184 = vector.load %arg10[%c0_148, %c0_149] : memref<4x4xf32, #tpu.memory_space<vmem>>, vector<4x4xf32>
    %cst_150 = arith.constant dense<0.000000e+00> : vector<4x1xf32>
    %185 = tpu.matmul %184, %183, %cst_150 {dimension_numbers = #tpu.dot_dimension_numbers<[1], [0], [0], [1], [0, 0, 1, 1], [], []>, precision = #tpu.contract_precision<fp32>} : vector<4x4xf32>, vector<4x1xf32>, vector<4x1xf32> -> vector<4x1xf32>
    %cst_151 = arith.constant 9.765625E-4 : f32
    %186 = vector.broadcast %cst_151 : f32 to vector<4x1xf32>
    %187 = arith.mulf %185, %186 : vector<4x1xf32>
    %188 = vector.broadcast %187 : vector<4x1xf32> to vector<4x256xf32>
    %189 = arith.subf %179, %188 : vector<4x256xf32>
    %190 = arith.mulf %189, %189 : vector<4x256xf32>
    %cst_152 = arith.constant dense<0.000000e+00> : vector<4xf32>
    %191 = vector.multi_reduction <add>, %190, %cst_152 [1] : vector<4x256xf32> to vector<4xf32>
    %192 = vector.shape_cast %191 : vector<4xf32> to vector<4x1xf32>
    %c0_153 = arith.constant 0 : index
    %c0_154 = arith.constant 0 : index
    %193 = vector.load %arg10[%c0_153, %c0_154] : memref<4x4xf32, #tpu.memory_space<vmem>>, vector<4x4xf32>
    %cst_155 = arith.constant dense<0.000000e+00> : vector<4x1xf32>
    %194 = tpu.matmul %193, %192, %cst_155 {dimension_numbers = #tpu.dot_dimension_numbers<[1], [0], [0], [1], [0, 0, 1, 1], [], []>, precision = #tpu.contract_precision<fp32>} : vector<4x4xf32>, vector<4x1xf32>, vector<4x1xf32> -> vector<4x1xf32>
    %cst_156 = arith.constant 9.765625E-4 : f32
    %195 = vector.broadcast %cst_156 : f32 to vector<4x1xf32>
    %196 = arith.mulf %194, %195 : vector<4x1xf32>
    %cst_157 = arith.constant 9.99999974E-6 : f32
    %197 = vector.broadcast %cst_157 : f32 to vector<4x1xf32>
    %198 = arith.addf %196, %197 : vector<4x1xf32>
    %199 = math.rsqrt %198 : vector<4x1xf32>
    %200 = vector.broadcast %199 : vector<4x1xf32> to vector<4x256xf32>
    %201 = arith.mulf %189, %200 : vector<4x256xf32>
    %202 = vector.broadcast %180 : vector<4x1xf32> to vector<4x256xf32>
    %203 = arith.mulf %201, %202 : vector<4x256xf32>
    %204 = vector.broadcast %181 : vector<4x1xf32> to vector<4x256xf32>
    %205 = arith.addf %203, %204 : vector<4x256xf32>
    %cst_158 = arith.constant 0.000000e+00 : f32
    %206 = vector.broadcast %cst_158 : f32 to vector<4x256xf32>
    %207 = arith.subf %206, %205 : vector<4x256xf32>
    %208 = math.exp %207 : vector<4x256xf32>
    %cst_159 = arith.constant 1.000000e+00 : f32
    %209 = vector.broadcast %cst_159 : f32 to vector<4x256xf32>
    %210 = arith.addf %209, %208 : vector<4x256xf32>
    %cst_160 = arith.constant 1.000000e+00 : f32
    %211 = vector.broadcast %cst_160 : f32 to vector<4x256xf32>
    %212 = arith.divf %211, %210 : vector<4x256xf32>
    %213 = arith.mulf %205, %212 : vector<4x256xf32>
    %c0_161 = arith.constant 0 : index
    %c0_162 = arith.constant 0 : index
    %214 = vector.load %arg14[%c0_161, %c0_162] : memref<4x1xf32, #tpu.memory_space<vmem>>, vector<4x1xf32>
    %cst_163 = arith.constant 0.000000e+00 : bf16
    %215 = vector.broadcast %cst_163 : bf16 to vector<4x17xbf16>
    %c0_164 = arith.constant 0 : index
    %c0_165 = arith.constant 0 : index
    %216 = vector.load %arg18[%c0_164, %c0_165] : memref<4x290xbf16, #tpu.memory_space<vmem>>, vector<4x17xbf16>
    tpu.vector_store %arg18[%c0_164, %c0_165], %215 {strides = array<i32>} : memref<4x290xbf16, #tpu.memory_space<vmem>>, vector<4x17xbf16>,
    %c0_166 = arith.constant 0 : index
    %c273_167 = arith.constant 273 : index
    %217 = vector.load %arg18[%c0_166, %c273_167] : memref<4x290xbf16, #tpu.memory_space<vmem>>, vector<4x17xbf16>
    tpu.vector_store %arg18[%c0_166, %c273_167], %215 {strides = array<i32>} : memref<4x290xbf16, #tpu.memory_space<vmem>>, vector<4x17xbf16>,
    %218 = arith.truncf %213 : vector<4x256xf32> to vector<4x256xbf16>
    %c0_168 = arith.constant 0 : index
    %c17_169 = arith.constant 17 : index
    %219 = vector.load %arg18[%c0_168, %c17_169] : memref<4x290xbf16, #tpu.memory_space<vmem>>, vector<4x256xbf16>
    tpu.vector_store %arg18[%c0_168, %c17_169], %218 {strides = array<i32>} : memref<4x290xbf16, #tpu.memory_space<vmem>>, vector<4x256xbf16>,
    %c0_170 = arith.constant 0 : index
    %c0_171 = arith.constant 0 : index
    %220 = vector.load %arg18[%c0_170, %c0_171] : memref<4x290xbf16, #tpu.memory_space<vmem>>, vector<4x256xbf16>
    %c0_172 = arith.constant 0 : index
    %c0_173 = arith.constant 0 : index
    %c0_174 = arith.constant 0 : index
    %221 = vector.load %arg13[%c0_172, %c0_173, %c0_174] : memref<9x4x4xbf16, #tpu.memory_space<vmem>>, vector<1x4x4xbf16>
    %222 = vector.shape_cast %221 : vector<1x4x4xbf16> to vector<4x4xbf16>
    %cst_175 = arith.constant dense<0.000000e+00> : vector<4x256xf32>
    %223 = tpu.matmul %222, %220, %cst_175 {dimension_numbers = #tpu.dot_dimension_numbers<[1], [0], [0], [1], [0, 0, 1, 1], [], []>} : vector<4x4xbf16>, vector<4x256xbf16>, vector<4x256xf32> -> vector<4x256xf32>
    %224 = vector.broadcast %4 : vector<1x256xf32> to vector<4x256xf32>
    %225 = arith.mulf %223, %224 : vector<4x256xf32>
    %c0_176 = arith.constant 0 : index
    %c1_177 = arith.constant 1 : index
    %226 = vector.load %arg18[%c0_176, %c1_177] : memref<4x290xbf16, #tpu.memory_space<vmem>>, vector<4x256xbf16>
    %c1_178 = arith.constant 1 : index
    %c0_179 = arith.constant 0 : index
    %c0_180 = arith.constant 0 : index
    %227 = vector.load %arg13[%c1_178, %c0_179, %c0_180] : memref<9x4x4xbf16, #tpu.memory_space<vmem>>, vector<1x4x4xbf16>
    %228 = vector.shape_cast %227 : vector<1x4x4xbf16> to vector<4x4xbf16>
    %cst_181 = arith.constant dense<0.000000e+00> : vector<4x256xf32>
    %229 = tpu.matmul %228, %226, %cst_181 {dimension_numbers = #tpu.dot_dimension_numbers<[1], [0], [0], [1], [0, 0, 1, 1], [], []>} : vector<4x4xbf16>, vector<4x256xbf16>, vector<4x256xf32> -> vector<4x256xf32>
    %230 = arith.addf %225, %229 : vector<4x256xf32>
    %c0_182 = arith.constant 0 : index
    %c2_183 = arith.constant 2 : index
    %231 = vector.load %arg18[%c0_182, %c2_183] : memref<4x290xbf16, #tpu.memory_space<vmem>>, vector<4x256xbf16>
    %c2_184 = arith.constant 2 : index
    %c0_185 = arith.constant 0 : index
    %c0_186 = arith.constant 0 : index
    %232 = vector.load %arg13[%c2_184, %c0_185, %c0_186] : memref<9x4x4xbf16, #tpu.memory_space<vmem>>, vector<1x4x4xbf16>
    %233 = vector.shape_cast %232 : vector<1x4x4xbf16> to vector<4x4xbf16>
    %cst_187 = arith.constant dense<0.000000e+00> : vector<4x256xf32>
    %234 = tpu.matmul %233, %231, %cst_187 {dimension_numbers = #tpu.dot_dimension_numbers<[1], [0], [0], [1], [0, 0, 1, 1], [], []>} : vector<4x4xbf16>, vector<4x256xbf16>, vector<4x256xf32> -> vector<4x256xf32>
    %235 = vector.broadcast %5 : vector<1x256xf32> to vector<4x256xf32>
    %236 = arith.mulf %234, %235 : vector<4x256xf32>
    %237 = arith.addf %230, %236 : vector<4x256xf32>
    %c0_188 = arith.constant 0 : index
    %c16_189 = arith.constant 16 : index
    %238 = vector.load %arg18[%c0_188, %c16_189] : memref<4x290xbf16, #tpu.memory_space<vmem>>, vector<4x256xbf16>
    %c3_190 = arith.constant 3 : index
    %c0_191 = arith.constant 0 : index
    %c0_192 = arith.constant 0 : index
    %239 = vector.load %arg13[%c3_190, %c0_191, %c0_192] : memref<9x4x4xbf16, #tpu.memory_space<vmem>>, vector<1x4x4xbf16>
    %240 = vector.shape_cast %239 : vector<1x4x4xbf16> to vector<4x4xbf16>
    %cst_193 = arith.constant dense<0.000000e+00> : vector<4x256xf32>
    %241 = tpu.matmul %240, %238, %cst_193 {dimension_numbers = #tpu.dot_dimension_numbers<[1], [0], [0], [1], [0, 0, 1, 1], [], []>} : vector<4x4xbf16>, vector<4x256xbf16>, vector<4x256xf32> -> vector<4x256xf32>
    %242 = vector.broadcast %4 : vector<1x256xf32> to vector<4x256xf32>
    %243 = arith.mulf %241, %242 : vector<4x256xf32>
    %244 = arith.addf %237, %243 : vector<4x256xf32>
    %c0_194 = arith.constant 0 : index
    %c17_195 = arith.constant 17 : index
    %245 = vector.load %arg18[%c0_194, %c17_195] : memref<4x290xbf16, #tpu.memory_space<vmem>>, vector<4x256xbf16>
    %c4_196 = arith.constant 4 : index
    %c0_197 = arith.constant 0 : index
    %c0_198 = arith.constant 0 : index
    %246 = vector.load %arg13[%c4_196, %c0_197, %c0_198] : memref<9x4x4xbf16, #tpu.memory_space<vmem>>, vector<1x4x4xbf16>
    %247 = vector.shape_cast %246 : vector<1x4x4xbf16> to vector<4x4xbf16>
    %cst_199 = arith.constant dense<0.000000e+00> : vector<4x256xf32>
    %248 = tpu.matmul %247, %245, %cst_199 {dimension_numbers = #tpu.dot_dimension_numbers<[1], [0], [0], [1], [0, 0, 1, 1], [], []>} : vector<4x4xbf16>, vector<4x256xbf16>, vector<4x256xf32> -> vector<4x256xf32>
    %249 = arith.addf %244, %248 : vector<4x256xf32>
    %c0_200 = arith.constant 0 : index
    %c18_201 = arith.constant 18 : index
    %250 = vector.load %arg18[%c0_200, %c18_201] : memref<4x290xbf16, #tpu.memory_space<vmem>>, vector<4x256xbf16>
    %c5_202 = arith.constant 5 : index
    %c0_203 = arith.constant 0 : index
    %c0_204 = arith.constant 0 : index
    %251 = vector.load %arg13[%c5_202, %c0_203, %c0_204] : memref<9x4x4xbf16, #tpu.memory_space<vmem>>, vector<1x4x4xbf16>
    %252 = vector.shape_cast %251 : vector<1x4x4xbf16> to vector<4x4xbf16>
    %cst_205 = arith.constant dense<0.000000e+00> : vector<4x256xf32>
    %253 = tpu.matmul %252, %250, %cst_205 {dimension_numbers = #tpu.dot_dimension_numbers<[1], [0], [0], [1], [0, 0, 1, 1], [], []>} : vector<4x4xbf16>, vector<4x256xbf16>, vector<4x256xf32> -> vector<4x256xf32>
    %254 = vector.broadcast %5 : vector<1x256xf32> to vector<4x256xf32>
    %255 = arith.mulf %253, %254 : vector<4x256xf32>
    %256 = arith.addf %249, %255 : vector<4x256xf32>
    %c0_206 = arith.constant 0 : index
    %c32_207 = arith.constant 32 : index
    %257 = vector.load %arg18[%c0_206, %c32_207] : memref<4x290xbf16, #tpu.memory_space<vmem>>, vector<4x256xbf16>
    %c6_208 = arith.constant 6 : index
    %c0_209 = arith.constant 0 : index
    %c0_210 = arith.constant 0 : index
    %258 = vector.load %arg13[%c6_208, %c0_209, %c0_210] : memref<9x4x4xbf16, #tpu.memory_space<vmem>>, vector<1x4x4xbf16>
    %259 = vector.shape_cast %258 : vector<1x4x4xbf16> to vector<4x4xbf16>
    %cst_211 = arith.constant dense<0.000000e+00> : vector<4x256xf32>
    %260 = tpu.matmul %259, %257, %cst_211 {dimension_numbers = #tpu.dot_dimension_numbers<[1], [0], [0], [1], [0, 0, 1, 1], [], []>} : vector<4x4xbf16>, vector<4x256xbf16>, vector<4x256xf32> -> vector<4x256xf32>
    %261 = vector.broadcast %4 : vector<1x256xf32> to vector<4x256xf32>
    %262 = arith.mulf %260, %261 : vector<4x256xf32>
    %263 = arith.addf %256, %262 : vector<4x256xf32>
    %c0_212 = arith.constant 0 : index
    %c33_213 = arith.constant 33 : index
    %264 = vector.load %arg18[%c0_212, %c33_213] : memref<4x290xbf16, #tpu.memory_space<vmem>>, vector<4x256xbf16>
    %c7_214 = arith.constant 7 : index
    %c0_215 = arith.constant 0 : index
    %c0_216 = arith.constant 0 : index
    %265 = vector.load %arg13[%c7_214, %c0_215, %c0_216] : memref<9x4x4xbf16, #tpu.memory_space<vmem>>, vector<1x4x4xbf16>
    %266 = vector.shape_cast %265 : vector<1x4x4xbf16> to vector<4x4xbf16>
    %cst_217 = arith.constant dense<0.000000e+00> : vector<4x256xf32>
    %267 = tpu.matmul %266, %264, %cst_217 {dimension_numbers = #tpu.dot_dimension_numbers<[1], [0], [0], [1], [0, 0, 1, 1], [], []>} : vector<4x4xbf16>, vector<4x256xbf16>, vector<4x256xf32> -> vector<4x256xf32>
    %268 = arith.addf %263, %267 : vector<4x256xf32>
    %c0_218 = arith.constant 0 : index
    %c34_219 = arith.constant 34 : index
    %269 = vector.load %arg18[%c0_218, %c34_219] : memref<4x290xbf16, #tpu.memory_space<vmem>>, vector<4x256xbf16>
    %c8_220 = arith.constant 8 : index
    %c0_221 = arith.constant 0 : index
    %c0_222 = arith.constant 0 : index
    %270 = vector.load %arg13[%c8_220, %c0_221, %c0_222] : memref<9x4x4xbf16, #tpu.memory_space<vmem>>, vector<1x4x4xbf16>
    %271 = vector.shape_cast %270 : vector<1x4x4xbf16> to vector<4x4xbf16>
    %cst_223 = arith.constant dense<0.000000e+00> : vector<4x256xf32>
    %272 = tpu.matmul %271, %269, %cst_223 {dimension_numbers = #tpu.dot_dimension_numbers<[1], [0], [0], [1], [0, 0, 1, 1], [], []>} : vector<4x4xbf16>, vector<4x256xbf16>, vector<4x256xf32> -> vector<4x256xf32>
    %273 = vector.broadcast %5 : vector<1x256xf32> to vector<4x256xf32>
    %274 = arith.mulf %272, %273 : vector<4x256xf32>
    %275 = arith.addf %268, %274 : vector<4x256xf32>
    %276 = vector.broadcast %214 : vector<4x1xf32> to vector<4x256xf32>
    %277 = arith.addf %275, %276 : vector<4x256xf32>
    %278 = arith.addf %81, %277 : vector<4x256xf32>
    %c0_224 = arith.constant 0 : index
    %c0_225 = arith.constant 0 : index
    %c0_226 = arith.constant 0 : index
    %279 = vector.load %arg17[%c0_224, %c0_225, %c0_226] : memref<1x4x256xf32, #tpu.memory_space<vmem>>, vector<1x4x256xf32>
    %280 = vector.shape_cast %279 : vector<1x4x256xf32> to vector<4x256xf32>
    %281 = vector.shape_cast %278 : vector<4x256xf32> to vector<1x4x256xf32>
    tpu.vector_store %arg17[%c0_224, %c0_225, %c0_226], %281 {strides = array<i32>} : memref<1x4x256xf32, #tpu.memory_space<vmem>>, vector<1x4x256xf32>,
    return
  }
  func.func @transform_0(%arg0: i32) -> (i32, i32) {
    %c0_i32 = arith.constant 0 : i32
    %c0_i32_0 = arith.constant 0 : i32
    %c0_i32_1 = arith.constant 0 : i32
    return %c0_i32, %c0_i32_0 : i32, i32
  }
  func.func @transform_1(%arg0: i32) -> (i32, i32, i32) {
    %c0_i32 = arith.constant 0 : i32
    %c0_i32_0 = arith.constant 0 : i32
    %c0_i32_1 = arith.constant 0 : i32
    return %arg0, %c0_i32, %c0_i32_0 : i32, i32, i32
  }
  func.func @transform_2(%arg0: i32) -> (i32, i32, i32) {
    %c0_i32 = arith.constant 0 : i32
    %c0_i32_0 = arith.constant 0 : i32
    %c0_i32_1 = arith.constant 0 : i32
    return %arg0, %c0_i32, %c0_i32_0 : i32, i32, i32
  }
  func.func @transform_3(%arg0: i32) -> (i32, i32) {
    %c0_i32 = arith.constant 0 : i32
    %c0_i32_0 = arith.constant 0 : i32
    %c0_i32_1 = arith.constant 0 : i32
    return %c0_i32, %c0_i32_0 : i32, i32
  }
  func.func @transform_4(%arg0: i32) -> (i32, i32) {
    %c0_i32 = arith.constant 0 : i32
    %c0_i32_0 = arith.constant 0 : i32
    %c0_i32_1 = arith.constant 0 : i32
    return %c0_i32, %c0_i32_0 : i32, i32
  }
  func.func @transform_5(%arg0: i32) -> (i32, i32) {
    %c0_i32 = arith.constant 0 : i32
    %c0_i32_0 = arith.constant 0 : i32
    %c0_i32_1 = arith.constant 0 : i32
    return %c0_i32, %c0_i32_0 : i32, i32
  }
  func.func @transform_6(%arg0: i32) -> (i32, i32) {
    %c0_i32 = arith.constant 0 : i32
    %c0_i32_0 = arith.constant 0 : i32
    %c0_i32_1 = arith.constant 0 : i32
    return %c0_i32, %c0_i32_0 : i32, i32
  }
  func.func @transform_7(%arg0: i32) -> (i32, i32) {
    %c0_i32 = arith.constant 0 : i32
    %c0_i32_0 = arith.constant 0 : i32
    %c0_i32_1 = arith.constant 0 : i32
    return %c0_i32, %c0_i32_0 : i32, i32
  }
  func.func @transform_8(%arg0: i32) -> (i32, i32) {
    %c0_i32 = arith.constant 0 : i32
    %c0_i32_0 = arith.constant 0 : i32
    %c0_i32_1 = arith.constant 0 : i32
    return %c0_i32, %c0_i32_0 : i32, i32
  }
  func.func @transform_9(%arg0: i32) -> (i32, i32) {
    %c0_i32 = arith.constant 0 : i32
    %c0_i32_0 = arith.constant 0 : i32
    %c0_i32_1 = arith.constant 0 : i32
    return %c0_i32, %c0_i32_0 : i32, i32
  }
  func.func @transform_10(%arg0: i32) -> (i32, i32, i32) {
    %c0_i32 = arith.constant 0 : i32
    %c0_i32_0 = arith.constant 0 : i32
    %c0_i32_1 = arith.constant 0 : i32
    %c0_i32_2 = arith.constant 0 : i32
    return %c0_i32, %c0_i32_0, %c0_i32_1 : i32, i32, i32
  }
  func.func @transform_11(%arg0: i32) -> (i32, i32) {
    %c0_i32 = arith.constant 0 : i32
    %c0_i32_0 = arith.constant 0 : i32
    %c0_i32_1 = arith.constant 0 : i32
    return %c0_i32, %c0_i32_0 : i32, i32
  }
  func.func @transform_12(%arg0: i32) -> (i32, i32, i32) {
    %c0_i32 = arith.constant 0 : i32
    %c0_i32_0 = arith.constant 0 : i32
    %c0_i32_1 = arith.constant 0 : i32
    %c0_i32_2 = arith.constant 0 : i32
    return %c0_i32, %c0_i32_0, %c0_i32_1 : i32, i32, i32
  }
  func.func @transform_13(%arg0: i32) -> (i32, i32) {
    %c0_i32 = arith.constant 0 : i32
    %c0_i32_0 = arith.constant 0 : i32
    %c0_i32_1 = arith.constant 0 : i32
    return %c0_i32, %c0_i32_0 : i32, i32
  }
  func.func @transform_14(%arg0: i32) -> (i32, i32, i32) {
    %c0_i32 = arith.constant 0 : i32
    %c0_i32_0 = arith.constant 0 : i32
    %c0_i32_1 = arith.constant 0 : i32
    %c0_i32_2 = arith.constant 0 : i32
    return %c0_i32, %c0_i32_0, %c0_i32_1 : i32, i32, i32
  }
  func.func @transform_15(%arg0: i32) -> (i32, i32) {
    %c0_i32 = arith.constant 0 : i32
    %c0_i32_0 = arith.constant 0 : i32
    %c0_i32_1 = arith.constant 0 : i32
    return %c0_i32, %c0_i32_0 : i32, i32
  }
  func.func @transform_16(%arg0: i32) -> (i32, i32, i32) {
    %c0_i32 = arith.constant 0 : i32
    %c0_i32_0 = arith.constant 0 : i32
    %c0_i32_1 = arith.constant 0 : i32
    return %arg0, %c0_i32, %c0_i32_0 : i32, i32, i32
  }
}

</mosaic_0001>

<llo_original>
// kernel: tpu_custom_call.1
$region0: #{tpu_custom_call.1}
  #allocation0 [shape = 'u32[]', space=smem, size = 0x4, offset = 0x4, fixed_abs, tag = 'smem constant byte address 0x4 - core index']
  #allocation1 [shape = 'u32[144,128]{1,0:T(1,128)}', space=vmem, size = 0x12000, scoped, tag = 'internal scratch']
  #allocation2 [shape = 'bf16[4,290]{1,0:T(4,128)(2,1)}', space=vmem, size = 0xc00, scoped, tag = 'scratch operand']
  %s0 = inlined_call_operand.vmem [shape: f32[2,256], index: 0, kind: input, shape index: {}]
  %s1 = inlined_call_operand.vmem [shape: f32[2,8,1], index: 1, kind: input, shape index: {}]
  %s2 = inlined_call_operand.vmem [shape: f32[2,4,256], index: 2, kind: input, shape index: {}]
  %s3 = inlined_call_operand.vmem [shape: f32[5,8], index: 3, kind: input, shape index: {}]
  %s4 = inlined_call_operand.vmem [shape: f32[5,1], index: 4, kind: input, shape index: {}]
  %s5 = inlined_call_operand.vmem [shape: f32[4,1], index: 5, kind: input, shape index: {}]
  %s6 = inlined_call_operand.vmem [shape: f32[4,1], index: 6, kind: input, shape index: {}]
  %s7 = inlined_call_operand.vmem [shape: f32[4,1], index: 7, kind: input, shape index: {}]
  %s8 = inlined_call_operand.vmem [shape: f32[4,1], index: 8, kind: input, shape index: {}]
  %s9 = inlined_call_operand.vmem [shape: f32[4,4], index: 9, kind: input, shape index: {}]
  %s10 = inlined_call_operand.vmem [shape: bf16[9,4,4], index: 10, kind: input, shape index: {}]
  %s11 = inlined_call_operand.vmem [shape: f32[4,1], index: 11, kind: input, shape index: {}]
  %s12 = inlined_call_operand.vmem [shape: bf16[9,4,4], index: 12, kind: input, shape index: {}]
  %s13 = inlined_call_operand.vmem [shape: f32[4,1], index: 13, kind: input, shape index: {}]
  %s14 = inlined_call_operand.vmem [shape: bf16[9,4,4], index: 14, kind: input, shape index: {}]
  %s15 = inlined_call_operand.vmem [shape: f32[4,1], index: 15, kind: input, shape index: {}]
  %s16 = inlined_call_operand.hbm [shape: f32[2,4,256], index: 16, kind: output, shape index: {}]
  %s17 = sld [smem:[#allocation0]]
  $region97: #{tpu_custom_call.1} parent=0
    _
  %s19 = ssub.s32 1, %s17
  %s20 = scalar_select 0, %s19, %s17
  $region1: #{tpu_custom_call.1} parent=0
    #allocation3 [shape = 'u8[8192]{0}', space=vmem, size = 0x2000, scoped, tag = 'output window, operand 0']
    #allocation4 [shape = 's32[2]{0}', space=sflag, size = 0x8, scoped, tag = 'scoped memory for tpu_custom_call.1']
    %21 = vsyncpa [#allocation4], 0
    %s22 = scalar_lea.sflag [#allocation4], 1
    %23 = vsyncpa %s22, 0
    loop: start=0, step=1, limit=4
    $region2: #{tpu_custom_call.1} parent=1 // loop_pre_header
      _
    $region3: #{tpu_custom_call.1} parent=1 // loop_header
      %s25 = sphi 0, %s29
      %p26 = scmp.ge.s32.totalorder %s25, 4
      %s33 = sphi 0, %s33
      %s35 = sphi 0, %s33
      %s36 = sphi 0, %s35
      %s50 = sphi 0, %s36
      %s56 = sphi 0, %s58
      %s59 = sphi 0, %s56
      %s60 = sphi 0, %s59
      %s76 = sphi 0, %s60
      %s82 = sphi 0, %s84
      %s85 = sphi 0, %s82
      %s86 = sphi 0, %s85
      %s102 = sphi 0, %s86
      %s106 = sphi 0, %s106
      %s108 = sphi 0, %s106
      %s109 = sphi 0, %s108
      %s123 = sphi 0, %s109
      %s127 = sphi 0, %s127
      %s129 = sphi 0, %s127
      %s130 = sphi 0, %s129
      %s144 = sphi 0, %s130
      %s148 = sphi 0, %s148
      %s150 = sphi 0, %s148
      %s151 = sphi 0, %s150
      %s165 = sphi 0, %s151
      %s169 = sphi 0, %s169
      %s171 = sphi 0, %s169
      %s172 = sphi 0, %s171
      %s186 = sphi 0, %s172
      %s190 = sphi 0, %s190
      %s192 = sphi 0, %s190
      %s193 = sphi 0, %s192
      %s207 = sphi 0, %s193
      %s211 = sphi 0, %s211
      %s213 = sphi 0, %s211
      %s214 = sphi 0, %s213
      %s228 = sphi 0, %s214
      %s232 = sphi 0, %s232
      %s234 = sphi 0, %s232
      %s235 = sphi 0, %s234
      %s249 = sphi 0, %s235
      %s253 = sphi 0, %s253
      %s255 = sphi 0, %s253
      %s256 = sphi 0, %s255
      %s270 = sphi 0, %s256
      %s274 = sphi 0, %s274
      %s276 = sphi 0, %s274
      %s277 = sphi 0, %s276
      %s291 = sphi 0, %s277
      %s295 = sphi 0, %s295
      %s297 = sphi 0, %s295
      %s298 = sphi 0, %s297
      %s312 = sphi 0, %s298
      %s316 = sphi 0, %s316
      %s318 = sphi 0, %s316
      %s319 = sphi 0, %s318
      %s333 = sphi 0, %s319
      %s337 = sphi 0, %s337
      %s339 = sphi 0, %s337
      %s340 = sphi 0, %s339
      %s354 = sphi 0, %s340
      %s358 = sphi 0, %s358
      %s360 = sphi 0, %s358
      %s361 = sphi 0, %s360
      %s375 = sphi 0, %s361
      %s381 = sphi 0, %s383
      %s384 = sphi 0, %s381
      %s385 = sphi 0, %s384
      %s401 = sphi 0, %s385
    $region4: #{tpu_custom_call.1} parent=1 // loop_header_branch
      %28 = sbr.rel (%p26) target = $region8
    $region5: #{tpu_custom_call.1} parent=1 // loop_body
      %s30 = ssub.s32 %s25, 1
      %s31 = ssub.s32 %s25, 2
      %s32 = sadd.s32 %s25, 1
      %s34 = sadd.s32 %s33, 1
      %p37 = scmp.eq.s32.totalorder %s25, 1
      %p38 = scmp.ne.s32.totalorder %s33, %s35
      %p39 = scmp.eq.s32.totalorder %s25, 0
      %p40 = por %p38, %p39
      %p41 = scmp.ne.s32.totalorder %s33, %s35
      %p42 = scmp.eq.s32.totalorder %s30, 1
      %p43 = por %p41, %p42
      %p44 = scmp.ne.s32.totalorder %s35, %s36
      %p45 = scmp.eq.s32.totalorder %s30, 0
      %p46 = por %p44, %p45
      %p47 = scmp.ne.s32.totalorder %s35, %s36
      %p48 = scmp.eq.s32.totalorder %s31, 1
      %p49 = por %p47, %p48
      %p51 = scmp.ne.s32.totalorder %s36, %s50
      %p52 = scmp.eq.s32.totalorder %s31, 0
      %p53 = por %p51, %p52
      %s54 = ssub.s32 %s25, %s32
      %p55 = scmp.eq.s32.totalorder %s54, 0
      %s57 = sadd.s32 %s56, 1
      %s58 = scalar_select %p55, %s56, %s57
      %p61 = pneg %p55
      %p62 = scmp.eq.s32.totalorder %s25, 1
      %p63 = por %p61, %p62
      %p64 = scmp.ne.s32.totalorder %s56, %s59
      %p65 = scmp.eq.s32.totalorder %s25, 0
      %p66 = por %p64, %p65
      %p67 = scmp.ne.s32.totalorder %s56, %s59
      %p68 = scmp.eq.s32.totalorder %s30, 1
      %p69 = por %p67, %p68
      %p70 = scmp.ne.s32.totalorder %s59, %s60
      %p71 = scmp.eq.s32.totalorder %s30, 0
      %p72 = por %p70, %p71
      %p73 = scmp.ne.s32.totalorder %s59, %s60
      %p74 = scmp.eq.s32.totalorder %s31, 1
      %p75 = por %p73, %p74
      %p77 = scmp.ne.s32.totalorder %s60, %s76
      %p78 = scmp.eq.s32.totalorder %s31, 0
      %p79 = por %p77, %p78
      %s80 = ssub.s32 %s25, %s32
      %p81 = scmp.eq.s32.totalorder %s80, 0
      %s83 = sadd.s32 %s82, 1
      %s84 = scalar_select %p81, %s82, %s83
      %p87 = pneg %p81
      %p88 = scmp.eq.s32.totalorder %s25, 1
      %p89 = por %p87, %p88
      %p90 = scmp.ne.s32.totalorder %s82, %s85
      %p91 = scmp.eq.s32.totalorder %s25, 0
      %p92 = por %p90, %p91
      %p93 = scmp.ne.s32.totalorder %s82, %s85
      %p94 = scmp.eq.s32.totalorder %s30, 1
      %p95 = por %p93, %p94
      %p96 = scmp.ne.s32.totalorder %s85, %s86
      %p97 = scmp.eq.s32.totalorder %s30, 0
      %p98 = por %p96, %p97
      %p99 = scmp.ne.s32.totalorder %s85, %s86
      %p100 = scmp.eq.s32.totalorder %s31, 1
      %p101 = por %p99, %p100
      %p103 = scmp.ne.s32.totalorder %s86, %s102
      %p104 = scmp.eq.s32.totalorder %s31, 0
      %p105 = por %p103, %p104
      %s107 = sadd.s32 %s106, 1
      %p110 = scmp.eq.s32.totalorder %s25, 1
      %p111 = scmp.ne.s32.totalorder %s106, %s108
      %p112 = scmp.eq.s32.totalorder %s25, 0
      %p113 = por %p111, %p112
      %p114 = scmp.ne.s32.totalorder %s106, %s108
      %p115 = scmp.eq.s32.totalorder %s30, 1
      %p116 = por %p114, %p115
      %p117 = scmp.ne.s32.totalorder %s108, %s109
      %p118 = scmp.eq.s32.totalorder %s30, 0
      %p119 = por %p117, %p118
      %p120 = scmp.ne.s32.totalorder %s108, %s109
      %p121 = scmp.eq.s32.totalorder %s31, 1
      %p122 = por %p120, %p121
      %p124 = scmp.ne.s32.totalorder %s109, %s123
      %p125 = scmp.eq.s32.totalorder %s31, 0
      %p126 = por %p124, %p125
      %s128 = sadd.s32 %s127, 1
      %p131 = scmp.eq.s32.totalorder %s25, 1
      %p132 = scmp.ne.s32.totalorder %s127, %s129
      %p133 = scmp.eq.s32.totalorder %s25, 0
      %p134 = por %p132, %p133
      %p135 = scmp.ne.s32.totalorder %s127, %s129
      %p136 = scmp.eq.s32.totalorder %s30, 1
      %p137 = por %p135, %p136
      %p138 = scmp.ne.s32.totalorder %s129, %s130
      %p139 = scmp.eq.s32.totalorder %s30, 0
      %p140 = por %p138, %p139
      %p141 = scmp.ne.s32.totalorder %s129, %s130
      %p142 = scmp.eq.s32.totalorder %s31, 1
      %p143 = por %p141, %p142
      %p145 = scmp.ne.s32.totalorder %s130, %s144
      %p146 = scmp.eq.s32.totalorder %s31, 0
      %p147 = por %p145, %p146
      %s149 = sadd.s32 %s148, 1
      %p152 = scmp.eq.s32.totalorder %s25, 1
      %p153 = scmp.ne.s32.totalorder %s148, %s150
      %p154 = scmp.eq.s32.totalorder %s25, 0
      %p155 = por %p153, %p154
      %p156 = scmp.ne.s32.totalorder %s148, %s150
      %p157 = scmp.eq.s32.totalorder %s30, 1
      %p158 = por %p156, %p157
      %p159 = scmp.ne.s32.totalorder %s150, %s151
      %p160 = scmp.eq.s32.totalorder %s30, 0
      %p161 = por %p159, %p160
      %p162 = scmp.ne.s32.totalorder %s150, %s151
      %p163 = scmp.eq.s32.totalorder %s31, 1
      %p164 = por %p162, %p163
      %p166 = scmp.ne.s32.totalorder %s151, %s165
      %p167 = scmp.eq.s32.totalorder %s31, 0
      %p168 = por %p166, %p167
      %s170 = sadd.s32 %s169, 1
      %p173 = scmp.eq.s32.totalorder %s25, 1
      %p174 = scmp.ne.s32.totalorder %s169, %s171
      %p175 = scmp.eq.s32.totalorder %s25, 0
      %p176 = por %p174, %p175
      %p177 = scmp.ne.s32.totalorder %s169, %s171
      %p178 = scmp.eq.s32.totalorder %s30, 1
      %p179 = por %p177, %p178
      %p180 = scmp.ne.s32.totalorder %s171, %s172
      %p181 = scmp.eq.s32.totalorder %s30, 0
      %p182 = por %p180, %p181
      %p183 = scmp.ne.s32.totalorder %s171, %s172
      %p184 = scmp.eq.s32.totalorder %s31, 1
      %p185 = por %p183, %p184
      %p187 = scmp.ne.s32.totalorder %s172, %s186
      %p188 = scmp.eq.s32.totalorder %s31, 0
      %p189 = por %p187, %p188
      %s191 = sadd.s32 %s190, 1
      %p194 = scmp.eq.s32.totalorder %s25, 1
      %p195 = scmp.ne.s32.totalorder %s190, %s192
      %p196 = scmp.eq.s32.totalorder %s25, 0
      %p197 = por %p195, %p196
      %p198 = scmp.ne.s32.totalorder %s190, %s192
      %p199 = scmp.eq.s32.totalorder %s30, 1
      %p200 = por %p198, %p199
      %p201 = scmp.ne.s32.totalorder %s192, %s193
      %p202 = scmp.eq.s32.totalorder %s30, 0
      %p203 = por %p201, %p202
      %p204 = scmp.ne.s32.totalorder %s192, %s193
      %p205 = scmp.eq.s32.totalorder %s31, 1
      %p206 = por %p204, %p205
      %p208 = scmp.ne.s32.totalorder %s193, %s207
      %p209 = scmp.eq.s32.totalorder %s31, 0
      %p210 = por %p208, %p209
      %s212 = sadd.s32 %s211, 1
      %p215 = scmp.eq.s32.totalorder %s25, 1
      %p216 = scmp.ne.s32.totalorder %s211, %s213
      %p217 = scmp.eq.s32.totalorder %s25, 0
      %p218 = por %p216, %p217
      %p219 = scmp.ne.s32.totalorder %s211, %s213
      %p220 = scmp.eq.s32.totalorder %s30, 1
      %p221 = por %p219, %p220
      %p222 = scmp.ne.s32.totalorder %s213, %s214
      %p223 = scmp.eq.s32.totalorder %s30, 0
      %p224 = por %p222, %p223
      %p225 = scmp.ne.s32.totalorder %s213, %s214
      %p226 = scmp.eq.s32.totalorder %s31, 1
      %p227 = por %p225, %p226
      %p229 = scmp.ne.s32.totalorder %s214, %s228
      %p230 = scmp.eq.s32.totalorder %s31, 0
      %p231 = por %p229, %p230
      %s233 = sadd.s32 %s232, 1
      %p236 = scmp.eq.s32.totalorder %s25, 1
      %p237 = scmp.ne.s32.totalorder %s232, %s234
      %p238 = scmp.eq.s32.totalorder %s25, 0
      %p239 = por %p237, %p238
      %p240 = scmp.ne.s32.totalorder %s232, %s234
      %p241 = scmp.eq.s32.totalorder %s30, 1
      %p242 = por %p240, %p241
      %p243 = scmp.ne.s32.totalorder %s234, %s235
      %p244 = scmp.eq.s32.totalorder %s30, 0
      %p245 = por %p243, %p244
      %p246 = scmp.ne.s32.totalorder %s234, %s235
      %p247 = scmp.eq.s32.totalorder %s31, 1
      %p248 = por %p246, %p247
      %p250 = scmp.ne.s32.totalorder %s235, %s249
      %p251 = scmp.eq.s32.totalorder %s31, 0
      %p252 = por %p250, %p251
      %s254 = sadd.s32 %s253, 1
      %p257 = scmp.eq.s32.totalorder %s25, 1
      %p258 = scmp.ne.s32.totalorder %s253, %s255
      %p259 = scmp.eq.s32.totalorder %s25, 0
      %p260 = por %p258, %p259
      %p261 = scmp.ne.s32.totalorder %s253, %s255
      %p262 = scmp.eq.s32.totalorder %s30, 1
      %p263 = por %p261, %p262
      %p264 = scmp.ne.s32.totalorder %s255, %s256
      %p265 = scmp.eq.s32.totalorder %s30, 0
      %p266 = por %p264, %p265
      %p267 = scmp.ne.s32.totalorder %s255, %s256
      %p268 = scmp.eq.s32.totalorder %s31, 1
      %p269 = por %p267, %p268
      %p271 = scmp.ne.s32.totalorder %s256, %s270
      %p272 = scmp.eq.s32.totalorder %s31, 0
      %p273 = por %p271, %p272
      %s275 = sadd.s32 %s274, 1
      %p278 = scmp.eq.s32.totalorder %s25, 1
      %p279 = scmp.ne.s32.totalorder %s274, %s276
      %p280 = scmp.eq.s32.totalorder %s25, 0
      %p281 = por %p279, %p280
      %p282 = scmp.ne.s32.totalorder %s274, %s276
      %p283 = scmp.eq.s32.totalorder %s30, 1
      %p284 = por %p282, %p283
      %p285 = scmp.ne.s32.totalorder %s276, %s277
      %p286 = scmp.eq.s32.totalorder %s30, 0
      %p287 = por %p285, %p286
      %p288 = scmp.ne.s32.totalorder %s276, %s277
      %p289 = scmp.eq.s32.totalorder %s31, 1
      %p290 = por %p288, %p289
      %p292 = scmp.ne.s32.totalorder %s277, %s291
      %p293 = scmp.eq.s32.totalorder %s31, 0
      %p294 = por %p292, %p293
      %s296 = sadd.s32 %s295, 1
      %p299 = scmp.eq.s32.totalorder %s25, 1
      %p300 = scmp.ne.s32.totalorder %s295, %s297
      %p301 = scmp.eq.s32.totalorder %s25, 0
      %p302 = por %p300, %p301
      %p303 = scmp.ne.s32.totalorder %s295, %s297
      %p304 = scmp.eq.s32.totalorder %s30, 1
      %p305 = por %p303, %p304
      %p306 = scmp.ne.s32.totalorder %s297, %s298
      %p307 = scmp.eq.s32.totalorder %s30, 0
      %p308 = por %p306, %p307
      %p309 = scmp.ne.s32.totalorder %s297, %s298
      %p310 = scmp.eq.s32.totalorder %s31, 1
      %p311 = por %p309, %p310
      %p313 = scmp.ne.s32.totalorder %s298, %s312
      %p314 = scmp.eq.s32.totalorder %s31, 0
      %p315 = por %p313, %p314
      %s317 = sadd.s32 %s316, 1
      %p320 = scmp.eq.s32.totalorder %s25, 1
      %p321 = scmp.ne.s32.totalorder %s316, %s318
      %p322 = scmp.eq.s32.totalorder %s25, 0
      %p323 = por %p321, %p322
      %p324 = scmp.ne.s32.totalorder %s316, %s318
      %p325 = scmp.eq.s32.totalorder %s30, 1
      %p326 = por %p324, %p325
      %p327 = scmp.ne.s32.totalorder %s318, %s319
      %p328 = scmp.eq.s32.totalorder %s30, 0
      %p329 = por %p327, %p328
      %p330 = scmp.ne.s32.totalorder %s318, %s319
      %p331 = scmp.eq.s32.totalorder %s31, 1
      %p332 = por %p330, %p331
      %p334 = scmp.ne.s32.totalorder %s319, %s333
      %p335 = scmp.eq.s32.totalorder %s31, 0
      %p336 = por %p334, %p335
      %s338 = sadd.s32 %s337, 1
      %p341 = scmp.eq.s32.totalorder %s25, 1
      %p342 = scmp.ne.s32.totalorder %s337, %s339
      %p343 = scmp.eq.s32.totalorder %s25, 0
      %p344 = por %p342, %p343
      %p345 = scmp.ne.s32.totalorder %s337, %s339
      %p346 = scmp.eq.s32.totalorder %s30, 1
      %p347 = por %p345, %p346
      %p348 = scmp.ne.s32.totalorder %s339, %s340
      %p349 = scmp.eq.s32.totalorder %s30, 0
      %p350 = por %p348, %p349
      %p351 = scmp.ne.s32.totalorder %s339, %s340
      %p352 = scmp.eq.s32.totalorder %s31, 1
      %p353 = por %p351, %p352
      %p355 = scmp.ne.s32.totalorder %s340, %s354
      %p356 = scmp.eq.s32.totalorder %s31, 0
      %p357 = por %p355, %p356
      %s359 = sadd.s32 %s358, 1
      %p362 = scmp.eq.s32.totalorder %s25, 1
      %p363 = scmp.ne.s32.totalorder %s358, %s360
      %p364 = scmp.eq.s32.totalorder %s25, 0
      %p365 = por %p363, %p364
      %p366 = scmp.ne.s32.totalorder %s358, %s360
      %p367 = scmp.eq.s32.totalorder %s30, 1
      %p368 = por %p366, %p367
      %p369 = scmp.ne.s32.totalorder %s360, %s361
      %p370 = scmp.eq.s32.totalorder %s30, 0
      %p371 = por %p369, %p370
      %p372 = scmp.ne.s32.totalorder %s360, %s361
      %p373 = scmp.eq.s32.totalorder %s31, 1
      %p374 = por %p372, %p373
      %p376 = scmp.ne.s32.totalorder %s361, %s375
      %p377 = scmp.eq.s32.totalorder %s31, 0
      %p378 = por %p376, %p377
      %s379 = ssub.s32 %s25, %s32
      %p380 = scmp.eq.s32.totalorder %s379, 0
      %s382 = sadd.s32 %s381, 1
      %s383 = scalar_select %p380, %s381, %s382
      %p386 = pneg %p380
      %p387 = scmp.eq.s32.totalorder %s25, 1
      %p388 = por %p386, %p387
      %p389 = scmp.ne.s32.totalorder %s381, %s384
      %p390 = scmp.eq.s32.totalorder %s25, 0
      %p391 = por %p389, %p390
      %p392 = scmp.ne.s32.totalorder %s381, %s384
      %p393 = scmp.eq.s32.totalorder %s30, 1
      %p394 = por %p392, %p393
      %p395 = scmp.ne.s32.totalorder %s384, %s385
      %p396 = scmp.eq.s32.totalorder %s30, 0
      %p397 = por %p395, %p396
      %p398 = scmp.ne.s32.totalorder %s384, %s385
      %p399 = scmp.eq.s32.totalorder %s31, 1
      %p400 = por %p398, %p399
      %p402 = scmp.ne.s32.totalorder %s385, %s401
      %p403 = scmp.eq.s32.totalorder %s31, 0
      %p404 = por %p402, %p403
      %p405 = scmp.le.s32.totalorder 1, %s25
      %p406 = scmp.lt.s32.totalorder %s25, 3
      %p407 = pnand %p405, %p406
      %p408 = pneg %p407
      // Predicated region
      $region9: #{tpu_custom_call.1} parent=5 // pred_check
        _
      $region10: #{tpu_custom_call.1} parent=5 // pred_check_branch
        %410 = sbr.rel (%p407) target = $region12
      $region11: #{tpu_custom_call.1} parent=5 // pred_region
        %s411 = ssub.s32 %s25, 1
        // Predicated region
        $region13: #{tpu_custom_call.1} parent=11 // pred_check
          %p412 = pneg %p46
        $region14: #{tpu_custom_call.1} parent=11 // pred_check_branch
          %414 = sbr.rel (%p412) target = $region16
        $region15: #{tpu_custom_call.1} parent=11 // pred_region
          _
        $region16: #{tpu_custom_call.1} parent=11 // pred_fallthru
          _
        // Predicated region
        $region17: #{tpu_custom_call.1} parent=11 // pred_check
          %p415 = pneg %p119
        $region18: #{tpu_custom_call.1} parent=11 // pred_check_branch
          %417 = sbr.rel (%p415) target = $region20
        $region19: #{tpu_custom_call.1} parent=11 // pred_region
          _
        $region20: #{tpu_custom_call.1} parent=11 // pred_fallthru
          _
        // Predicated region
        $region21: #{tpu_custom_call.1} parent=11 // pred_check
          %p418 = pneg %p140
        $region22: #{tpu_custom_call.1} parent=11 // pred_check_branch
          %420 = sbr.rel (%p418) target = $region24
        $region23: #{tpu_custom_call.1} parent=11 // pred_region
          _
        $region24: #{tpu_custom_call.1} parent=11 // pred_fallthru
          _
        // Predicated region
        $region25: #{tpu_custom_call.1} parent=11 // pred_check
          %p421 = pneg %p161
        $region26: #{tpu_custom_call.1} parent=11 // pred_check_branch
          %423 = sbr.rel (%p421) target = $region28
        $region27: #{tpu_custom_call.1} parent=11 // pred_region
          _
        $region28: #{tpu_custom_call.1} parent=11 // pred_fallthru
          _
        // Predicated region
        $region29: #{tpu_custom_call.1} parent=11 // pred_check
          %p424 = pneg %p182
        $region30: #{tpu_custom_call.1} parent=11 // pred_check_branch
          %426 = sbr.rel (%p424) target = $region32
        $region31: #{tpu_custom_call.1} parent=11 // pred_region
          _
        $region32: #{tpu_custom_call.1} parent=11 // pred_fallthru
          _
        // Predicated region
        $region33: #{tpu_custom_call.1} parent=11 // pred_check
          %p427 = pneg %p203
        $region34: #{tpu_custom_call.1} parent=11 // pred_check_branch
          %429 = sbr.rel (%p427) target = $region36
        $region35: #{tpu_custom_call.1} parent=11 // pred_region
          _
        $region36: #{tpu_custom_call.1} parent=11 // pred_fallthru
          _
        // Predicated region
        $region37: #{tpu_custom_call.1} parent=11 // pred_check
          %p430 = pneg %p224
        $region38: #{tpu_custom_call.1} parent=11 // pred_check_branch
          %432 = sbr.rel (%p430) target = $region40
        $region39: #{tpu_custom_call.1} parent=11 // pred_region
          _
        $region40: #{tpu_custom_call.1} parent=11 // pred_fallthru
          _
        // Predicated region
        $region41: #{tpu_custom_call.1} parent=11 // pred_check
          %p433 = pneg %p245
        $region42: #{tpu_custom_call.1} parent=11 // pred_check_branch
          %435 = sbr.rel (%p433) target = $region44
        $region43: #{tpu_custom_call.1} parent=11 // pred_region
          _
        $region44: #{tpu_custom_call.1} parent=11 // pred_fallthru
          _
        // Predicated region
        $region45: #{tpu_custom_call.1} parent=11 // pred_check
          %p436 = pneg %p266
        $region46: #{tpu_custom_call.1} parent=11 // pred_check_branch
          %438 = sbr.rel (%p436) target = $region48
        $region47: #{tpu_custom_call.1} parent=11 // pred_region
          _
        $region48: #{tpu_custom_call.1} parent=11 // pred_fallthru
          _
        // Predicated region
        $region49: #{tpu_custom_call.1} parent=11 // pred_check
          %p439 = pneg %p287
        $region50: #{tpu_custom_call.1} parent=11 // pred_check_branch
          %441 = sbr.rel (%p439) target = $region52
        $region51: #{tpu_custom_call.1} parent=11 // pred_region
          _
        $region52: #{tpu_custom_call.1} parent=11 // pred_fallthru
          _
        // Predicated region
        $region53: #{tpu_custom_call.1} parent=11 // pred_check
          %p442 = pneg %p308
        $region54: #{tpu_custom_call.1} parent=11 // pred_check_branch
          %444 = sbr.rel (%p442) target = $region56
        $region55: #{tpu_custom_call.1} parent=11 // pred_region
          _
        $region56: #{tpu_custom_call.1} parent=11 // pred_fallthru
          _
        // Predicated region
        $region57: #{tpu_custom_call.1} parent=11 // pred_check
          %p445 = pneg %p329
        $region58: #{tpu_custom_call.1} parent=11 // pred_check_branch
          %447 = sbr.rel (%p445) target = $region60
        $region59: #{tpu_custom_call.1} parent=11 // pred_region
          _
        $region60: #{tpu_custom_call.1} parent=11 // pred_fallthru
          _
        // Predicated region
        $region61: #{tpu_custom_call.1} parent=11 // pred_check
          %p448 = pneg %p350
        $region62: #{tpu_custom_call.1} parent=11 // pred_check_branch
          %450 = sbr.rel (%p448) target = $region64
        $region63: #{tpu_custom_call.1} parent=11 // pred_region
          _
        $region64: #{tpu_custom_call.1} parent=11 // pred_fallthru
          _
        // Predicated region
        $region65: #{tpu_custom_call.1} parent=11 // pred_check
          %p451 = pneg %p371
        $region66: #{tpu_custom_call.1} parent=11 // pred_check_branch
          %453 = sbr.rel (%p451) target = $region68
        $region67: #{tpu_custom_call.1} parent=11 // pred_region
          _
        $region68: #{tpu_custom_call.1} parent=11 // pred_fallthru
          _
      $region12: #{tpu_custom_call.1} parent=5 // pred_fallthru
        _
      %p454 = scmp.lt.s32.totalorder %s25, 2
      // Predicated region
      $region69: #{tpu_custom_call.1} parent=5 // pred_check
        %p455 = pneg %p454
      $region70: #{tpu_custom_call.1} parent=5 // pred_check_branch
        %457 = sbr.rel (%p455) target = $region72
      $region71: #{tpu_custom_call.1} parent=5 // pred_region
        // Predicated region
        $region73: #{tpu_custom_call.1} parent=71 // pred_check
          %p458 = pneg %p66
        $region74: #{tpu_custom_call.1} parent=71 // pred_check_branch
          %460 = sbr.rel (%p458) target = $region76
        $region75: #{tpu_custom_call.1} parent=71 // pred_region
          %p461 = scmp.lt.s32.totalorder %s25, 1
          %s462 = scalar_select %p461, %s25, 1
          %s463 = smul.addr %s462, 8
          %s464 = scalar_lea.vmem %s1, %s463
        $region76: #{tpu_custom_call.1} parent=71 // pred_fallthru
          _
        // Predicated region
        $region77: #{tpu_custom_call.1} parent=71 // pred_check
          %p465 = pneg %p92
        $region78: #{tpu_custom_call.1} parent=71 // pred_check_branch
          %467 = sbr.rel (%p465) target = $region80
        $region79: #{tpu_custom_call.1} parent=71 // pred_region
          %p468 = scmp.lt.s32.totalorder %s25, 1
          %s469 = scalar_select %p468, %s25, 1
          %s470 = smul.addr %s469, 2
          %s471 = smul.addr %s470, 4
          %s472 = scalar_lea.vmem %s2, %s471
        $region80: #{tpu_custom_call.1} parent=71 // pred_fallthru
          _
      $region72: #{tpu_custom_call.1} parent=5 // pred_fallthru
        _
      %p473 = scmp.le.s32.totalorder 1, %s25
      %p474 = scmp.lt.s32.totalorder %s25, 3
      %p475 = pnand %p473, %p474
      %p476 = pneg %p475
      // Predicated region
      $region81: #{tpu_custom_call.1} parent=5 // pred_check
        _
      $region82: #{tpu_custom_call.1} parent=5 // pred_check_branch
        %478 = sbr.rel (%p475) target = $region84
      $region83: #{tpu_custom_call.1} parent=5 // pred_region
        %s479 = ssub.s32 %s25, 1
        %p480 = pneg %p46
        %p481 = pneg %p43
        %p482 = scmp.lt.s32.totalorder %s30, 1
        %s483 = scalar_select %p482, %s30, 1
        %s484 = smul.addr %s483, 8
        %s485 = scalar_lea.vmem %s1, %s484
        %p486 = pneg %p72
        %p487 = pneg %p69
        %p488 = scmp.lt.s32.totalorder %s30, 1
        %s489 = scalar_select %p488, %s30, 1
        %s490 = smul.addr %s489, 2
        %s491 = smul.addr %s490, 4
        %s492 = scalar_lea.vmem %s2, %s491
        %p493 = pneg %p98
        %p494 = pneg %p95
        %p495 = pneg %p119
        %p496 = pneg %p116
        %p497 = pneg %p140
        %p498 = pneg %p137
        %p499 = pneg %p161
        %p500 = pneg %p158
        %p501 = pneg %p182
        %p502 = pneg %p179
        %p503 = pneg %p203
        %p504 = pneg %p200
        %p505 = pneg %p224
        %p506 = pneg %p221
        %p507 = pneg %p245
        %p508 = pneg %p242
        %p509 = pneg %p266
        %p510 = pneg %p263
        %p511 = pneg %p287
        %p512 = pneg %p284
        %p513 = pneg %p308
        %p514 = pneg %p305
        %p515 = pneg %p329
        %p516 = pneg %p326
        %p517 = pneg %p350
        %p518 = pneg %p347
        %p519 = pneg %p371
        %p520 = pneg %p368
        %p521 = pneg %p397
        %p522 = pneg %p394
        %s523 = sand.u32 %s384, 1
        %s524 = scalar_lea.sflag [#allocation4], %s523
        %s525 = sand.u32 %s384, 1
        %s526 = smul.addr %s525, 8
        %s527 = scalar_lea.vmem [#allocation3], %s526
        %p528 = scmp.lt.s32.totalorder %s30, 1
        %s529 = scalar_select %p528, %s30, 1
        %s530 = smul.addr %s529, 8
        %s531 = scalar_lea.vmem %s1, %s530
        %p532 = scmp.lt.s32.totalorder %s30, 1
        %s533 = scalar_select %p532, %s30, 1
        %s534 = smul.addr %s533, 2
        %s535 = smul.addr %s534, 4
        %s536 = scalar_lea.vmem %s2, %s535
        %v538 = vld [vmem:[%s536] sm:$0xff]
        %v539 = vld [vmem:[%s531] sm:$0xff]
        %v540 = vld [vmem:[%s0] ss:$2 sm:$0x3]
        %s541 = scalar_lea.vmem %s0, 1
        %v542 = vld [vmem:[%s541] ss:$2 sm:$0x3]
        %v543 = vld [vmem:[%s3] sm:$0x1f]
        %v544 = vld [vmem:[%s4] sm:$0x1f]
        %vm545 = vcmask 64512
        %v547 = vsel %vm545, %v543, 0
        %549 = vmatprep.subr.mxu0 0.0
        %v550 = vand.u32 %v539, 4294901760
        %551 = vmatpush1.msra.mxu0 %v550
        %552 = vmatprep.subr.mxu0 0.0
        %553 = vmatpush1.msra.mxu0 0.0
        %554 = vmatprep.subr.mxu0 0.0
        %555 = vmatpush1.msra.mxu0 0.0
        %556 = vmatprep.subr.mxu0 0.0
        %557 = vmatpush1.msra.mxu0 0.0
        %558 = vmatprep.subr.mxu0 0.0
        %559 = vmatpush1.msra.mxu0 0.0
        %560 = vmatprep.subr.mxu0 0.0
        %561 = vmatpush1.msra.mxu0 0.0
        %562 = vmatprep.subr.mxu0 0.0
        %563 = vmatpush1.msra.mxu0 0.0
        %564 = vmatprep.subr.mxu0 0.0
        %565 = vmatpush1.msra.mxu0 0.0
        %566 = vmatprep.subr.mxu0 0.0
        %567 = vmatpush1.msra.mxu0 0.0
        %568 = vmatprep.subr.mxu0 0.0
        %569 = vmatpush1.msra.mxu0 0.0
        %570 = vmatprep.subr.mxu0 0.0
        %571 = vmatpush1.msra.mxu0 0.0
        %572 = vmatprep.subr.mxu0 0.0
        %573 = vmatpush1.msra.mxu0 0.0
        %574 = vmatprep.subr.mxu0 0.0
        %575 = vmatpush1.msra.mxu0 0.0
        %576 = vmatprep.subr.mxu0 0.0
        %577 = vmatpush1.msra.mxu0 0.0
        %578 = vmatprep.subr.mxu0 0.0
        %579 = vmatpush1.msra.mxu0 0.0
        %580 = vmatprep.subr.mxu0 0.0
        %581 = vmatpush1.msra.mxu0 0.0
        %582 = vmatprep.subr.mxu0 0.0
        %583 = vmatpush1.msra.mxu0 0.0
        %584 = vmatprep.subr.mxu0 0.0
        %585 = vmatpush1.msra.mxu0 0.0
        %586 = vmatprep.subr.mxu0 0.0
        %587 = vmatpush1.msra.mxu0 0.0
        %588 = vmatprep.subr.mxu0 0.0
        %589 = vmatpush1.msra.mxu0 0.0
        %590 = vmatprep.subr.mxu0 0.0
        %591 = vmatpush1.msra.mxu0 0.0
        %592 = vmatprep.subr.mxu0 0.0
        %593 = vmatpush1.msra.mxu0 0.0
        %594 = vmatprep.subr.mxu0 0.0
        %595 = vmatpush1.msra.mxu0 0.0
        %596 = vmatprep.subr.mxu0 0.0
        %597 = vmatpush1.msra.mxu0 0.0
        %598 = vmatprep.subr.mxu0 0.0
        %599 = vmatpush1.msra.mxu0 0.0
        %600 = vmatprep.subr.mxu0 0.0
        %601 = vmatpush1.msra.mxu0 0.0
        %602 = vmatprep.subr.mxu0 0.0
        %603 = vmatpush1.msra.mxu0 0.0
        %604 = vmatprep.subr.mxu0 0.0
        %605 = vmatpush1.msra.mxu0 0.0
        %606 = vmatprep.subr.mxu0 0.0
        %607 = vmatpush1.msra.mxu0 0.0
        %608 = vmatprep.subr.mxu0 0.0
        %609 = vmatpush1.msra.mxu0 0.0
        %610 = vmatprep.subr.mxu0 0.0
        %611 = vmatpush1.msra.mxu0 0.0
        %612 = vmatprep.subr.mxu0 0.0
        %613 = vmatpush1.msra.mxu0 0.0
        %614 = vmatprep.mubr.f32.mxu0 0.0
        %v615 = vand.u32 %v547, 4294901760
        %v616 = vsub.f32 %v547, %v615
        %v617 = vand.u32 %v616, 4294901760
        %v618 = vsub.f32 %v616, %v617
        %v619 = vand.u32 %v618, 4294901760
        %620 = vmatmul.mubr.f32.gmra.mrb[0].mxu0 %v619
        %v621 = vpop.f32.mrb[0].mxu0
        %v622 = vadd.f32 %v544, %v621
        %v623 = vpop.f32.mrb[0].mxu0
        %624 = vdwg.mxu0
        %625 = vmatprep.subr.mxu0 0.0
        %v626 = vand.u32 %v539, 4294901760
        %v627 = vsub.f32 %v539, %v626
        %v628 = vand.u32 %v627, 4294901760
        %v629 = vsub.f32 %v627, %v628
        %v630 = vand.u32 %v629, 4294901760
        %631 = vmatpush1.msra.mxu0 %v630
        %632 = vmatprep.subr.mxu0 0.0
        %633 = vmatpush1.msra.mxu0 0.0
        %634 = vmatprep.subr.mxu0 0.0
        %635 = vmatpush1.msra.mxu0 0.0
        %636 = vmatprep.subr.mxu0 0.0
        %637 = vmatpush1.msra.mxu0 0.0
        %638 = vmatprep.subr.mxu0 0.0
        %639 = vmatpush1.msra.mxu0 0.0
        %640 = vmatprep.subr.mxu0 0.0
        %641 = vmatpush1.msra.mxu0 0.0
        %642 = vmatprep.subr.mxu0 0.0
        %643 = vmatpush1.msra.mxu0 0.0
        %644 = vmatprep.subr.mxu0 0.0
        %645 = vmatpush1.msra.mxu0 0.0
        %646 = vmatprep.subr.mxu0 0.0
        %647 = vmatpush1.msra.mxu0 0.0
        %648 = vmatprep.subr.mxu0 0.0
        %649 = vmatpush1.msra.mxu0 0.0
        %650 = vmatprep.subr.mxu0 0.0
        %651 = vmatpush1.msra.mxu0 0.0
        %652 = vmatprep.subr.mxu0 0.0
        %653 = vmatpush1.msra.mxu0 0.0
        %654 = vmatprep.subr.mxu0 0.0
        %655 = vmatpush1.msra.mxu0 0.0
        %656 = vmatprep.subr.mxu0 0.0
        %657 = vmatpush1.msra.mxu0 0.0
        %658 = vmatprep.subr.mxu0 0.0
        %659 = vmatpush1.msra.mxu0 0.0
        %660 = vmatprep.subr.mxu0 0.0
        %661 = vmatpush1.msra.mxu0 0.0
        %662 = vmatprep.subr.mxu0 0.0
        %663 = vmatpush1.msra.mxu0 0.0
        %664 = vmatprep.subr.mxu0 0.0
        %665 = vmatpush1.msra.mxu0 0.0
        %666 = vmatprep.subr.mxu0 0.0
        %667 = vmatpush1.msra.mxu0 0.0
        %668 = vmatprep.subr.mxu0 0.0
        %669 = vmatpush1.msra.mxu0 0.0
        %670 = vmatprep.subr.mxu0 0.0
        %671 = vmatpush1.msra.mxu0 0.0
        %672 = vmatprep.subr.mxu0 0.0
        %673 = vmatpush1.msra.mxu0 0.0
        %674 = vmatprep.subr.mxu0 0.0
        %675 = vmatpush1.msra.mxu0 0.0
        %676 = vmatprep.subr.mxu0 0.0
        %677 = vmatpush1.msra.mxu0 0.0
        %678 = vmatprep.subr.mxu0 0.0
        %679 = vmatpush1.msra.mxu0 0.0
        %680 = vmatprep.subr.mxu0 0.0
        %681 = vmatpush1.msra.mxu0 0.0
        %682 = vmatprep.subr.mxu0 0.0
        %683 = vmatpush1.msra.mxu0 0.0
        %684 = vmatprep.subr.mxu0 0.0
        %685 = vmatpush1.msra.mxu0 0.0
        %686 = vmatprep.subr.mxu0 0.0
        %687 = vmatpush1.msra.mxu0 0.0
        %688 = vmatprep.subr.mxu0 0.0
        %689 = vmatpush1.msra.mxu0 0.0
        %690 = vmatprep.subr.mxu0 0.0
        %691 = vmatpush1.msra.mxu0 0.0
        %692 = vmatprep.subr.mxu0 0.0
        %693 = vmatpush1.msra.mxu0 0.0
        %694 = vmatprep.mubr.f32.mxu0 0.0
        %v695 = vand.u32 %v547, 4294901760
        %696 = vmatmul.mubr.f32.gmra.mrb[0].mxu0 %v695
        %v697 = vpop.f32.mrb[0].mxu0
        %v698 = vadd.f32 %v622, %v697
        %v699 = vpop.f32.mrb[0].mxu0
        %700 = vdwg.mxu0
        %701 = vmatprep.subr.mxu0 0.0
        %v702 = vand.u32 %v539, 4294901760
        %v703 = vsub.f32 %v539, %v702
        %704 = vmatpush1.msra.mxu0 %v703
        %705 = vmatprep.subr.mxu0 0.0
        %706 = vmatpush1.msra.mxu0 0.0
        %707 = vmatprep.subr.mxu0 0.0
        %708 = vmatpush1.msra.mxu0 0.0
        %709 = vmatprep.subr.mxu0 0.0
        %710 = vmatpush1.msra.mxu0 0.0
        %711 = vmatprep.subr.mxu0 0.0
        %712 = vmatpush1.msra.mxu0 0.0
        %713 = vmatprep.subr.mxu0 0.0
        %714 = vmatpush1.msra.mxu0 0.0
        %715 = vmatprep.subr.mxu0 0.0
        %716 = vmatpush1.msra.mxu0 0.0
        %717 = vmatprep.subr.mxu0 0.0
        %718 = vmatpush1.msra.mxu0 0.0
        %719 = vmatprep.subr.mxu0 0.0
        %720 = vmatpush1.msra.mxu0 0.0
        %721 = vmatprep.subr.mxu0 0.0
        %722 = vmatpush1.msra.mxu0 0.0
        %723 = vmatprep.subr.mxu0 0.0
        %724 = vmatpush1.msra.mxu0 0.0
        %725 = vmatprep.subr.mxu0 0.0
        %726 = vmatpush1.msra.mxu0 0.0
        %727 = vmatprep.subr.mxu0 0.0
        %728 = vmatpush1.msra.mxu0 0.0
        %729 = vmatprep.subr.mxu0 0.0
        %730 = vmatpush1.msra.mxu0 0.0
        %731 = vmatprep.subr.mxu0 0.0
        %732 = vmatpush1.msra.mxu0 0.0
        %733 = vmatprep.subr.mxu0 0.0
        %734 = vmatpush1.msra.mxu0 0.0
        %735 = vmatprep.subr.mxu0 0.0
        %736 = vmatpush1.msra.mxu0 0.0
        %737 = vmatprep.subr.mxu0 0.0
        %738 = vmatpush1.msra.mxu0 0.0
        %739 = vmatprep.subr.mxu0 0.0
        %740 = vmatpush1.msra.mxu0 0.0
        %741 = vmatprep.subr.mxu0 0.0
        %742 = vmatpush1.msra.mxu0 0.0
        %743 = vmatprep.subr.mxu0 0.0
        %744 = vmatpush1.msra.mxu0 0.0
        %745 = vmatprep.subr.mxu0 0.0
        %746 = vmatpush1.msra.mxu0 0.0
        %747 = vmatprep.subr.mxu0 0.0
        %748 = vmatpush1.msra.mxu0 0.0
        %749 = vmatprep.subr.mxu0 0.0
        %750 = vmatpush1.msra.mxu0 0.0
        %751 = vmatprep.subr.mxu0 0.0
        %752 = vmatpush1.msra.mxu0 0.0
        %753 = vmatprep.subr.mxu0 0.0
        %754 = vmatpush1.msra.mxu0 0.0
        %755 = vmatprep.subr.mxu0 0.0
        %756 = vmatpush1.msra.mxu0 0.0
        %757 = vmatprep.subr.mxu0 0.0
        %758 = vmatpush1.msra.mxu0 0.0
        %759 = vmatprep.subr.mxu0 0.0
        %760 = vmatpush1.msra.mxu0 0.0
        %761 = vmatprep.subr.mxu0 0.0
        %762 = vmatpush1.msra.mxu0 0.0
        %763 = vmatprep.subr.mxu0 0.0
        %764 = vmatpush1.msra.mxu0 0.0
        %765 = vmatprep.subr.mxu0 0.0
        %766 = vmatpush1.msra.mxu0 0.0
        %767 = vmatprep.mubr.f32.mxu0 0.0
        %v768 = vand.u32 %v547, 4294901760
        %v769 = vsub.f32 %v547, %v768
        %770 = vmatmul.mubr.f32.gmra.mrb[0].mxu0 %v769
        %v771 = vpop.f32.mrb[0].mxu0
        %v772 = vadd.f32 %v698, %v771
        %v773 = vpop.f32.mrb[0].mxu0
        %774 = vdwg.mxu0
        %775 = vmatprep.subr.mxu0 0.0
        %v776 = vand.u32 %v539, 4294901760
        %777 = vmatpush1.msra.mxu0 %v776
        %778 = vmatprep.subr.mxu0 0.0
        %779 = vmatpush1.msra.mxu0 0.0
        %780 = vmatprep.subr.mxu0 0.0
        %781 = vmatpush1.msra.mxu0 0.0
        %782 = vmatprep.subr.mxu0 0.0
        %783 = vmatpush1.msra.mxu0 0.0
        %784 = vmatprep.subr.mxu0 0.0
        %785 = vmatpush1.msra.mxu0 0.0
        %786 = vmatprep.subr.mxu0 0.0
        %787 = vmatpush1.msra.mxu0 0.0
        %788 = vmatprep.subr.mxu0 0.0
        %789 = vmatpush1.msra.mxu0 0.0
        %790 = vmatprep.subr.mxu0 0.0
        %791 = vmatpush1.msra.mxu0 0.0
        %792 = vmatprep.subr.mxu0 0.0
        %793 = vmatpush1.msra.mxu0 0.0
        %794 = vmatprep.subr.mxu0 0.0
        %795 = vmatpush1.msra.mxu0 0.0
        %796 = vmatprep.subr.mxu0 0.0
        %797 = vmatpush1.msra.mxu0 0.0
        %798 = vmatprep.subr.mxu0 0.0
        %799 = vmatpush1.msra.mxu0 0.0
        %800 = vmatprep.subr.mxu0 0.0
        %801 = vmatpush1.msra.mxu0 0.0
        %802 = vmatprep.subr.mxu0 0.0
        %803 = vmatpush1.msra.mxu0 0.0
        %804 = vmatprep.subr.mxu0 0.0
        %805 = vmatpush1.msra.mxu0 0.0
        %806 = vmatprep.subr.mxu0 0.0
        %807 = vmatpush1.msra.mxu0 0.0
        %808 = vmatprep.subr.mxu0 0.0
        %809 = vmatpush1.msra.mxu0 0.0
        %810 = vmatprep.subr.mxu0 0.0
        %811 = vmatpush1.msra.mxu0 0.0
        %812 = vmatprep.subr.mxu0 0.0
        %813 = vmatpush1.msra.mxu0 0.0
        %814 = vmatprep.subr.mxu0 0.0
        %815 = vmatpush1.msra.mxu0 0.0
        %816 = vmatprep.subr.mxu0 0.0
        %817 = vmatpush1.msra.mxu0 0.0
        %818 = vmatprep.subr.mxu0 0.0
        %819 = vmatpush1.msra.mxu0 0.0
        %820 = vmatprep.subr.mxu0 0.0
        %821 = vmatpush1.msra.mxu0 0.0
        %822 = vmatprep.subr.mxu0 0.0
        %823 = vmatpush1.msra.mxu0 0.0
        %824 = vmatprep.subr.mxu0 0.0
        %825 = vmatpush1.msra.mxu0 0.0
        %826 = vmatprep.subr.mxu0 0.0
        %827 = vmatpush1.msra.mxu0 0.0
        %828 = vmatprep.subr.mxu0 0.0
        %829 = vmatpush1.msra.mxu0 0.0
        %830 = vmatprep.subr.mxu0 0.0
        %831 = vmatpush1.msra.mxu0 0.0
        %832 = vmatprep.subr.mxu0 0.0
        %833 = vmatpush1.msra.mxu0 0.0
        %834 = vmatprep.subr.mxu0 0.0
        %835 = vmatpush1.msra.mxu0 0.0
        %836 = vmatprep.subr.mxu0 0.0
        %837 = vmatpush1.msra.mxu0 0.0
        %838 = vmatprep.subr.mxu0 0.0
        %839 = vmatpush1.msra.mxu0 0.0
        %840 = vmatprep.mubr.f32.mxu0 0.0
        %v841 = vand.u32 %v547, 4294901760
        %v842 = vsub.f32 %v547, %v841
        %v843 = vand.u32 %v842, 4294901760
        %844 = vmatmul.mubr.f32.gmra.mrb[0].mxu0 %v843
        %v845 = vpop.f32.mrb[0].mxu0
        %v846 = vadd.f32 %v772, %v845
        %v847 = vpop.f32.mrb[0].mxu0
        %848 = vdwg.mxu0
        %849 = vmatprep.subr.mxu0 0.0
        %v850 = vand.u32 %v539, 4294901760
        %v851 = vsub.f32 %v539, %v850
        %v852 = vand.u32 %v851, 4294901760
        %853 = vmatpush1.msra.mxu0 %v852
        %854 = vmatprep.subr.mxu0 0.0
        %855 = vmatpush1.msra.mxu0 0.0
        %856 = vmatprep.subr.mxu0 0.0
        %857 = vmatpush1.msra.mxu0 0.0
        %858 = vmatprep.subr.mxu0 0.0
        %859 = vmatpush1.msra.mxu0 0.0
        %860 = vmatprep.subr.mxu0 0.0
        %861 = vmatpush1.msra.mxu0 0.0
        %862 = vmatprep.subr.mxu0 0.0
        %863 = vmatpush1.msra.mxu0 0.0
        %864 = vmatprep.subr.mxu0 0.0
        %865 = vmatpush1.msra.mxu0 0.0
        %866 = vmatprep.subr.mxu0 0.0
        %867 = vmatpush1.msra.mxu0 0.0
        %868 = vmatprep.subr.mxu0 0.0
        %869 = vmatpush1.msra.mxu0 0.0
        %870 = vmatprep.subr.mxu0 0.0
        %871 = vmatpush1.msra.mxu0 0.0
        %872 = vmatprep.subr.mxu0 0.0
        %873 = vmatpush1.msra.mxu0 0.0
        %874 = vmatprep.subr.mxu0 0.0
        %875 = vmatpush1.msra.mxu0 0.0
        %876 = vmatprep.subr.mxu0 0.0
        %877 = vmatpush1.msra.mxu0 0.0
        %878 = vmatprep.subr.mxu0 0.0
        %879 = vmatpush1.msra.mxu0 0.0
        %880 = vmatprep.subr.mxu0 0.0
        %881 = vmatpush1.msra.mxu0 0.0
        %882 = vmatprep.subr.mxu0 0.0
        %883 = vmatpush1.msra.mxu0 0.0
        %884 = vmatprep.subr.mxu0 0.0
        %885 = vmatpush1.msra.mxu0 0.0
        %886 = vmatprep.subr.mxu0 0.0
        %887 = vmatpush1.msra.mxu0 0.0
        %888 = vmatprep.subr.mxu0 0.0
        %889 = vmatpush1.msra.mxu0 0.0
        %890 = vmatprep.subr.mxu0 0.0
        %891 = vmatpush1.msra.mxu0 0.0
        %892 = vmatprep.subr.mxu0 0.0
        %893 = vmatpush1.msra.mxu0 0.0
        %894 = vmatprep.subr.mxu0 0.0
        %895 = vmatpush1.msra.mxu0 0.0
        %896 = vmatprep.subr.mxu0 0.0
        %897 = vmatpush1.msra.mxu0 0.0
        %898 = vmatprep.subr.mxu0 0.0
        %899 = vmatpush1.msra.mxu0 0.0
        %900 = vmatprep.subr.mxu0 0.0
        %901 = vmatpush1.msra.mxu0 0.0
        %902 = vmatprep.subr.mxu0 0.0
        %903 = vmatpush1.msra.mxu0 0.0
        %904 = vmatprep.subr.mxu0 0.0
        %905 = vmatpush1.msra.mxu0 0.0
        %906 = vmatprep.subr.mxu0 0.0
        %907 = vmatpush1.msra.mxu0 0.0
        %908 = vmatprep.subr.mxu0 0.0
        %909 = vmatpush1.msra.mxu0 0.0
        %910 = vmatprep.subr.mxu0 0.0
        %911 = vmatpush1.msra.mxu0 0.0
        %912 = vmatprep.subr.mxu0 0.0
        %913 = vmatpush1.msra.mxu0 0.0
        %914 = vmatprep.subr.mxu0 0.0
        %915 = vmatpush1.msra.mxu0 0.0
        %916 = vmatprep.mubr.f32.mxu0 0.0
        %v917 = vand.u32 %v547, 4294901760
        %918 = vmatmul.mubr.f32.gmra.mrb[0].mxu0 %v917
        %v919 = vpop.f32.mrb[0].mxu0
        %v920 = vadd.f32 %v846, %v919
        %v921 = vpop.f32.mrb[0].mxu0
        %922 = vdwg.mxu0
        %923 = vmatprep.subr.mxu0 0.0
        %v924 = vand.u32 %v539, 4294901760
        %925 = vmatpush1.msra.mxu0 %v924
        %926 = vmatprep.subr.mxu0 0.0
        %927 = vmatpush1.msra.mxu0 0.0
        %928 = vmatprep.subr.mxu0 0.0
        %929 = vmatpush1.msra.mxu0 0.0
        %930 = vmatprep.subr.mxu0 0.0
        %931 = vmatpush1.msra.mxu0 0.0
        %932 = vmatprep.subr.mxu0 0.0
        %933 = vmatpush1.msra.mxu0 0.0
        %934 = vmatprep.subr.mxu0 0.0
        %935 = vmatpush1.msra.mxu0 0.0
        %936 = vmatprep.subr.mxu0 0.0
        %937 = vmatpush1.msra.mxu0 0.0
        %938 = vmatprep.subr.mxu0 0.0
        %939 = vmatpush1.msra.mxu0 0.0
        %940 = vmatprep.subr.mxu0 0.0
        %941 = vmatpush1.msra.mxu0 0.0
        %942 = vmatprep.subr.mxu0 0.0
        %943 = vmatpush1.msra.mxu0 0.0
        %944 = vmatprep.subr.mxu0 0.0
        %945 = vmatpush1.msra.mxu0 0.0
        %946 = vmatprep.subr.mxu0 0.0
        %947 = vmatpush1.msra.mxu0 0.0
        %948 = vmatprep.subr.mxu0 0.0
        %949 = vmatpush1.msra.mxu0 0.0
        %950 = vmatprep.subr.mxu0 0.0
        %951 = vmatpush1.msra.mxu0 0.0
        %952 = vmatprep.subr.mxu0 0.0
        %953 = vmatpush1.msra.mxu0 0.0
        %954 = vmatprep.subr.mxu0 0.0
        %955 = vmatpush1.msra.mxu0 0.0
        %956 = vmatprep.subr.mxu0 0.0
        %957 = vmatpush1.msra.mxu0 0.0
        %958 = vmatprep.subr.mxu0 0.0
        %959 = vmatpush1.msra.mxu0 0.0
        %960 = vmatprep.subr.mxu0 0.0
        %961 = vmatpush1.msra.mxu0 0.0
        %962 = vmatprep.subr.mxu0 0.0
        %963 = vmatpush1.msra.mxu0 0.0
        %964 = vmatprep.subr.mxu0 0.0
        %965 = vmatpush1.msra.mxu0 0.0
        %966 = vmatprep.subr.mxu0 0.0
        %967 = vmatpush1.msra.mxu0 0.0
        %968 = vmatprep.subr.mxu0 0.0
        %969 = vmatpush1.msra.mxu0 0.0
        %970 = vmatprep.subr.mxu0 0.0
        %971 = vmatpush1.msra.mxu0 0.0
        %972 = vmatprep.subr.mxu0 0.0
        %973 = vmatpush1.msra.mxu0 0.0
        %974 = vmatprep.subr.mxu0 0.0
        %975 = vmatpush1.msra.mxu0 0.0
        %976 = vmatprep.subr.mxu0 0.0
        %977 = vmatpush1.msra.mxu0 0.0
        %978 = vmatprep.subr.mxu0 0.0
        %979 = vmatpush1.msra.mxu0 0.0
        %980 = vmatprep.subr.mxu0 0.0
        %981 = vmatpush1.msra.mxu0 0.0
        %982 = vmatprep.subr.mxu0 0.0
        %983 = vmatpush1.msra.mxu0 0.0
        %984 = vmatprep.subr.mxu0 0.0
        %985 = vmatpush1.msra.mxu0 0.0
        %986 = vmatprep.subr.mxu0 0.0
        %987 = vmatpush1.msra.mxu0 0.0
        %988 = vmatprep.mubr.f32.mxu0 0.0
        %v989 = vand.u32 %v547, 4294901760
        %990 = vmatmul.mubr.f32.gmra.mrb[0].mxu0 %v989
        %v991 = vpop.f32.mrb[0].mxu0
        %v992 = vadd.f32 %v920, %v991
        %v993 = vpop.f32.mrb[0].mxu0
        %994 = vdwg.mxu0
        %v995 = vmax.f32 %v992, 0.0
        %997 = vset.pattern.permute.xlu0 0
        %998 = vperm.xlu0 %997, %v995
        %v999 = vpop.permute.xlu0 %998
        %v1001 = vunpack.c.l.s4 839922192
        %v1002 = vunpack.c.0.s8 %v1001
        %v1003 = vlaneseq
        %v1004 = vshrl.u32 %v1003, 7
        %v1005 = vsub.s32 %v1002, %v1004
        %v1006 = vrot.slane %v999, %v1005
        %v1008 = vmul.f32 %v538, %v1006
        %v1009 = vrot.slane %v995, 4
        %s1010 = vtos %v1009
        %v1011 = vstv %s1010
        %v1013 = vadd.f32 %v1008, %v1011
        %v1014 = vld [vmem:[%s15] sm:$0xf]
        %vm1015 = vcmask 132096
        %1016 = vst.msk [vmem:[#allocation2] sm:$0x3] %vm1015, 0
        %vm1017 = vcmask 271496
        %1018 = vst.msk [vmem:[#allocation2 + $0x4] sm:$0x3] %vm1017, 0
        %v1020 = vcombine.high %v1013, %v1013
        %v1022 = vpack.c.bf16 %v1013, %v1013
        %v1023 = vpack.c.bf16 %v1020, %v1020
        %v1026 = vcombine.low %v1022, %v1023
        %v1028 = vunpack.c.l.s4 1983009808
        %v1029 = vunpack.c.0.s8 %v1028
        %v1030 = vlaneseq
        %v1031 = vshrl.u32 %v1030, 7
        %v1032 = vsub.s32 %v1029, %v1031
        %v1033 = vrot.slane %v1026, %v1032
        %1034 = vrot.lane.b32.xlu0 %v1033, 17
        %v1035 = vpop.permute.xlu0 %1034
        %v1036 = vrot.slane %v1035, 6
        %vm1037 = vcmask 138240
        %v1038 = vsel %vm1037, %v1036, %v1035
        %vm1040 = vcmask 1041544
        %vm1041 = vcmask 1043458
        %vm1042 = vmor %vm1041, %vm1040
        %vm1043 = vcmask 136196
        %vm1044 = vmor %vm1043, %vm1042
        %1045 = vst.msk [vmem:[#allocation2] sm:$0x3f] %vm1044, %v1038
        %v1046 = vld [vmem:[#allocation2] sm:$0xf]
        %v1047 = vld [vmem:[%s14] sm:$0x3]
        %v1050 = vunpack.c.l.s4 1983009808
        %v1051 = vunpack.c.0.s8 %v1050
        %v1052 = vlaneseq
        %v1053 = vshrl.u32 %v1052, 7
        %v1054 = vsub.s32 %v1051, %v1053
        %v1055 = vrot.slane %v1046, %v1054
        %v1056 = vcombine.high %v1055, %v1055
        %vm1057 = vcmask 31744
        %v1059 = vsel %vm1057, %v1047, 0
        %vm1061 = vcmask 1041408
        %v1063 = vsel %vm1061, %v1055, 0
        %v1066 = vsel %vm1061, %v1056, 0
        %1068 = vmatprep.subr.bf16.mxu0 %v1066
        %1069 = vmatpush1.bf16.msra.mxu0 %v1063
        %1070 = vmatprep.subr.bf16.mxu0 0
        %1071 = vmatpush1.bf16.msra.mxu0 0
        %1072 = vmatprep.subr.bf16.mxu0 0
        %1073 = vmatpush1.bf16.msra.mxu0 0
        %1074 = vmatprep.subr.bf16.mxu0 0
        %1075 = vmatpush1.bf16.msra.mxu0 0
        %1076 = vmatprep.subr.bf16.mxu0 0
        %1077 = vmatpush1.bf16.msra.mxu0 0
        %1078 = vmatprep.subr.bf16.mxu0 0
        %1079 = vmatpush1.bf16.msra.mxu0 0
        %1080 = vmatprep.subr.bf16.mxu0 0
        %1081 = vmatpush1.bf16.msra.mxu0 0
        %1082 = vmatprep.subr.bf16.mxu0 0
        %1083 = vmatpush1.bf16.msra.mxu0 0
        %1084 = vmatprep.subr.bf16.mxu0 0
        %1085 = vmatpush1.bf16.msra.mxu0 0
        %1086 = vmatprep.subr.bf16.mxu0 0
        %1087 = vmatpush1.bf16.msra.mxu0 0
        %1088 = vmatprep.subr.bf16.mxu0 0
        %1089 = vmatpush1.bf16.msra.mxu0 0
        %1090 = vmatprep.subr.bf16.mxu0 0
        %1091 = vmatpush1.bf16.msra.mxu0 0
        %1092 = vmatprep.subr.bf16.mxu0 0
        %1093 = vmatpush1.bf16.msra.mxu0 0
        %1094 = vmatprep.subr.bf16.mxu0 0
        %1095 = vmatpush1.bf16.msra.mxu0 0
        %1096 = vmatprep.subr.bf16.mxu0 0
        %1097 = vmatpush1.bf16.msra.mxu0 0
        %1098 = vmatprep.subr.bf16.mxu0 0
        %1099 = vmatpush1.bf16.msra.mxu0 0
        %1100 = vmatprep.mubr.bf16.mxu0 0
        %1101 = vmatmul.mubr.bf16.gmra.mrb[0].mxu0 %v1059
        %v1102 = vpop.f32.mrb[0].mxu0
        %v1103 = vadd.f32 0.0, %v1102
        %v1104 = vpop.f32.mrb[0].mxu0
        %v1105 = vadd.f32 0.0, %v1104
        %v1106 = vpop.f32.mrb[0].mxu0
        %v1107 = vpop.f32.mrb[0].mxu0
        %1108 = vdwg.mxu0
        %v1110 = vlaneseq
        %v1111 = vshrl.u32 %v1110, 7
        %v1112 = vsub.s32 0, %v1111
        %v1113 = vrot.slane %v540, %v1112
        %v1114 = vlaneseq
        %v1115 = vshrl.u32 %v1114, 7
        %v1116 = vsub.s32 1, %v1115
        %v1117 = vrot.slane %v540, %v1116
        %v1120 = vmul.f32 %v1103, %v1113
        %v1121 = vmul.f32 %v1105, %v1117
        %v1122 = vld [vmem:[#allocation2] sm:$0x3f]
        %s1123 = scalar_lea.vmem %s14, 2
        %v1124 = vld [vmem:[%s1123] sm:$0x3]
        %v1126 = vcombine.high %v1122, %v1122
        %v1128 = vunpack.c.l.s4 1983009808
        %v1129 = vunpack.c.0.s8 %v1128
        %v1130 = vlaneseq
        %v1131 = vshrl.u32 %v1130, 7
        %v1132 = vsub.s32 %v1129, %v1131
        %v1133 = vrot.slane %v1122, %v1132
        %v1135 = vunpack.c.l.s4 1983009808
        %v1136 = vunpack.c.0.s8 %v1135
        %v1137 = vlaneseq
        %v1138 = vshrl.u32 %v1137, 7
        %v1139 = vsub.s32 %v1136, %v1138
        %v1140 = vrot.slane %v1126, %v1139
        %v1141 = vcombine.high %v1133, %v1133
        %1142 = vrot.lane.b32.xlu0 %v1133, 127
        %v1143 = vpop.permute.xlu0 %1142
        %1144 = vrot.lane.b32.xlu0 %v1141, 127
        %v1145 = vpop.permute.xlu0 %1144
        %1146 = vrot.lane.b32.xlu0 %v1140, 127
        %v1147 = vpop.permute.xlu0 %1146
        %vm1148 = vcmask 1039360
        %v1149 = vsel %vm1148, %v1143, %v1145
        %v1150 = vsel %vm1148, %v1145, %v1147
        %v1152 = vsel %vm1057, %v1124, 0
        %v1155 = vsel %vm1061, %v1149, 0
        %v1158 = vsel %vm1061, %v1150, 0
        %1160 = vmatprep.subr.bf16.mxu0 %v1158
        %1161 = vmatpush1.bf16.msra.mxu0 %v1155
        %1162 = vmatprep.subr.bf16.mxu0 0
        %1163 = vmatpush1.bf16.msra.mxu0 0
        %1164 = vmatprep.subr.bf16.mxu0 0
        %1165 = vmatpush1.bf16.msra.mxu0 0
        %1166 = vmatprep.subr.bf16.mxu0 0
        %1167 = vmatpush1.bf16.msra.mxu0 0
        %1168 = vmatprep.subr.bf16.mxu0 0
        %1169 = vmatpush1.bf16.msra.mxu0 0
        %1170 = vmatprep.subr.bf16.mxu0 0
        %1171 = vmatpush1.bf16.msra.mxu0 0
        %1172 = vmatprep.subr.bf16.mxu0 0
        %1173 = vmatpush1.bf16.msra.mxu0 0
        %1174 = vmatprep.subr.bf16.mxu0 0
        %1175 = vmatpush1.bf16.msra.mxu0 0
        %1176 = vmatprep.subr.bf16.mxu0 0
        %1177 = vmatpush1.bf16.msra.mxu0 0
        %1178 = vmatprep.subr.bf16.mxu0 0
        %1179 = vmatpush1.bf16.msra.mxu0 0
        %1180 = vmatprep.subr.bf16.mxu0 0
        %1181 = vmatpush1.bf16.msra.mxu0 0
        %1182 = vmatprep.subr.bf16.mxu0 0
        %1183 = vmatpush1.bf16.msra.mxu0 0
        %1184 = vmatprep.subr.bf16.mxu0 0
        %1185 = vmatpush1.bf16.msra.mxu0 0
        %1186 = vmatprep.subr.bf16.mxu0 0
        %1187 = vmatpush1.bf16.msra.mxu0 0
        %1188 = vmatprep.subr.bf16.mxu0 0
        %1189 = vmatpush1.bf16.msra.mxu0 0
        %1190 = vmatprep.subr.bf16.mxu0 0
        %1191 = vmatpush1.bf16.msra.mxu0 0
        %1192 = vmatprep.mubr.bf16.mxu0 0
        %1193 = vmatmul.mubr.bf16.gmra.mrb[0].mxu0 %v1152
        %v1194 = vpop.f32.mrb[0].mxu0
        %v1195 = vadd.f32 0.0, %v1194
        %v1196 = vpop.f32.mrb[0].mxu0
        %v1197 = vadd.f32 0.0, %v1196
        %v1198 = vpop.f32.mrb[0].mxu0
        %v1199 = vpop.f32.mrb[0].mxu0
        %1200 = vdwg.mxu0
        %v1201 = vadd.f32 %v1120, %v1195
        %v1202 = vadd.f32 %v1121, %v1197
        %v1203 = vld [vmem:[#allocation2] sm:$0x3f]
        %s1204 = scalar_lea.vmem %s14, 4
        %v1205 = vld [vmem:[%s1204] sm:$0x3]
        %v1207 = vcombine.high %v1203, %v1203
        %v1209 = vunpack.c.l.s4 1983009808
        %v1210 = vunpack.c.0.s8 %v1209
        %v1211 = vlaneseq
        %v1212 = vshrl.u32 %v1211, 7
        %v1213 = vsub.s32 %v1210, %v1212
        %v1214 = vrot.slane %v1203, %v1213
        %v1216 = vunpack.c.l.s4 1983009808
        %v1217 = vunpack.c.0.s8 %v1216
        %v1218 = vlaneseq
        %v1219 = vshrl.u32 %v1218, 7
        %v1220 = vsub.s32 %v1217, %v1219
        %v1221 = vrot.slane %v1207, %v1220
        %v1222 = vcombine.high %v1214, %v1214
        %1223 = vrot.lane.b32.xlu0 %v1214, 126
        %v1224 = vpop.permute.xlu0 %1223
        %1225 = vrot.lane.b32.xlu0 %v1222, 126
        %v1226 = vpop.permute.xlu0 %1225
        %1227 = vrot.lane.b32.xlu0 %v1221, 126
        %v1228 = vpop.permute.xlu0 %1227
        %vm1229 = vcmask 1031168
        %v1230 = vsel %vm1229, %v1224, %v1226
        %v1231 = vsel %vm1229, %v1226, %v1228
        %v1233 = vsel %vm1057, %v1205, 0
        %v1236 = vsel %vm1061, %v1230, 0
        %v1239 = vsel %vm1061, %v1231, 0
        %1241 = vmatprep.subr.bf16.mxu0 %v1239
        %1242 = vmatpush1.bf16.msra.mxu0 %v1236
        %1243 = vmatprep.subr.bf16.mxu0 0
        %1244 = vmatpush1.bf16.msra.mxu0 0
        %1245 = vmatprep.subr.bf16.mxu0 0
        %1246 = vmatpush1.bf16.msra.mxu0 0
        %1247 = vmatprep.subr.bf16.mxu0 0
        %1248 = vmatpush1.bf16.msra.mxu0 0
        %1249 = vmatprep.subr.bf16.mxu0 0
        %1250 = vmatpush1.bf16.msra.mxu0 0
        %1251 = vmatprep.subr.bf16.mxu0 0
        %1252 = vmatpush1.bf16.msra.mxu0 0
        %1253 = vmatprep.subr.bf16.mxu0 0
        %1254 = vmatpush1.bf16.msra.mxu0 0
        %1255 = vmatprep.subr.bf16.mxu0 0
        %1256 = vmatpush1.bf16.msra.mxu0 0
        %1257 = vmatprep.subr.bf16.mxu0 0
        %1258 = vmatpush1.bf16.msra.mxu0 0
        %1259 = vmatprep.subr.bf16.mxu0 0
        %1260 = vmatpush1.bf16.msra.mxu0 0
        %1261 = vmatprep.subr.bf16.mxu0 0
        %1262 = vmatpush1.bf16.msra.mxu0 0
        %1263 = vmatprep.subr.bf16.mxu0 0
        %1264 = vmatpush1.bf16.msra.mxu0 0
        %1265 = vmatprep.subr.bf16.mxu0 0
        %1266 = vmatpush1.bf16.msra.mxu0 0
        %1267 = vmatprep.subr.bf16.mxu0 0
        %1268 = vmatpush1.bf16.msra.mxu0 0
        %1269 = vmatprep.subr.bf16.mxu0 0
        %1270 = vmatpush1.bf16.msra.mxu0 0
        %1271 = vmatprep.subr.bf16.mxu0 0
        %1272 = vmatpush1.bf16.msra.mxu0 0
        %1273 = vmatprep.mubr.bf16.mxu0 0
        %1274 = vmatmul.mubr.bf16.gmra.mrb[0].mxu0 %v1233
        %v1275 = vpop.f32.mrb[0].mxu0
        %v1276 = vadd.f32 0.0, %v1275
        %v1277 = vpop.f32.mrb[0].mxu0
        %v1278 = vadd.f32 0.0, %v1277
        %v1279 = vpop.f32.mrb[0].mxu0
        %v1280 = vpop.f32.mrb[0].mxu0
        %1281 = vdwg.mxu0
        %v1283 = vlaneseq
        %v1284 = vshrl.u32 %v1283, 7
        %v1285 = vsub.s32 0, %v1284
        %v1286 = vrot.slane %v542, %v1285
        %v1287 = vlaneseq
        %v1288 = vshrl.u32 %v1287, 7
        %v1289 = vsub.s32 1, %v1288
        %v1290 = vrot.slane %v542, %v1289
        %v1293 = vmul.f32 %v1276, %v1286
        %v1294 = vmul.f32 %v1278, %v1290
        %v1295 = vadd.f32 %v1201, %v1293
        %v1296 = vadd.f32 %v1202, %v1294
        %v1297 = vld [vmem:[#allocation2] sm:$0x3f]
        %s1298 = scalar_lea.vmem %s14, 6
        %v1299 = vld [vmem:[%s1298] sm:$0x3]
        %v1301 = vcombine.high %v1297, %v1297
        %v1303 = vunpack.c.l.s4 1983009808
        %v1304 = vunpack.c.0.s8 %v1303
        %v1305 = vlaneseq
        %v1306 = vshrl.u32 %v1305, 7
        %v1307 = vsub.s32 %v1304, %v1306
        %v1308 = vrot.slane %v1297, %v1307
        %v1310 = vunpack.c.l.s4 1983009808
        %v1311 = vunpack.c.0.s8 %v1310
        %v1312 = vlaneseq
        %v1313 = vshrl.u32 %v1312, 7
        %v1314 = vsub.s32 %v1311, %v1313
        %v1315 = vrot.slane %v1301, %v1314
        %v1316 = vcombine.high %v1308, %v1308
        %1317 = vrot.lane.b32.xlu0 %v1308, 112
        %v1318 = vpop.permute.xlu0 %1317
        %1319 = vrot.lane.b32.xlu0 %v1316, 112
        %v1320 = vpop.permute.xlu0 %1319
        %1321 = vrot.lane.b32.xlu0 %v1315, 112
        %v1322 = vpop.permute.xlu0 %1321
        %vm1323 = vcmask 916480
        %v1324 = vsel %vm1323, %v1318, %v1320
        %v1325 = vsel %vm1323, %v1320, %v1322
        %v1327 = vsel %vm1057, %v1299, 0
        %v1330 = vsel %vm1061, %v1324, 0
        %v1333 = vsel %vm1061, %v1325, 0
        %1335 = vmatprep.subr.bf16.mxu0 %v1333
        %1336 = vmatpush1.bf16.msra.mxu0 %v1330
        %1337 = vmatprep.subr.bf16.mxu0 0
        %1338 = vmatpush1.bf16.msra.mxu0 0
        %1339 = vmatprep.subr.bf16.mxu0 0
        %1340 = vmatpush1.bf16.msra.mxu0 0
        %1341 = vmatprep.subr.bf16.mxu0 0
        %1342 = vmatpush1.bf16.msra.mxu0 0
        %1343 = vmatprep.subr.bf16.mxu0 0
        %1344 = vmatpush1.bf16.msra.mxu0 0
        %1345 = vmatprep.subr.bf16.mxu0 0
        %1346 = vmatpush1.bf16.msra.mxu0 0
        %1347 = vmatprep.subr.bf16.mxu0 0
        %1348 = vmatpush1.bf16.msra.mxu0 0
        %1349 = vmatprep.subr.bf16.mxu0 0
        %1350 = vmatpush1.bf16.msra.mxu0 0
        %1351 = vmatprep.subr.bf16.mxu0 0
        %1352 = vmatpush1.bf16.msra.mxu0 0
        %1353 = vmatprep.subr.bf16.mxu0 0
        %1354 = vmatpush1.bf16.msra.mxu0 0
        %1355 = vmatprep.subr.bf16.mxu0 0
        %1356 = vmatpush1.bf16.msra.mxu0 0
        %1357 = vmatprep.subr.bf16.mxu0 0
        %1358 = vmatpush1.bf16.msra.mxu0 0
        %1359 = vmatprep.subr.bf16.mxu0 0
        %1360 = vmatpush1.bf16.msra.mxu0 0
        %1361 = vmatprep.subr.bf16.mxu0 0
        %1362 = vmatpush1.bf16.msra.mxu0 0
        %1363 = vmatprep.subr.bf16.mxu0 0
        %1364 = vmatpush1.bf16.msra.mxu0 0
        %1365 = vmatprep.subr.bf16.mxu0 0
        %1366 = vmatpush1.bf16.msra.mxu0 0
        %1367 = vmatprep.mubr.bf16.mxu0 0
        %1368 = vmatmul.mubr.bf16.gmra.mrb[0].mxu0 %v1327
        %v1369 = vpop.f32.mrb[0].mxu0
        %v1370 = vadd.f32 0.0, %v1369
        %v1371 = vpop.f32.mrb[0].mxu0
        %v1372 = vadd.f32 0.0, %v1371
        %v1373 = vpop.f32.mrb[0].mxu0
        %v1374 = vpop.f32.mrb[0].mxu0
        %1375 = vdwg.mxu0
        %v1376 = vmul.f32 %v1370, %v1113
        %v1377 = vmul.f32 %v1372, %v1117
        %v1378 = vadd.f32 %v1295, %v1376
        %v1379 = vadd.f32 %v1296, %v1377
        %v1380 = vld [vmem:[#allocation2] sm:$0x3f]
        %s1381 = scalar_lea.vmem %s14, 8
        %v1382 = vld [vmem:[%s1381] sm:$0x3]
        %v1384 = vcombine.high %v1380, %v1380
        %v1386 = vunpack.c.l.s4 1983009808
        %v1387 = vunpack.c.0.s8 %v1386
        %v1388 = vlaneseq
        %v1389 = vshrl.u32 %v1388, 7
        %v1390 = vsub.s32 %v1387, %v1389
        %v1391 = vrot.slane %v1380, %v1390
        %v1393 = vunpack.c.l.s4 1983009808
        %v1394 = vunpack.c.0.s8 %v1393
        %v1395 = vlaneseq
        %v1396 = vshrl.u32 %v1395, 7
        %v1397 = vsub.s32 %v1394, %v1396
        %v1398 = vrot.slane %v1384, %v1397
        %v1399 = vcombine.high %v1391, %v1391
        %1400 = vrot.lane.b32.xlu0 %v1391, 111
        %v1401 = vpop.permute.xlu0 %1400
        %1402 = vrot.lane.b32.xlu0 %v1399, 111
        %v1403 = vpop.permute.xlu0 %1402
        %1404 = vrot.lane.b32.xlu0 %v1398, 111
        %v1405 = vpop.permute.xlu0 %1404
        %vm1406 = vcmask 908288
        %v1407 = vsel %vm1406, %v1401, %v1403
        %v1408 = vsel %vm1406, %v1403, %v1405
        %v1410 = vsel %vm1057, %v1382, 0
        %v1413 = vsel %vm1061, %v1407, 0
        %v1416 = vsel %vm1061, %v1408, 0
        %1418 = vmatprep.subr.bf16.mxu0 %v1416
        %1419 = vmatpush1.bf16.msra.mxu0 %v1413
        %1420 = vmatprep.subr.bf16.mxu0 0
        %1421 = vmatpush1.bf16.msra.mxu0 0
        %1422 = vmatprep.subr.bf16.mxu0 0
        %1423 = vmatpush1.bf16.msra.mxu0 0
        %1424 = vmatprep.subr.bf16.mxu0 0
        %1425 = vmatpush1.bf16.msra.mxu0 0
        %1426 = vmatprep.subr.bf16.mxu0 0
        %1427 = vmatpush1.bf16.msra.mxu0 0
        %1428 = vmatprep.subr.bf16.mxu0 0
        %1429 = vmatpush1.bf16.msra.mxu0 0
        %1430 = vmatprep.subr.bf16.mxu0 0
        %1431 = vmatpush1.bf16.msra.mxu0 0
        %1432 = vmatprep.subr.bf16.mxu0 0
        %1433 = vmatpush1.bf16.msra.mxu0 0
        %1434 = vmatprep.subr.bf16.mxu0 0
        %1435 = vmatpush1.bf16.msra.mxu0 0
        %1436 = vmatprep.subr.bf16.mxu0 0
        %1437 = vmatpush1.bf16.msra.mxu0 0
        %1438 = vmatprep.subr.bf16.mxu0 0
        %1439 = vmatpush1.bf16.msra.mxu0 0
        %1440 = vmatprep.subr.bf16.mxu0 0
        %1441 = vmatpush1.bf16.msra.mxu0 0
        %1442 = vmatprep.subr.bf16.mxu0 0
        %1443 = vmatpush1.bf16.msra.mxu0 0
        %1444 = vmatprep.subr.bf16.mxu0 0
        %1445 = vmatpush1.bf16.msra.mxu0 0
        %1446 = vmatprep.subr.bf16.mxu0 0
        %1447 = vmatpush1.bf16.msra.mxu0 0
        %1448 = vmatprep.subr.bf16.mxu0 0
        %1449 = vmatpush1.bf16.msra.mxu0 0
        %1450 = vmatprep.mubr.bf16.mxu0 0
        %1451 = vmatmul.mubr.bf16.gmra.mrb[0].mxu0 %v1410
        %v1452 = vpop.f32.mrb[0].mxu0
        %v1453 = vadd.f32 0.0, %v1452
        %v1454 = vpop.f32.mrb[0].mxu0
        %v1455 = vadd.f32 0.0, %v1454
        %v1456 = vpop.f32.mrb[0].mxu0
        %v1457 = vpop.f32.mrb[0].mxu0
        %1458 = vdwg.mxu0
        %v1459 = vadd.f32 %v1378, %v1453
        %v1460 = vadd.f32 %v1379, %v1455
        %v1461 = vld [vmem:[#allocation2] sm:$0x3f]
        %s1462 = scalar_lea.vmem %s14, 10
        %v1463 = vld [vmem:[%s1462] sm:$0x3]
        %v1465 = vcombine.high %v1461, %v1461
        %v1467 = vunpack.c.l.s4 1983009808
        %v1468 = vunpack.c.0.s8 %v1467
        %v1469 = vlaneseq
        %v1470 = vshrl.u32 %v1469, 7
        %v1471 = vsub.s32 %v1468, %v1470
        %v1472 = vrot.slane %v1461, %v1471
        %v1474 = vunpack.c.l.s4 1983009808
        %v1475 = vunpack.c.0.s8 %v1474
        %v1476 = vlaneseq
        %v1477 = vshrl.u32 %v1476, 7
        %v1478 = vsub.s32 %v1475, %v1477
        %v1479 = vrot.slane %v1465, %v1478
        %v1480 = vcombine.high %v1472, %v1472
        %1481 = vrot.lane.b32.xlu0 %v1472, 110
        %v1482 = vpop.permute.xlu0 %1481
        %1483 = vrot.lane.b32.xlu0 %v1480, 110
        %v1484 = vpop.permute.xlu0 %1483
        %1485 = vrot.lane.b32.xlu0 %v1479, 110
        %v1486 = vpop.permute.xlu0 %1485
        %vm1487 = vcmask 900096
        %v1488 = vsel %vm1487, %v1482, %v1484
        %v1489 = vsel %vm1487, %v1484, %v1486
        %v1491 = vsel %vm1057, %v1463, 0
        %v1494 = vsel %vm1061, %v1488, 0
        %v1497 = vsel %vm1061, %v1489, 0
        %1499 = vmatprep.subr.bf16.mxu0 %v1497
        %1500 = vmatpush1.bf16.msra.mxu0 %v1494
        %1501 = vmatprep.subr.bf16.mxu0 0
        %1502 = vmatpush1.bf16.msra.mxu0 0
        %1503 = vmatprep.subr.bf16.mxu0 0
        %1504 = vmatpush1.bf16.msra.mxu0 0
        %1505 = vmatprep.subr.bf16.mxu0 0
        %1506 = vmatpush1.bf16.msra.mxu0 0
        %1507 = vmatprep.subr.bf16.mxu0 0
        %1508 = vmatpush1.bf16.msra.mxu0 0
        %1509 = vmatprep.subr.bf16.mxu0 0
        %1510 = vmatpush1.bf16.msra.mxu0 0
        %1511 = vmatprep.subr.bf16.mxu0 0
        %1512 = vmatpush1.bf16.msra.mxu0 0
        %1513 = vmatprep.subr.bf16.mxu0 0
        %1514 = vmatpush1.bf16.msra.mxu0 0
        %1515 = vmatprep.subr.bf16.mxu0 0
        %1516 = vmatpush1.bf16.msra.mxu0 0
        %1517 = vmatprep.subr.bf16.mxu0 0
        %1518 = vmatpush1.bf16.msra.mxu0 0
        %1519 = vmatprep.subr.bf16.mxu0 0
        %1520 = vmatpush1.bf16.msra.mxu0 0
        %1521 = vmatprep.subr.bf16.mxu0 0
        %1522 = vmatpush1.bf16.msra.mxu0 0
        %1523 = vmatprep.subr.bf16.mxu0 0
        %1524 = vmatpush1.bf16.msra.mxu0 0
        %1525 = vmatprep.subr.bf16.mxu0 0
        %1526 = vmatpush1.bf16.msra.mxu0 0
        %1527 = vmatprep.subr.bf16.mxu0 0
        %1528 = vmatpush1.bf16.msra.mxu0 0
        %1529 = vmatprep.subr.bf16.mxu0 0
        %1530 = vmatpush1.bf16.msra.mxu0 0
        %1531 = vmatprep.mubr.bf16.mxu0 0
        %1532 = vmatmul.mubr.bf16.gmra.mrb[0].mxu0 %v1491
        %v1533 = vpop.f32.mrb[0].mxu0
        %v1534 = vadd.f32 0.0, %v1533
        %v1535 = vpop.f32.mrb[0].mxu0
        %v1536 = vadd.f32 0.0, %v1535
        %v1537 = vpop.f32.mrb[0].mxu0
        %v1538 = vpop.f32.mrb[0].mxu0
        %1539 = vdwg.mxu0
        %v1540 = vmul.f32 %v1534, %v1286
        %v1541 = vmul.f32 %v1536, %v1290
        %v1542 = vadd.f32 %v1459, %v1540
        %v1543 = vadd.f32 %v1460, %v1541
        %v1544 = vld [vmem:[#allocation2] sm:$0x3f]
        %s1545 = scalar_lea.vmem %s14, 12
        %v1546 = vld [vmem:[%s1545] sm:$0x3]
        %v1548 = vcombine.high %v1544, %v1544
        %v1550 = vunpack.c.l.s4 1983009808
        %v1551 = vunpack.c.0.s8 %v1550
        %v1552 = vlaneseq
        %v1553 = vshrl.u32 %v1552, 7
        %v1554 = vsub.s32 %v1551, %v1553
        %v1555 = vrot.slane %v1544, %v1554
        %v1557 = vunpack.c.l.s4 1983009808
        %v1558 = vunpack.c.0.s8 %v1557
        %v1559 = vlaneseq
        %v1560 = vshrl.u32 %v1559, 7
        %v1561 = vsub.s32 %v1558, %v1560
        %v1562 = vrot.slane %v1548, %v1561
        %v1563 = vcombine.high %v1555, %v1555
        %1564 = vrot.lane.b32.xlu0 %v1555, 96
        %v1565 = vpop.permute.xlu0 %1564
        %1566 = vrot.lane.b32.xlu0 %v1563, 96
        %v1567 = vpop.permute.xlu0 %1566
        %1568 = vrot.lane.b32.xlu0 %v1562, 96
        %v1569 = vpop.permute.xlu0 %1568
        %vm1570 = vcmask 785408
        %v1571 = vsel %vm1570, %v1565, %v1567
        %v1572 = vsel %vm1570, %v1567, %v1569
        %v1574 = vsel %vm1057, %v1546, 0
        %v1577 = vsel %vm1061, %v1571, 0
        %v1580 = vsel %vm1061, %v1572, 0
        %1582 = vmatprep.subr.bf16.mxu0 %v1580
        %1583 = vmatpush1.bf16.msra.mxu0 %v1577
        %1584 = vmatprep.subr.bf16.mxu0 0
        %1585 = vmatpush1.bf16.msra.mxu0 0
        %1586 = vmatprep.subr.bf16.mxu0 0
        %1587 = vmatpush1.bf16.msra.mxu0 0
        %1588 = vmatprep.subr.bf16.mxu0 0
        %1589 = vmatpush1.bf16.msra.mxu0 0
        %1590 = vmatprep.subr.bf16.mxu0 0
        %1591 = vmatpush1.bf16.msra.mxu0 0
        %1592 = vmatprep.subr.bf16.mxu0 0
        %1593 = vmatpush1.bf16.msra.mxu0 0
        %1594 = vmatprep.subr.bf16.mxu0 0
        %1595 = vmatpush1.bf16.msra.mxu0 0
        %1596 = vmatprep.subr.bf16.mxu0 0
        %1597 = vmatpush1.bf16.msra.mxu0 0
        %1598 = vmatprep.subr.bf16.mxu0 0
        %1599 = vmatpush1.bf16.msra.mxu0 0
        %1600 = vmatprep.subr.bf16.mxu0 0
        %1601 = vmatpush1.bf16.msra.mxu0 0
        %1602 = vmatprep.subr.bf16.mxu0 0
        %1603 = vmatpush1.bf16.msra.mxu0 0
        %1604 = vmatprep.subr.bf16.mxu0 0
        %1605 = vmatpush1.bf16.msra.mxu0 0
        %1606 = vmatprep.subr.bf16.mxu0 0
        %1607 = vmatpush1.bf16.msra.mxu0 0
        %1608 = vmatprep.subr.bf16.mxu0 0
        %1609 = vmatpush1.bf16.msra.mxu0 0
        %1610 = vmatprep.subr.bf16.mxu0 0
        %1611 = vmatpush1.bf16.msra.mxu0 0
        %1612 = vmatprep.subr.bf16.mxu0 0
        %1613 = vmatpush1.bf16.msra.mxu0 0
        %1614 = vmatprep.mubr.bf16.mxu0 0
        %1615 = vmatmul.mubr.bf16.gmra.mrb[0].mxu0 %v1574
        %v1616 = vpop.f32.mrb[0].mxu0
        %v1617 = vadd.f32 0.0, %v1616
        %v1618 = vpop.f32.mrb[0].mxu0
        %v1619 = vadd.f32 0.0, %v1618
        %v1620 = vpop.f32.mrb[0].mxu0
        %v1621 = vpop.f32.mrb[0].mxu0
        %1622 = vdwg.mxu0
        %v1623 = vmul.f32 %v1617, %v1113
        %v1624 = vmul.f32 %v1619, %v1117
        %v1625 = vadd.f32 %v1542, %v1623
        %v1626 = vadd.f32 %v1543, %v1624
        %v1627 = vld [vmem:[#allocation2] sm:$0x3f]
        %s1628 = scalar_lea.vmem %s14, 14
        %v1629 = vld [vmem:[%s1628] sm:$0x3]
        %v1631 = vcombine.high %v1627, %v1627
        %v1633 = vunpack.c.l.s4 1983009808
        %v1634 = vunpack.c.0.s8 %v1633
        %v1635 = vlaneseq
        %v1636 = vshrl.u32 %v1635, 7
        %v1637 = vsub.s32 %v1634, %v1636
        %v1638 = vrot.slane %v1627, %v1637
        %v1640 = vunpack.c.l.s4 1983009808
        %v1641 = vunpack.c.0.s8 %v1640
        %v1642 = vlaneseq
        %v1643 = vshrl.u32 %v1642, 7
        %v1644 = vsub.s32 %v1641, %v1643
        %v1645 = vrot.slane %v1631, %v1644
        %v1646 = vcombine.high %v1638, %v1638
        %1647 = vrot.lane.b32.xlu0 %v1638, 95
        %v1648 = vpop.permute.xlu0 %1647
        %1649 = vrot.lane.b32.xlu0 %v1646, 95
        %v1650 = vpop.permute.xlu0 %1649
        %1651 = vrot.lane.b32.xlu0 %v1645, 95
        %v1652 = vpop.permute.xlu0 %1651
        %vm1653 = vcmask 777216
        %v1654 = vsel %vm1653, %v1648, %v1650
        %v1655 = vsel %vm1653, %v1650, %v1652
        %v1657 = vsel %vm1057, %v1629, 0
        %v1660 = vsel %vm1061, %v1654, 0
        %v1663 = vsel %vm1061, %v1655, 0
        %1665 = vmatprep.subr.bf16.mxu0 %v1663
        %1666 = vmatpush1.bf16.msra.mxu0 %v1660
        %1667 = vmatprep.subr.bf16.mxu0 0
        %1668 = vmatpush1.bf16.msra.mxu0 0
        %1669 = vmatprep.subr.bf16.mxu0 0
        %1670 = vmatpush1.bf16.msra.mxu0 0
        %1671 = vmatprep.subr.bf16.mxu0 0
        %1672 = vmatpush1.bf16.msra.mxu0 0
        %1673 = vmatprep.subr.bf16.mxu0 0
        %1674 = vmatpush1.bf16.msra.mxu0 0
        %1675 = vmatprep.subr.bf16.mxu0 0
        %1676 = vmatpush1.bf16.msra.mxu0 0
        %1677 = vmatprep.subr.bf16.mxu0 0
        %1678 = vmatpush1.bf16.msra.mxu0 0
        %1679 = vmatprep.subr.bf16.mxu0 0
        %1680 = vmatpush1.bf16.msra.mxu0 0
        %1681 = vmatprep.subr.bf16.mxu0 0
        %1682 = vmatpush1.bf16.msra.mxu0 0
        %1683 = vmatprep.subr.bf16.mxu0 0
        %1684 = vmatpush1.bf16.msra.mxu0 0
        %1685 = vmatprep.subr.bf16.mxu0 0
        %1686 = vmatpush1.bf16.msra.mxu0 0
        %1687 = vmatprep.subr.bf16.mxu0 0
        %1688 = vmatpush1.bf16.msra.mxu0 0
        %1689 = vmatprep.subr.bf16.mxu0 0
        %1690 = vmatpush1.bf16.msra.mxu0 0
        %1691 = vmatprep.subr.bf16.mxu0 0
        %1692 = vmatpush1.bf16.msra.mxu0 0
        %1693 = vmatprep.subr.bf16.mxu0 0
        %1694 = vmatpush1.bf16.msra.mxu0 0
        %1695 = vmatprep.subr.bf16.mxu0 0
        %1696 = vmatpush1.bf16.msra.mxu0 0
        %1697 = vmatprep.mubr.bf16.mxu0 0
        %1698 = vmatmul.mubr.bf16.gmra.mrb[0].mxu0 %v1657
        %v1699 = vpop.f32.mrb[0].mxu0
        %v1700 = vadd.f32 0.0, %v1699
        %v1701 = vpop.f32.mrb[0].mxu0
        %v1702 = vadd.f32 0.0, %v1701
        %v1703 = vpop.f32.mrb[0].mxu0
        %v1704 = vpop.f32.mrb[0].mxu0
        %1705 = vdwg.mxu0
        %v1706 = vadd.f32 %v1625, %v1700
        %v1707 = vadd.f32 %v1626, %v1702
        %v1708 = vld [vmem:[#allocation2] sm:$0x3f]
        %s1709 = scalar_lea.vmem %s14, 16
        %v1710 = vld [vmem:[%s1709] sm:$0x3]
        %v1712 = vcombine.high %v1708, %v1708
        %v1714 = vunpack.c.l.s4 1983009808
        %v1715 = vunpack.c.0.s8 %v1714
        %v1716 = vlaneseq
        %v1717 = vshrl.u32 %v1716, 7
        %v1718 = vsub.s32 %v1715, %v1717
        %v1719 = vrot.slane %v1708, %v1718
        %v1721 = vunpack.c.l.s4 1983009808
        %v1722 = vunpack.c.0.s8 %v1721
        %v1723 = vlaneseq
        %v1724 = vshrl.u32 %v1723, 7
        %v1725 = vsub.s32 %v1722, %v1724
        %v1726 = vrot.slane %v1712, %v1725
        %v1727 = vcombine.high %v1719, %v1719
        %1728 = vrot.lane.b32.xlu0 %v1719, 94
        %v1729 = vpop.permute.xlu0 %1728
        %1730 = vrot.lane.b32.xlu0 %v1727, 94
        %v1731 = vpop.permute.xlu0 %1730
        %1732 = vrot.lane.b32.xlu0 %v1726, 94
        %v1733 = vpop.permute.xlu0 %1732
        %vm1734 = vcmask 769024
        %v1735 = vsel %vm1734, %v1729, %v1731
        %v1736 = vsel %vm1734, %v1731, %v1733
        %v1738 = vsel %vm1057, %v1710, 0
        %v1741 = vsel %vm1061, %v1735, 0
        %v1744 = vsel %vm1061, %v1736, 0
        %1746 = vmatprep.subr.bf16.mxu0 %v1744
        %1747 = vmatpush1.bf16.msra.mxu0 %v1741
        %1748 = vmatprep.subr.bf16.mxu0 0
        %1749 = vmatpush1.bf16.msra.mxu0 0
        %1750 = vmatprep.subr.bf16.mxu0 0
        %1751 = vmatpush1.bf16.msra.mxu0 0
        %1752 = vmatprep.subr.bf16.mxu0 0
        %1753 = vmatpush1.bf16.msra.mxu0 0
        %1754 = vmatprep.subr.bf16.mxu0 0
        %1755 = vmatpush1.bf16.msra.mxu0 0
        %1756 = vmatprep.subr.bf16.mxu0 0
        %1757 = vmatpush1.bf16.msra.mxu0 0
        %1758 = vmatprep.subr.bf16.mxu0 0
        %1759 = vmatpush1.bf16.msra.mxu0 0
        %1760 = vmatprep.subr.bf16.mxu0 0
        %1761 = vmatpush1.bf16.msra.mxu0 0
        %1762 = vmatprep.subr.bf16.mxu0 0
        %1763 = vmatpush1.bf16.msra.mxu0 0
        %1764 = vmatprep.subr.bf16.mxu0 0
        %1765 = vmatpush1.bf16.msra.mxu0 0
        %1766 = vmatprep.subr.bf16.mxu0 0
        %1767 = vmatpush1.bf16.msra.mxu0 0
        %1768 = vmatprep.subr.bf16.mxu0 0
        %1769 = vmatpush1.bf16.msra.mxu0 0
        %1770 = vmatprep.subr.bf16.mxu0 0
        %1771 = vmatpush1.bf16.msra.mxu0 0
        %1772 = vmatprep.subr.bf16.mxu0 0
        %1773 = vmatpush1.bf16.msra.mxu0 0
        %1774 = vmatprep.subr.bf16.mxu0 0
        %1775 = vmatpush1.bf16.msra.mxu0 0
        %1776 = vmatprep.subr.bf16.mxu0 0
        %1777 = vmatpush1.bf16.msra.mxu0 0
        %1778 = vmatprep.mubr.bf16.mxu0 0
        %1779 = vmatmul.mubr.bf16.gmra.mrb[0].mxu0 %v1738
        %v1780 = vpop.f32.mrb[0].mxu0
        %v1781 = vadd.f32 0.0, %v1780
        %v1782 = vpop.f32.mrb[0].mxu0
        %v1783 = vadd.f32 0.0, %v1782
        %v1784 = vpop.f32.mrb[0].mxu0
        %v1785 = vpop.f32.mrb[0].mxu0
        %1786 = vdwg.mxu0
        %v1787 = vmul.f32 %v1781, %v1286
        %v1788 = vmul.f32 %v1783, %v1290
        %v1789 = vadd.f32 %v1706, %v1787
        %v1790 = vadd.f32 %v1707, %v1788
        %1792 = vset.pattern.permute.xlu0 0
        %1793 = vperm.xlu0 %1792, %v1014
        %v1794 = vpop.permute.xlu0 %1793
        %v1796 = vadd.f32 %v1789, %v1794
        %v1797 = vadd.f32 %v1790, %v1794
        %v1798 = vld [vmem:[%s5] sm:$0xf]
        %v1799 = vld [vmem:[%s6] sm:$0xf]
        %vm1800 = vcmask 1043456
        %v1801 = vsel %vm1800, %v1013, 0.0
        %v1802 = vsel %vm1800, %v1020, 0.0
        %v1803 = vadd.f32 %v1801, %v1802
        %1804 = vadd.xlane.f32.xlu0 %v1803
        %v1805 = vpop.xlane.xlu0 %1804
        %v1806 = vld [vmem:[%s9] sm:$0xf]
        %v1808 = vsel %vm1057, %v1806, 0
        %v1811 = vsel %vm1800, %v1805, 0
        %1813 = vmatprep.subr.mxu0 0.0
        %v1814 = vand.u32 %v1811, 4294901760
        %1815 = vmatpush1.msra.mxu0 %v1814
        %1816 = vmatprep.subr.mxu0 0.0
        %1817 = vmatpush1.msra.mxu0 0.0
        %1818 = vmatprep.subr.mxu0 0.0
        %1819 = vmatpush1.msra.mxu0 0.0
        %1820 = vmatprep.subr.mxu0 0.0
        %1821 = vmatpush1.msra.mxu0 0.0
        %1822 = vmatprep.subr.mxu0 0.0
        %1823 = vmatpush1.msra.mxu0 0.0
        %1824 = vmatprep.subr.mxu0 0.0
        %1825 = vmatpush1.msra.mxu0 0.0
        %1826 = vmatprep.subr.mxu0 0.0
        %1827 = vmatpush1.msra.mxu0 0.0
        %1828 = vmatprep.subr.mxu0 0.0
        %1829 = vmatpush1.msra.mxu0 0.0
        %1830 = vmatprep.subr.mxu0 0.0
        %1831 = vmatpush1.msra.mxu0 0.0
        %1832 = vmatprep.subr.mxu0 0.0
        %1833 = vmatpush1.msra.mxu0 0.0
        %1834 = vmatprep.subr.mxu0 0.0
        %1835 = vmatpush1.msra.mxu0 0.0
        %1836 = vmatprep.subr.mxu0 0.0
        %1837 = vmatpush1.msra.mxu0 0.0
        %1838 = vmatprep.subr.mxu0 0.0
        %1839 = vmatpush1.msra.mxu0 0.0
        %1840 = vmatprep.subr.mxu0 0.0
        %1841 = vmatpush1.msra.mxu0 0.0
        %1842 = vmatprep.subr.mxu0 0.0
        %1843 = vmatpush1.msra.mxu0 0.0
        %1844 = vmatprep.subr.mxu0 0.0
        %1845 = vmatpush1.msra.mxu0 0.0
        %1846 = vmatprep.subr.mxu0 0.0
        %1847 = vmatpush1.msra.mxu0 0.0
        %1848 = vmatprep.subr.mxu0 0.0
        %1849 = vmatpush1.msra.mxu0 0.0
        %1850 = vmatprep.subr.mxu0 0.0
        %1851 = vmatpush1.msra.mxu0 0.0
        %1852 = vmatprep.subr.mxu0 0.0
        %1853 = vmatpush1.msra.mxu0 0.0
        %1854 = vmatprep.subr.mxu0 0.0
        %1855 = vmatpush1.msra.mxu0 0.0
        %1856 = vmatprep.subr.mxu0 0.0
        %1857 = vmatpush1.msra.mxu0 0.0
        %1858 = vmatprep.subr.mxu0 0.0
        %1859 = vmatpush1.msra.mxu0 0.0
        %1860 = vmatprep.subr.mxu0 0.0
        %1861 = vmatpush1.msra.mxu0 0.0
        %1862 = vmatprep.subr.mxu0 0.0
        %1863 = vmatpush1.msra.mxu0 0.0
        %1864 = vmatprep.subr.mxu0 0.0
        %1865 = vmatpush1.msra.mxu0 0.0
        %1866 = vmatprep.subr.mxu0 0.0
        %1867 = vmatpush1.msra.mxu0 0.0
        %1868 = vmatprep.subr.mxu0 0.0
        %1869 = vmatpush1.msra.mxu0 0.0
        %1870 = vmatprep.subr.mxu0 0.0
        %1871 = vmatpush1.msra.mxu0 0.0
        %1872 = vmatprep.subr.mxu0 0.0
        %1873 = vmatpush1.msra.mxu0 0.0
        %1874 = vmatprep.subr.mxu0 0.0
        %1875 = vmatpush1.msra.mxu0 0.0
        %1876 = vmatprep.subr.mxu0 0.0
        %1877 = vmatpush1.msra.mxu0 0.0
        %1878 = vmatprep.mubr.f32.mxu0 0.0
        %v1879 = vand.u32 %v1808, 4294901760
        %v1880 = vsub.f32 %v1808, %v1879
        %v1881 = vand.u32 %v1880, 4294901760
        %v1882 = vsub.f32 %v1880, %v1881
        %v1883 = vand.u32 %v1882, 4294901760
        %1884 = vmatmul.mubr.f32.gmra.mrb[0].mxu0 %v1883
        %v1885 = vpop.f32.mrb[0].mxu0
        %v1886 = vadd.f32 0.0, %v1885
        %v1887 = vpop.f32.mrb[0].mxu0
        %1888 = vdwg.mxu0
        %1889 = vmatprep.subr.mxu0 0.0
        %v1890 = vand.u32 %v1811, 4294901760
        %v1891 = vsub.f32 %v1811, %v1890
        %v1892 = vand.u32 %v1891, 4294901760
        %v1893 = vsub.f32 %v1891, %v1892
        %v1894 = vand.u32 %v1893, 4294901760
        %1895 = vmatpush1.msra.mxu0 %v1894
        %1896 = vmatprep.subr.mxu0 0.0
        %1897 = vmatpush1.msra.mxu0 0.0
        %1898 = vmatprep.subr.mxu0 0.0
        %1899 = vmatpush1.msra.mxu0 0.0
        %1900 = vmatprep.subr.mxu0 0.0
        %1901 = vmatpush1.msra.mxu0 0.0
        %1902 = vmatprep.subr.mxu0 0.0
        %1903 = vmatpush1.msra.mxu0 0.0
        %1904 = vmatprep.subr.mxu0 0.0
        %1905 = vmatpush1.msra.mxu0 0.0
        %1906 = vmatprep.subr.mxu0 0.0
        %1907 = vmatpush1.msra.mxu0 0.0
        %1908 = vmatprep.subr.mxu0 0.0
        %1909 = vmatpush1.msra.mxu0 0.0
        %1910 = vmatprep.subr.mxu0 0.0
        %1911 = vmatpush1.msra.mxu0 0.0
        %1912 = vmatprep.subr.mxu0 0.0
        %1913 = vmatpush1.msra.mxu0 0.0
        %1914 = vmatprep.subr.mxu0 0.0
        %1915 = vmatpush1.msra.mxu0 0.0
        %1916 = vmatprep.subr.mxu0 0.0
        %1917 = vmatpush1.msra.mxu0 0.0
        %1918 = vmatprep.subr.mxu0 0.0
        %1919 = vmatpush1.msra.mxu0 0.0
        %1920 = vmatprep.subr.mxu0 0.0
        %1921 = vmatpush1.msra.mxu0 0.0
        %1922 = vmatprep.subr.mxu0 0.0
        %1923 = vmatpush1.msra.mxu0 0.0
        %1924 = vmatprep.subr.mxu0 0.0
        %1925 = vmatpush1.msra.mxu0 0.0
        %1926 = vmatprep.subr.mxu0 0.0
        %1927 = vmatpush1.msra.mxu0 0.0
        %1928 = vmatprep.subr.mxu0 0.0
        %1929 = vmatpush1.msra.mxu0 0.0
        %1930 = vmatprep.subr.mxu0 0.0
        %1931 = vmatpush1.msra.mxu0 0.0
        %1932 = vmatprep.subr.mxu0 0.0
        %1933 = vmatpush1.msra.mxu0 0.0
        %1934 = vmatprep.subr.mxu0 0.0
        %1935 = vmatpush1.msra.mxu0 0.0
        %1936 = vmatprep.subr.mxu0 0.0
        %1937 = vmatpush1.msra.mxu0 0.0
        %1938 = vmatprep.subr.mxu0 0.0
        %1939 = vmatpush1.msra.mxu0 0.0
        %1940 = vmatprep.subr.mxu0 0.0
        %1941 = vmatpush1.msra.mxu0 0.0
        %1942 = vmatprep.subr.mxu0 0.0
        %1943 = vmatpush1.msra.mxu0 0.0
        %1944 = vmatprep.subr.mxu0 0.0
        %1945 = vmatpush1.msra.mxu0 0.0
        %1946 = vmatprep.subr.mxu0 0.0
        %1947 = vmatpush1.msra.mxu0 0.0
        %1948 = vmatprep.subr.mxu0 0.0
        %1949 = vmatpush1.msra.mxu0 0.0
        %1950 = vmatprep.subr.mxu0 0.0
        %1951 = vmatpush1.msra.mxu0 0.0
        %1952 = vmatprep.subr.mxu0 0.0
        %1953 = vmatpush1.msra.mxu0 0.0
        %1954 = vmatprep.subr.mxu0 0.0
        %1955 = vmatpush1.msra.mxu0 0.0
        %1956 = vmatprep.subr.mxu0 0.0
        %1957 = vmatpush1.msra.mxu0 0.0
        %1958 = vmatprep.mubr.f32.mxu0 0.0
        %v1959 = vand.u32 %v1808, 4294901760
        %1960 = vmatmul.mubr.f32.gmra.mrb[0].mxu0 %v1959
        %v1961 = vpop.f32.mrb[0].mxu0
        %v1962 = vadd.f32 %v1886, %v1961
        %v1963 = vpop.f32.mrb[0].mxu0
        %1964 = vdwg.mxu0
        %1965 = vmatprep.subr.mxu0 0.0
        %v1966 = vand.u32 %v1811, 4294901760
        %v1967 = vsub.f32 %v1811, %v1966
        %1968 = vmatpush1.msra.mxu0 %v1967
        %1969 = vmatprep.subr.mxu0 0.0
        %1970 = vmatpush1.msra.mxu0 0.0
        %1971 = vmatprep.subr.mxu0 0.0
        %1972 = vmatpush1.msra.mxu0 0.0
        %1973 = vmatprep.subr.mxu0 0.0
        %1974 = vmatpush1.msra.mxu0 0.0
        %1975 = vmatprep.subr.mxu0 0.0
        %1976 = vmatpush1.msra.mxu0 0.0
        %1977 = vmatprep.subr.mxu0 0.0
        %1978 = vmatpush1.msra.mxu0 0.0
        %1979 = vmatprep.subr.mxu0 0.0
        %1980 = vmatpush1.msra.mxu0 0.0
        %1981 = vmatprep.subr.mxu0 0.0
        %1982 = vmatpush1.msra.mxu0 0.0
        %1983 = vmatprep.subr.mxu0 0.0
        %1984 = vmatpush1.msra.mxu0 0.0
        %1985 = vmatprep.subr.mxu0 0.0
        %1986 = vmatpush1.msra.mxu0 0.0
        %1987 = vmatprep.subr.mxu0 0.0
        %1988 = vmatpush1.msra.mxu0 0.0
        %1989 = vmatprep.subr.mxu0 0.0
        %1990 = vmatpush1.msra.mxu0 0.0
        %1991 = vmatprep.subr.mxu0 0.0
        %1992 = vmatpush1.msra.mxu0 0.0
        %1993 = vmatprep.subr.mxu0 0.0
        %1994 = vmatpush1.msra.mxu0 0.0
        %1995 = vmatprep.subr.mxu0 0.0
        %1996 = vmatpush1.msra.mxu0 0.0
        %1997 = vmatprep.subr.mxu0 0.0
        %1998 = vmatpush1.msra.mxu0 0.0
        %1999 = vmatprep.subr.mxu0 0.0
        %2000 = vmatpush1.msra.mxu0 0.0
        %2001 = vmatprep.subr.mxu0 0.0
        %2002 = vmatpush1.msra.mxu0 0.0
        %2003 = vmatprep.subr.mxu0 0.0
        %2004 = vmatpush1.msra.mxu0 0.0
        %2005 = vmatprep.subr.mxu0 0.0
        %2006 = vmatpush1.msra.mxu0 0.0
        %2007 = vmatprep.subr.mxu0 0.0
        %2008 = vmatpush1.msra.mxu0 0.0
        %2009 = vmatprep.subr.mxu0 0.0
        %2010 = vmatpush1.msra.mxu0 0.0
        %2011 = vmatprep.subr.mxu0 0.0
        %2012 = vmatpush1.msra.mxu0 0.0
        %2013 = vmatprep.subr.mxu0 0.0
        %2014 = vmatpush1.msra.mxu0 0.0
        %2015 = vmatprep.subr.mxu0 0.0
        %2016 = vmatpush1.msra.mxu0 0.0
        %2017 = vmatprep.subr.mxu0 0.0
        %2018 = vmatpush1.msra.mxu0 0.0
        %2019 = vmatprep.subr.mxu0 0.0
        %2020 = vmatpush1.msra.mxu0 0.0
        %2021 = vmatprep.subr.mxu0 0.0
        %2022 = vmatpush1.msra.mxu0 0.0
        %2023 = vmatprep.subr.mxu0 0.0
        %2024 = vmatpush1.msra.mxu0 0.0
        %2025 = vmatprep.subr.mxu0 0.0
        %2026 = vmatpush1.msra.mxu0 0.0
        %2027 = vmatprep.subr.mxu0 0.0
        %2028 = vmatpush1.msra.mxu0 0.0
        %2029 = vmatprep.subr.mxu0 0.0
        %2030 = vmatpush1.msra.mxu0 0.0
        %2031 = vmatprep.mubr.f32.mxu0 0.0
        %v2032 = vand.u32 %v1808, 4294901760
        %v2033 = vsub.f32 %v1808, %v2032
        %2034 = vmatmul.mubr.f32.gmra.mrb[0].mxu0 %v2033
        %v2035 = vpop.f32.mrb[0].mxu0
        %v2036 = vadd.f32 %v1962, %v2035
        %v2037 = vpop.f32.mrb[0].mxu0
        %2038 = vdwg.mxu0
        %2039 = vmatprep.subr.mxu0 0.0
        %v2040 = vand.u32 %v1811, 4294901760
        %2041 = vmatpush1.msra.mxu0 %v2040
        %2042 = vmatprep.subr.mxu0 0.0
        %2043 = vmatpush1.msra.mxu0 0.0
        %2044 = vmatprep.subr.mxu0 0.0
        %2045 = vmatpush1.msra.mxu0 0.0
        %2046 = vmatprep.subr.mxu0 0.0
        %2047 = vmatpush1.msra.mxu0 0.0
        %2048 = vmatprep.subr.mxu0 0.0
        %2049 = vmatpush1.msra.mxu0 0.0
        %2050 = vmatprep.subr.mxu0 0.0
        %2051 = vmatpush1.msra.mxu0 0.0
        %2052 = vmatprep.subr.mxu0 0.0
        %2053 = vmatpush1.msra.mxu0 0.0
        %2054 = vmatprep.subr.mxu0 0.0
        %2055 = vmatpush1.msra.mxu0 0.0
        %2056 = vmatprep.subr.mxu0 0.0
        %2057 = vmatpush1.msra.mxu0 0.0
        %2058 = vmatprep.subr.mxu0 0.0
        %2059 = vmatpush1.msra.mxu0 0.0
        %2060 = vmatprep.subr.mxu0 0.0
        %2061 = vmatpush1.msra.mxu0 0.0
        %2062 = vmatprep.subr.mxu0 0.0
        %2063 = vmatpush1.msra.mxu0 0.0
        %2064 = vmatprep.subr.mxu0 0.0
        %2065 = vmatpush1.msra.mxu0 0.0
        %2066 = vmatprep.subr.mxu0 0.0
        %2067 = vmatpush1.msra.mxu0 0.0
        %2068 = vmatprep.subr.mxu0 0.0
        %2069 = vmatpush1.msra.mxu0 0.0
        %2070 = vmatprep.subr.mxu0 0.0
        %2071 = vmatpush1.msra.mxu0 0.0
        %2072 = vmatprep.subr.mxu0 0.0
        %2073 = vmatpush1.msra.mxu0 0.0
        %2074 = vmatprep.subr.mxu0 0.0
        %2075 = vmatpush1.msra.mxu0 0.0
        %2076 = vmatprep.subr.mxu0 0.0
        %2077 = vmatpush1.msra.mxu0 0.0
        %2078 = vmatprep.subr.mxu0 0.0
        %2079 = vmatpush1.msra.mxu0 0.0
        %2080 = vmatprep.subr.mxu0 0.0
        %2081 = vmatpush1.msra.mxu0 0.0
        %2082 = vmatprep.subr.mxu0 0.0
        %2083 = vmatpush1.msra.mxu0 0.0
        %2084 = vmatprep.subr.mxu0 0.0
        %2085 = vmatpush1.msra.mxu0 0.0
        %2086 = vmatprep.subr.mxu0 0.0
        %2087 = vmatpush1.msra.mxu0 0.0
        %2088 = vmatprep.subr.mxu0 0.0
        %2089 = vmatpush1.msra.mxu0 0.0
        %2090 = vmatprep.subr.mxu0 0.0
        %2091 = vmatpush1.msra.mxu0 0.0
        %2092 = vmatprep.subr.mxu0 0.0
        %2093 = vmatpush1.msra.mxu0 0.0
        %2094 = vmatprep.subr.mxu0 0.0
        %2095 = vmatpush1.msra.mxu0 0.0
        %2096 = vmatprep.subr.mxu0 0.0
        %2097 = vmatpush1.msra.mxu0 0.0
        %2098 = vmatprep.subr.mxu0 0.0
        %2099 = vmatpush1.msra.mxu0 0.0
        %2100 = vmatprep.subr.mxu0 0.0
        %2101 = vmatpush1.msra.mxu0 0.0
        %2102 = vmatprep.subr.mxu0 0.0
        %2103 = vmatpush1.msra.mxu0 0.0
        %2104 = vmatprep.mubr.f32.mxu0 0.0
        %v2105 = vand.u32 %v1808, 4294901760
        %v2106 = vsub.f32 %v1808, %v2105
        %v2107 = vand.u32 %v2106, 4294901760
        %2108 = vmatmul.mubr.f32.gmra.mrb[0].mxu0 %v2107
        %v2109 = vpop.f32.mrb[0].mxu0
        %v2110 = vadd.f32 %v2036, %v2109
        %v2111 = vpop.f32.mrb[0].mxu0
        %2112 = vdwg.mxu0
        %2113 = vmatprep.subr.mxu0 0.0
        %v2114 = vand.u32 %v1811, 4294901760
        %v2115 = vsub.f32 %v1811, %v2114
        %v2116 = vand.u32 %v2115, 4294901760
        %2117 = vmatpush1.msra.mxu0 %v2116
        %2118 = vmatprep.subr.mxu0 0.0
        %2119 = vmatpush1.msra.mxu0 0.0
        %2120 = vmatprep.subr.mxu0 0.0
        %2121 = vmatpush1.msra.mxu0 0.0
        %2122 = vmatprep.subr.mxu0 0.0
        %2123 = vmatpush1.msra.mxu0 0.0
        %2124 = vmatprep.subr.mxu0 0.0
        %2125 = vmatpush1.msra.mxu0 0.0
        %2126 = vmatprep.subr.mxu0 0.0
        %2127 = vmatpush1.msra.mxu0 0.0
        %2128 = vmatprep.subr.mxu0 0.0
        %2129 = vmatpush1.msra.mxu0 0.0
        %2130 = vmatprep.subr.mxu0 0.0
        %2131 = vmatpush1.msra.mxu0 0.0
        %2132 = vmatprep.subr.mxu0 0.0
        %2133 = vmatpush1.msra.mxu0 0.0
        %2134 = vmatprep.subr.mxu0 0.0
        %2135 = vmatpush1.msra.mxu0 0.0
        %2136 = vmatprep.subr.mxu0 0.0
        %2137 = vmatpush1.msra.mxu0 0.0
        %2138 = vmatprep.subr.mxu0 0.0
        %2139 = vmatpush1.msra.mxu0 0.0
        %2140 = vmatprep.subr.mxu0 0.0
        %2141 = vmatpush1.msra.mxu0 0.0
        %2142 = vmatprep.subr.mxu0 0.0
        %2143 = vmatpush1.msra.mxu0 0.0
        %2144 = vmatprep.subr.mxu0 0.0
        %2145 = vmatpush1.msra.mxu0 0.0
        %2146 = vmatprep.subr.mxu0 0.0
        %2147 = vmatpush1.msra.mxu0 0.0
        %2148 = vmatprep.subr.mxu0 0.0
        %2149 = vmatpush1.msra.mxu0 0.0
        %2150 = vmatprep.subr.mxu0 0.0
        %2151 = vmatpush1.msra.mxu0 0.0
        %2152 = vmatprep.subr.mxu0 0.0
        %2153 = vmatpush1.msra.mxu0 0.0
        %2154 = vmatprep.subr.mxu0 0.0
        %2155 = vmatpush1.msra.mxu0 0.0
        %2156 = vmatprep.subr.mxu0 0.0
        %2157 = vmatpush1.msra.mxu0 0.0
        %2158 = vmatprep.subr.mxu0 0.0
        %2159 = vmatpush1.msra.mxu0 0.0
        %2160 = vmatprep.subr.mxu0 0.0
        %2161 = vmatpush1.msra.mxu0 0.0
        %2162 = vmatprep.subr.mxu0 0.0
        %2163 = vmatpush1.msra.mxu0 0.0
        %2164 = vmatprep.subr.mxu0 0.0
        %2165 = vmatpush1.msra.mxu0 0.0
        %2166 = vmatprep.subr.mxu0 0.0
        %2167 = vmatpush1.msra.mxu0 0.0
        %2168 = vmatprep.subr.mxu0 0.0
        %2169 = vmatpush1.msra.mxu0 0.0
        %2170 = vmatprep.subr.mxu0 0.0
        %2171 = vmatpush1.msra.mxu0 0.0
        %2172 = vmatprep.subr.mxu0 0.0
        %2173 = vmatpush1.msra.mxu0 0.0
        %2174 = vmatprep.subr.mxu0 0.0
        %2175 = vmatpush1.msra.mxu0 0.0
        %2176 = vmatprep.subr.mxu0 0.0
        %2177 = vmatpush1.msra.mxu0 0.0
        %2178 = vmatprep.subr.mxu0 0.0
        %2179 = vmatpush1.msra.mxu0 0.0
        %2180 = vmatprep.mubr.f32.mxu0 0.0
        %v2181 = vand.u32 %v1808, 4294901760
        %2182 = vmatmul.mubr.f32.gmra.mrb[0].mxu0 %v2181
        %v2183 = vpop.f32.mrb[0].mxu0
        %v2184 = vadd.f32 %v2110, %v2183
        %v2185 = vpop.f32.mrb[0].mxu0
        %2186 = vdwg.mxu0
        %2187 = vmatprep.subr.mxu0 0.0
        %v2188 = vand.u32 %v1811, 4294901760
        %2189 = vmatpush1.msra.mxu0 %v2188
        %2190 = vmatprep.subr.mxu0 0.0
        %2191 = vmatpush1.msra.mxu0 0.0
        %2192 = vmatprep.subr.mxu0 0.0
        %2193 = vmatpush1.msra.mxu0 0.0
        %2194 = vmatprep.subr.mxu0 0.0
        %2195 = vmatpush1.msra.mxu0 0.0
        %2196 = vmatprep.subr.mxu0 0.0
        %2197 = vmatpush1.msra.mxu0 0.0
        %2198 = vmatprep.subr.mxu0 0.0
        %2199 = vmatpush1.msra.mxu0 0.0
        %2200 = vmatprep.subr.mxu0 0.0
        %2201 = vmatpush1.msra.mxu0 0.0
        %2202 = vmatprep.subr.mxu0 0.0
        %2203 = vmatpush1.msra.mxu0 0.0
        %2204 = vmatprep.subr.mxu0 0.0
        %2205 = vmatpush1.msra.mxu0 0.0
        %2206 = vmatprep.subr.mxu0 0.0
        %2207 = vmatpush1.msra.mxu0 0.0
        %2208 = vmatprep.subr.mxu0 0.0
        %2209 = vmatpush1.msra.mxu0 0.0
        %2210 = vmatprep.subr.mxu0 0.0
        %2211 = vmatpush1.msra.mxu0 0.0
        %2212 = vmatprep.subr.mxu0 0.0
        %2213 = vmatpush1.msra.mxu0 0.0
        %2214 = vmatprep.subr.mxu0 0.0
        %2215 = vmatpush1.msra.mxu0 0.0
        %2216 = vmatprep.subr.mxu0 0.0
        %2217 = vmatpush1.msra.mxu0 0.0
        %2218 = vmatprep.subr.mxu0 0.0
        %2219 = vmatpush1.msra.mxu0 0.0
        %2220 = vmatprep.subr.mxu0 0.0
        %2221 = vmatpush1.msra.mxu0 0.0
        %2222 = vmatprep.subr.mxu0 0.0
        %2223 = vmatpush1.msra.mxu0 0.0
        %2224 = vmatprep.subr.mxu0 0.0
        %2225 = vmatpush1.msra.mxu0 0.0
        %2226 = vmatprep.subr.mxu0 0.0
        %2227 = vmatpush1.msra.mxu0 0.0
        %2228 = vmatprep.subr.mxu0 0.0
        %2229 = vmatpush1.msra.mxu0 0.0
        %2230 = vmatprep.subr.mxu0 0.0
        %2231 = vmatpush1.msra.mxu0 0.0
        %2232 = vmatprep.subr.mxu0 0.0
        %2233 = vmatpush1.msra.mxu0 0.0
        %2234 = vmatprep.subr.mxu0 0.0
        %2235 = vmatpush1.msra.mxu0 0.0
        %2236 = vmatprep.subr.mxu0 0.0
        %2237 = vmatpush1.msra.mxu0 0.0
        %2238 = vmatprep.subr.mxu0 0.0
        %2239 = vmatpush1.msra.mxu0 0.0
        %2240 = vmatprep.subr.mxu0 0.0
        %2241 = vmatpush1.msra.mxu0 0.0
        %2242 = vmatprep.subr.mxu0 0.0
        %2243 = vmatpush1.msra.mxu0 0.0
        %2244 = vmatprep.subr.mxu0 0.0
        %2245 = vmatpush1.msra.mxu0 0.0
        %2246 = vmatprep.subr.mxu0 0.0
        %2247 = vmatpush1.msra.mxu0 0.0
        %2248 = vmatprep.subr.mxu0 0.0
        %2249 = vmatpush1.msra.mxu0 0.0
        %2250 = vmatprep.subr.mxu0 0.0
        %2251 = vmatpush1.msra.mxu0 0.0
        %2252 = vmatprep.mubr.f32.mxu0 0.0
        %v2253 = vand.u32 %v1808, 4294901760
        %2254 = vmatmul.mubr.f32.gmra.mrb[0].mxu0 %v2253
        %v2255 = vpop.f32.mrb[0].mxu0
        %v2256 = vadd.f32 %v2184, %v2255
        %v2257 = vpop.f32.mrb[0].mxu0
        %2258 = vdwg.mxu0
        %v2259 = vmul.f32 %v2256, 0.0009765625
        %2261 = vset.pattern.permute.xlu0 0
        %2262 = vperm.xlu0 %2261, %v2259
        %v2263 = vpop.permute.xlu0 %2262
        %v2265 = vunpack.c.l.s4 839922192
        %v2266 = vunpack.c.0.s8 %v2265
        %v2267 = vlaneseq
        %v2268 = vshrl.u32 %v2267, 7
        %v2269 = vsub.s32 %v2266, %v2268
        %v2270 = vrot.slane %v2263, %v2269
        %v2272 = vsub.f32 %v1013, %v2270
        %v2273 = vmul.f32 %v2272, %v2272
        %v2275 = vcombine.high %v2273, %v2273
        %v2277 = vsel %vm1800, %v2273, 0.0
        %v2278 = vsel %vm1800, %v2275, 0.0
        %v2279 = vadd.f32 %v2277, %v2278
        %2280 = vadd.xlane.f32.xlu0 %v2279
        %v2281 = vpop.xlane.xlu0 %2280
        %v2283 = vsel %vm1800, %v2281, 0
        %2285 = vmatprep.subr.mxu0 0.0
        %v2286 = vand.u32 %v2283, 4294901760
        %2287 = vmatpush1.msra.mxu0 %v2286
        %2288 = vmatprep.subr.mxu0 0.0
        %2289 = vmatpush1.msra.mxu0 0.0
        %2290 = vmatprep.subr.mxu0 0.0
        %2291 = vmatpush1.msra.mxu0 0.0
        %2292 = vmatprep.subr.mxu0 0.0
        %2293 = vmatpush1.msra.mxu0 0.0
        %2294 = vmatprep.subr.mxu0 0.0
        %2295 = vmatpush1.msra.mxu0 0.0
        %2296 = vmatprep.subr.mxu0 0.0
        %2297 = vmatpush1.msra.mxu0 0.0
        %2298 = vmatprep.subr.mxu0 0.0
        %2299 = vmatpush1.msra.mxu0 0.0
        %2300 = vmatprep.subr.mxu0 0.0
        %2301 = vmatpush1.msra.mxu0 0.0
        %2302 = vmatprep.subr.mxu0 0.0
        %2303 = vmatpush1.msra.mxu0 0.0
        %2304 = vmatprep.subr.mxu0 0.0
        %2305 = vmatpush1.msra.mxu0 0.0
        %2306 = vmatprep.subr.mxu0 0.0
        %2307 = vmatpush1.msra.mxu0 0.0
        %2308 = vmatprep.subr.mxu0 0.0
        %2309 = vmatpush1.msra.mxu0 0.0
        %2310 = vmatprep.subr.mxu0 0.0
        %2311 = vmatpush1.msra.mxu0 0.0
        %2312 = vmatprep.subr.mxu0 0.0
        %2313 = vmatpush1.msra.mxu0 0.0
        %2314 = vmatprep.subr.mxu0 0.0
        %2315 = vmatpush1.msra.mxu0 0.0
        %2316 = vmatprep.subr.mxu0 0.0
        %2317 = vmatpush1.msra.mxu0 0.0
        %2318 = vmatprep.subr.mxu0 0.0
        %2319 = vmatpush1.msra.mxu0 0.0
        %2320 = vmatprep.subr.mxu0 0.0
        %2321 = vmatpush1.msra.mxu0 0.0
        %2322 = vmatprep.subr.mxu0 0.0
        %2323 = vmatpush1.msra.mxu0 0.0
        %2324 = vmatprep.subr.mxu0 0.0
        %2325 = vmatpush1.msra.mxu0 0.0
        %2326 = vmatprep.subr.mxu0 0.0
        %2327 = vmatpush1.msra.mxu0 0.0
        %2328 = vmatprep.subr.mxu0 0.0
        %2329 = vmatpush1.msra.mxu0 0.0
        %2330 = vmatprep.subr.mxu0 0.0
        %2331 = vmatpush1.msra.mxu0 0.0
        %2332 = vmatprep.subr.mxu0 0.0
        %2333 = vmatpush1.msra.mxu0 0.0
        %2334 = vmatprep.subr.mxu0 0.0
        %2335 = vmatpush1.msra.mxu0 0.0
        %2336 = vmatprep.subr.mxu0 0.0
        %2337 = vmatpush1.msra.mxu0 0.0
        %2338 = vmatprep.subr.mxu0 0.0
        %2339 = vmatpush1.msra.mxu0 0.0
        %2340 = vmatprep.subr.mxu0 0.0
        %2341 = vmatpush1.msra.mxu0 0.0
        %2342 = vmatprep.subr.mxu0 0.0
        %2343 = vmatpush1.msra.mxu0 0.0
        %2344 = vmatprep.subr.mxu0 0.0
        %2345 = vmatpush1.msra.mxu0 0.0
        %2346 = vmatprep.subr.mxu0 0.0
        %2347 = vmatpush1.msra.mxu0 0.0
        %2348 = vmatprep.subr.mxu0 0.0
        %2349 = vmatpush1.msra.mxu0 0.0
        %2350 = vmatprep.mubr.f32.mxu0 0.0
        %v2351 = vand.u32 %v1808, 4294901760
        %v2352 = vsub.f32 %v1808, %v2351
        %v2353 = vand.u32 %v2352, 4294901760
        %v2354 = vsub.f32 %v2352, %v2353
        %v2355 = vand.u32 %v2354, 4294901760
        %2356 = vmatmul.mubr.f32.gmra.mrb[0].mxu0 %v2355
        %v2357 = vpop.f32.mrb[0].mxu0
        %v2358 = vadd.f32 0.0, %v2357
        %v2359 = vpop.f32.mrb[0].mxu0
        %2360 = vdwg.mxu0
        %2361 = vmatprep.subr.mxu0 0.0
        %v2362 = vand.u32 %v2283, 4294901760
        %v2363 = vsub.f32 %v2283, %v2362
        %v2364 = vand.u32 %v2363, 4294901760
        %v2365 = vsub.f32 %v2363, %v2364
        %v2366 = vand.u32 %v2365, 4294901760
        %2367 = vmatpush1.msra.mxu0 %v2366
        %2368 = vmatprep.subr.mxu0 0.0
        %2369 = vmatpush1.msra.mxu0 0.0
        %2370 = vmatprep.subr.mxu0 0.0
        %2371 = vmatpush1.msra.mxu0 0.0
        %2372 = vmatprep.subr.mxu0 0.0
        %2373 = vmatpush1.msra.mxu0 0.0
        %2374 = vmatprep.subr.mxu0 0.0
        %2375 = vmatpush1.msra.mxu0 0.0
        %2376 = vmatprep.subr.mxu0 0.0
        %2377 = vmatpush1.msra.mxu0 0.0
        %2378 = vmatprep.subr.mxu0 0.0
        %2379 = vmatpush1.msra.mxu0 0.0
        %2380 = vmatprep.subr.mxu0 0.0
        %2381 = vmatpush1.msra.mxu0 0.0
        %2382 = vmatprep.subr.mxu0 0.0
        %2383 = vmatpush1.msra.mxu0 0.0
        %2384 = vmatprep.subr.mxu0 0.0
        %2385 = vmatpush1.msra.mxu0 0.0
        %2386 = vmatprep.subr.mxu0 0.0
        %2387 = vmatpush1.msra.mxu0 0.0
        %2388 = vmatprep.subr.mxu0 0.0
        %2389 = vmatpush1.msra.mxu0 0.0
        %2390 = vmatprep.subr.mxu0 0.0
        %2391 = vmatpush1.msra.mxu0 0.0
        %2392 = vmatprep.subr.mxu0 0.0
        %2393 = vmatpush1.msra.mxu0 0.0
        %2394 = vmatprep.subr.mxu0 0.0
        %2395 = vmatpush1.msra.mxu0 0.0
        %2396 = vmatprep.subr.mxu0 0.0
        %2397 = vmatpush1.msra.mxu0 0.0
        %2398 = vmatprep.subr.mxu0 0.0
        %2399 = vmatpush1.msra.mxu0 0.0
        %2400 = vmatprep.subr.mxu0 0.0
        %2401 = vmatpush1.msra.mxu0 0.0
        %2402 = vmatprep.subr.mxu0 0.0
        %2403 = vmatpush1.msra.mxu0 0.0
        %2404 = vmatprep.subr.mxu0 0.0
        %2405 = vmatpush1.msra.mxu0 0.0
        %2406 = vmatprep.subr.mxu0 0.0
        %2407 = vmatpush1.msra.mxu0 0.0
        %2408 = vmatprep.subr.mxu0 0.0
        %2409 = vmatpush1.msra.mxu0 0.0
        %2410 = vmatprep.subr.mxu0 0.0
        %2411 = vmatpush1.msra.mxu0 0.0
        %2412 = vmatprep.subr.mxu0 0.0
        %2413 = vmatpush1.msra.mxu0 0.0
        %2414 = vmatprep.subr.mxu0 0.0
        %2415 = vmatpush1.msra.mxu0 0.0
        %2416 = vmatprep.subr.mxu0 0.0
        %2417 = vmatpush1.msra.mxu0 0.0
        %2418 = vmatprep.subr.mxu0 0.0
        %2419 = vmatpush1.msra.mxu0 0.0
        %2420 = vmatprep.subr.mxu0 0.0
        %2421 = vmatpush1.msra.mxu0 0.0
        %2422 = vmatprep.subr.mxu0 0.0
        %2423 = vmatpush1.msra.mxu0 0.0
        %2424 = vmatprep.subr.mxu0 0.0
        %2425 = vmatpush1.msra.mxu0 0.0
        %2426 = vmatprep.subr.mxu0 0.0
        %2427 = vmatpush1.msra.mxu0 0.0
        %2428 = vmatprep.subr.mxu0 0.0
        %2429 = vmatpush1.msra.mxu0 0.0
        %2430 = vmatprep.mubr.f32.mxu0 0.0
        %v2431 = vand.u32 %v1808, 4294901760
        %2432 = vmatmul.mubr.f32.gmra.mrb[0].mxu0 %v2431
        %v2433 = vpop.f32.mrb[0].mxu0
        %v2434 = vadd.f32 %v2358, %v2433
        %v2435 = vpop.f32.mrb[0].mxu0
        %2436 = vdwg.mxu0
        %2437 = vmatprep.subr.mxu0 0.0
        %v2438 = vand.u32 %v2283, 4294901760
        %v2439 = vsub.f32 %v2283, %v2438
        %2440 = vmatpush1.msra.mxu0 %v2439
        %2441 = vmatprep.subr.mxu0 0.0
        %2442 = vmatpush1.msra.mxu0 0.0
        %2443 = vmatprep.subr.mxu0 0.0
        %2444 = vmatpush1.msra.mxu0 0.0
        %2445 = vmatprep.subr.mxu0 0.0
        %2446 = vmatpush1.msra.mxu0 0.0
        %2447 = vmatprep.subr.mxu0 0.0
        %2448 = vmatpush1.msra.mxu0 0.0
        %2449 = vmatprep.subr.mxu0 0.0
        %2450 = vmatpush1.msra.mxu0 0.0
        %2451 = vmatprep.subr.mxu0 0.0
        %2452 = vmatpush1.msra.mxu0 0.0
        %2453 = vmatprep.subr.mxu0 0.0
        %2454 = vmatpush1.msra.mxu0 0.0
        %2455 = vmatprep.subr.mxu0 0.0
        %2456 = vmatpush1.msra.mxu0 0.0
        %2457 = vmatprep.subr.mxu0 0.0
        %2458 = vmatpush1.msra.mxu0 0.0
        %2459 = vmatprep.subr.mxu0 0.0
        %2460 = vmatpush1.msra.mxu0 0.0
        %2461 = vmatprep.subr.mxu0 0.0
        %2462 = vmatpush1.msra.mxu0 0.0
        %2463 = vmatprep.subr.mxu0 0.0
        %2464 = vmatpush1.msra.mxu0 0.0
        %2465 = vmatprep.subr.mxu0 0.0
        %2466 = vmatpush1.msra.mxu0 0.0
        %2467 = vmatprep.subr.mxu0 0.0
        %2468 = vmatpush1.msra.mxu0 0.0
        %2469 = vmatprep.subr.mxu0 0.0
        %2470 = vmatpush1.msra.mxu0 0.0
        %2471 = vmatprep.subr.mxu0 0.0
        %2472 = vmatpush1.msra.mxu0 0.0
        %2473 = vmatprep.subr.mxu0 0.0
        %2474 = vmatpush1.msra.mxu0 0.0
        %2475 = vmatprep.subr.mxu0 0.0
        %2476 = vmatpush1.msra.mxu0 0.0
        %2477 = vmatprep.subr.mxu0 0.0
        %2478 = vmatpush1.msra.mxu0 0.0
        %2479 = vmatprep.subr.mxu0 0.0
        %2480 = vmatpush1.msra.mxu0 0.0
        %2481 = vmatprep.subr.mxu0 0.0
        %2482 = vmatpush1.msra.mxu0 0.0
        %2483 = vmatprep.subr.mxu0 0.0
        %2484 = vmatpush1.msra.mxu0 0.0
        %2485 = vmatprep.subr.mxu0 0.0
        %2486 = vmatpush1.msra.mxu0 0.0
        %2487 = vmatprep.subr.mxu0 0.0
        %2488 = vmatpush1.msra.mxu0 0.0
        %2489 = vmatprep.subr.mxu0 0.0
        %2490 = vmatpush1.msra.mxu0 0.0
        %2491 = vmatprep.subr.mxu0 0.0
        %2492 = vmatpush1.msra.mxu0 0.0
        %2493 = vmatprep.subr.mxu0 0.0
        %2494 = vmatpush1.msra.mxu0 0.0
        %2495 = vmatprep.subr.mxu0 0.0
        %2496 = vmatpush1.msra.mxu0 0.0
        %2497 = vmatprep.subr.mxu0 0.0
        %2498 = vmatpush1.msra.mxu0 0.0
        %2499 = vmatprep.subr.mxu0 0.0
        %2500 = vmatpush1.msra.mxu0 0.0
        %2501 = vmatprep.subr.mxu0 0.0
        %2502 = vmatpush1.msra.mxu0 0.0
        %2503 = vmatprep.mubr.f32.mxu0 0.0
        %v2504 = vand.u32 %v1808, 4294901760
        %v2505 = vsub.f32 %v1808, %v2504
        %2506 = vmatmul.mubr.f32.gmra.mrb[0].mxu0 %v2505
        %v2507 = vpop.f32.mrb[0].mxu0
        %v2508 = vadd.f32 %v2434, %v2507
        %v2509 = vpop.f32.mrb[0].mxu0
        %2510 = vdwg.mxu0
        %2511 = vmatprep.subr.mxu0 0.0
        %v2512 = vand.u32 %v2283, 4294901760
        %2513 = vmatpush1.msra.mxu0 %v2512
        %2514 = vmatprep.subr.mxu0 0.0
        %2515 = vmatpush1.msra.mxu0 0.0
        %2516 = vmatprep.subr.mxu0 0.0
        %2517 = vmatpush1.msra.mxu0 0.0
        %2518 = vmatprep.subr.mxu0 0.0
        %2519 = vmatpush1.msra.mxu0 0.0
        %2520 = vmatprep.subr.mxu0 0.0
        %2521 = vmatpush1.msra.mxu0 0.0
        %2522 = vmatprep.subr.mxu0 0.0
        %2523 = vmatpush1.msra.mxu0 0.0
        %2524 = vmatprep.subr.mxu0 0.0
        %2525 = vmatpush1.msra.mxu0 0.0
        %2526 = vmatprep.subr.mxu0 0.0
        %2527 = vmatpush1.msra.mxu0 0.0
        %2528 = vmatprep.subr.mxu0 0.0
        %2529 = vmatpush1.msra.mxu0 0.0
        %2530 = vmatprep.subr.mxu0 0.0
        %2531 = vmatpush1.msra.mxu0 0.0
        %2532 = vmatprep.subr.mxu0 0.0
        %2533 = vmatpush1.msra.mxu0 0.0
        %2534 = vmatprep.subr.mxu0 0.0
        %2535 = vmatpush1.msra.mxu0 0.0
        %2536 = vmatprep.subr.mxu0 0.0
        %2537 = vmatpush1.msra.mxu0 0.0
        %2538 = vmatprep.subr.mxu0 0.0
        %2539 = vmatpush1.msra.mxu0 0.0
        %2540 = vmatprep.subr.mxu0 0.0
        %2541 = vmatpush1.msra.mxu0 0.0
        %2542 = vmatprep.subr.mxu0 0.0
        %2543 = vmatpush1.msra.mxu0 0.0
        %2544 = vmatprep.subr.mxu0 0.0
        %2545 = vmatpush1.msra.mxu0 0.0
        %2546 = vmatprep.subr.mxu0 0.0
        %2547 = vmatpush1.msra.mxu0 0.0
        %2548 = vmatprep.subr.mxu0 0.0
        %2549 = vmatpush1.msra.mxu0 0.0
        %2550 = vmatprep.subr.mxu0 0.0
        %2551 = vmatpush1.msra.mxu0 0.0
        %2552 = vmatprep.subr.mxu0 0.0
        %2553 = vmatpush1.msra.mxu0 0.0
        %2554 = vmatprep.subr.mxu0 0.0
        %2555 = vmatpush1.msra.mxu0 0.0
        %2556 = vmatprep.subr.mxu0 0.0
        %2557 = vmatpush1.msra.mxu0 0.0
        %2558 = vmatprep.subr.mxu0 0.0
        %2559 = vmatpush1.msra.mxu0 0.0
        %2560 = vmatprep.subr.mxu0 0.0
        %2561 = vmatpush1.msra.mxu0 0.0
        %2562 = vmatprep.subr.mxu0 0.0
        %2563 = vmatpush1.msra.mxu0 0.0
        %2564 = vmatprep.subr.mxu0 0.0
        %2565 = vmatpush1.msra.mxu0 0.0
        %2566 = vmatprep.subr.mxu0 0.0
        %2567 = vmatpush1.msra.mxu0 0.0
        %2568 = vmatprep.subr.mxu0 0.0
        %2569 = vmatpush1.msra.mxu0 0.0
        %2570 = vmatprep.subr.mxu0 0.0
        %2571 = vmatpush1.msra.mxu0 0.0
        %2572 = vmatprep.subr.mxu0 0.0
        %2573 = vmatpush1.msra.mxu0 0.0
        %2574 = vmatprep.subr.mxu0 0.0
        %2575 = vmatpush1.msra.mxu0 0.0
        %2576 = vmatprep.mubr.f32.mxu0 0.0
        %v2577 = vand.u32 %v1808, 4294901760
        %v2578 = vsub.f32 %v1808, %v2577
        %v2579 = vand.u32 %v2578, 4294901760
        %2580 = vmatmul.mubr.f32.gmra.mrb[0].mxu0 %v2579
        %v2581 = vpop.f32.mrb[0].mxu0
        %v2582 = vadd.f32 %v2508, %v2581
        %v2583 = vpop.f32.mrb[0].mxu0
        %2584 = vdwg.mxu0
        %2585 = vmatprep.subr.mxu0 0.0
        %v2586 = vand.u32 %v2283, 4294901760
        %v2587 = vsub.f32 %v2283, %v2586
        %v2588 = vand.u32 %v2587, 4294901760
        %2589 = vmatpush1.msra.mxu0 %v2588
        %2590 = vmatprep.subr.mxu0 0.0
        %2591 = vmatpush1.msra.mxu0 0.0
        %2592 = vmatprep.subr.mxu0 0.0
        %2593 = vmatpush1.msra.mxu0 0.0
        %2594 = vmatprep.subr.mxu0 0.0
        %2595 = vmatpush1.msra.mxu0 0.0
        %2596 = vmatprep.subr.mxu0 0.0
        %2597 = vmatpush1.msra.mxu0 0.0
        %2598 = vmatprep.subr.mxu0 0.0
        %2599 = vmatpush1.msra.mxu0 0.0
        %2600 = vmatprep.subr.mxu0 0.0
        %2601 = vmatpush1.msra.mxu0 0.0
        %2602 = vmatprep.subr.mxu0 0.0
        %2603 = vmatpush1.msra.mxu0 0.0
        %2604 = vmatprep.subr.mxu0 0.0
        %2605 = vmatpush1.msra.mxu0 0.0
        %2606 = vmatprep.subr.mxu0 0.0
        %2607 = vmatpush1.msra.mxu0 0.0
        %2608 = vmatprep.subr.mxu0 0.0
        %2609 = vmatpush1.msra.mxu0 0.0
        %2610 = vmatprep.subr.mxu0 0.0
        %2611 = vmatpush1.msra.mxu0 0.0
        %2612 = vmatprep.subr.mxu0 0.0
        %2613 = vmatpush1.msra.mxu0 0.0
        %2614 = vmatprep.subr.mxu0 0.0
        %2615 = vmatpush1.msra.mxu0 0.0
        %2616 = vmatprep.subr.mxu0 0.0
        %2617 = vmatpush1.msra.mxu0 0.0
        %2618 = vmatprep.subr.mxu0 0.0
        %2619 = vmatpush1.msra.mxu0 0.0
        %2620 = vmatprep.subr.mxu0 0.0
        %2621 = vmatpush1.msra.mxu0 0.0
        %2622 = vmatprep.subr.mxu0 0.0
        %2623 = vmatpush1.msra.mxu0 0.0
        %2624 = vmatprep.subr.mxu0 0.0
        %2625 = vmatpush1.msra.mxu0 0.0
        %2626 = vmatprep.subr.mxu0 0.0
        %2627 = vmatpush1.msra.mxu0 0.0
        %2628 = vmatprep.subr.mxu0 0.0
        %2629 = vmatpush1.msra.mxu0 0.0
        %2630 = vmatprep.subr.mxu0 0.0
        %2631 = vmatpush1.msra.mxu0 0.0
        %2632 = vmatprep.subr.mxu0 0.0
        %2633 = vmatpush1.msra.mxu0 0.0
        %2634 = vmatprep.subr.mxu0 0.0
        %2635 = vmatpush1.msra.mxu0 0.0
        %2636 = vmatprep.subr.mxu0 0.0
        %2637 = vmatpush1.msra.mxu0 0.0
        %2638 = vmatprep.subr.mxu0 0.0
        %2639 = vmatpush1.msra.mxu0 0.0
        %2640 = vmatprep.subr.mxu0 0.0
        %2641 = vmatpush1.msra.mxu0 0.0
        %2642 = vmatprep.subr.mxu0 0.0
        %2643 = vmatpush1.msra.mxu0 0.0
        %2644 = vmatprep.subr.mxu0 0.0
        %2645 = vmatpush1.msra.mxu0 0.0
        %2646 = vmatprep.subr.mxu0 0.0
        %2647 = vmatpush1.msra.mxu0 0.0
        %2648 = vmatprep.subr.mxu0 0.0
        %2649 = vmatpush1.msra.mxu0 0.0
        %2650 = vmatprep.subr.mxu0 0.0
        %2651 = vmatpush1.msra.mxu0 0.0
        %2652 = vmatprep.mubr.f32.mxu0 0.0
        %v2653 = vand.u32 %v1808, 4294901760
        %2654 = vmatmul.mubr.f32.gmra.mrb[0].mxu0 %v2653
        %v2655 = vpop.f32.mrb[0].mxu0
        %v2656 = vadd.f32 %v2582, %v2655
        %v2657 = vpop.f32.mrb[0].mxu0
        %2658 = vdwg.mxu0
        %2659 = vmatprep.subr.mxu0 0.0
        %v2660 = vand.u32 %v2283, 4294901760
        %2661 = vmatpush1.msra.mxu0 %v2660
        %2662 = vmatprep.subr.mxu0 0.0
        %2663 = vmatpush1.msra.mxu0 0.0
        %2664 = vmatprep.subr.mxu0 0.0
        %2665 = vmatpush1.msra.mxu0 0.0
        %2666 = vmatprep.subr.mxu0 0.0
        %2667 = vmatpush1.msra.mxu0 0.0
        %2668 = vmatprep.subr.mxu0 0.0
        %2669 = vmatpush1.msra.mxu0 0.0
        %2670 = vmatprep.subr.mxu0 0.0
        %2671 = vmatpush1.msra.mxu0 0.0
        %2672 = vmatprep.subr.mxu0 0.0
        %2673 = vmatpush1.msra.mxu0 0.0
        %2674 = vmatprep.subr.mxu0 0.0
        %2675 = vmatpush1.msra.mxu0 0.0
        %2676 = vmatprep.subr.mxu0 0.0
        %2677 = vmatpush1.msra.mxu0 0.0
        %2678 = vmatprep.subr.mxu0 0.0
        %2679 = vmatpush1.msra.mxu0 0.0
        %2680 = vmatprep.subr.mxu0 0.0
        %2681 = vmatpush1.msra.mxu0 0.0
        %2682 = vmatprep.subr.mxu0 0.0
        %2683 = vmatpush1.msra.mxu0 0.0
        %2684 = vmatprep.subr.mxu0 0.0
        %2685 = vmatpush1.msra.mxu0 0.0
        %2686 = vmatprep.subr.mxu0 0.0
        %2687 = vmatpush1.msra.mxu0 0.0
        %2688 = vmatprep.subr.mxu0 0.0
        %2689 = vmatpush1.msra.mxu0 0.0
        %2690 = vmatprep.subr.mxu0 0.0
        %2691 = vmatpush1.msra.mxu0 0.0
        %2692 = vmatprep.subr.mxu0 0.0
        %2693 = vmatpush1.msra.mxu0 0.0
        %2694 = vmatprep.subr.mxu0 0.0
        %2695 = vmatpush1.msra.mxu0 0.0
        %2696 = vmatprep.subr.mxu0 0.0
        %2697 = vmatpush1.msra.mxu0 0.0
        %2698 = vmatprep.subr.mxu0 0.0
        %2699 = vmatpush1.msra.mxu0 0.0
        %2700 = vmatprep.subr.mxu0 0.0
        %2701 = vmatpush1.msra.mxu0 0.0
        %2702 = vmatprep.subr.mxu0 0.0
        %2703 = vmatpush1.msra.mxu0 0.0
        %2704 = vmatprep.subr.mxu0 0.0
        %2705 = vmatpush1.msra.mxu0 0.0
        %2706 = vmatprep.subr.mxu0 0.0
        %2707 = vmatpush1.msra.mxu0 0.0
        %2708 = vmatprep.subr.mxu0 0.0
        %2709 = vmatpush1.msra.mxu0 0.0
        %2710 = vmatprep.subr.mxu0 0.0
        %2711 = vmatpush1.msra.mxu0 0.0
        %2712 = vmatprep.subr.mxu0 0.0
        %2713 = vmatpush1.msra.mxu0 0.0
        %2714 = vmatprep.subr.mxu0 0.0
        %2715 = vmatpush1.msra.mxu0 0.0
        %2716 = vmatprep.subr.mxu0 0.0
        %2717 = vmatpush1.msra.mxu0 0.0
        %2718 = vmatprep.subr.mxu0 0.0
        %2719 = vmatpush1.msra.mxu0 0.0
        %2720 = vmatprep.subr.mxu0 0.0
        %2721 = vmatpush1.msra.mxu0 0.0
        %2722 = vmatprep.subr.mxu0 0.0
        %2723 = vmatpush1.msra.mxu0 0.0
        %2724 = vmatprep.mubr.f32.mxu0 0.0
        %v2725 = vand.u32 %v1808, 4294901760
        %2726 = vmatmul.mubr.f32.gmra.mrb[0].mxu0 %v2725
        %v2727 = vpop.f32.mrb[0].mxu0
        %v2728 = vadd.f32 %v2656, %v2727
        %v2729 = vpop.f32.mrb[0].mxu0
        %2730 = vdwg.mxu0
        %v2731 = vmul.f32 %v2728, 0.0009765625
        %v2732 = vadd.f32 %v2731, 1e-05
        %v2733 = vrsqrt.pop %v2732
        %2735 = vset.pattern.permute.xlu0 0
        %2736 = vperm.xlu0 %2735, %v2733
        %v2737 = vpop.permute.xlu0 %2736
        %v2739 = vunpack.c.l.s4 839922192
        %v2740 = vunpack.c.0.s8 %v2739
        %v2741 = vlaneseq
        %v2742 = vshrl.u32 %v2741, 7
        %v2743 = vsub.s32 %v2740, %v2742
        %v2744 = vrot.slane %v2737, %v2743
        %v2746 = vmul.f32 %v2272, %v2744
        %2748 = vset.pattern.permute.xlu0 0
        %2749 = vperm.xlu0 %2748, %v1798
        %v2750 = vpop.permute.xlu0 %2749
        %v2752 = vunpack.c.l.s4 839922192
        %v2753 = vunpack.c.0.s8 %v2752
        %v2754 = vlaneseq
        %v2755 = vshrl.u32 %v2754, 7
        %v2756 = vsub.s32 %v2753, %v2755
        %v2757 = vrot.slane %v2750, %v2756
        %v2759 = vmul.f32 %v2746, %v2757
        %2761 = vset.pattern.permute.xlu0 0
        %2762 = vperm.xlu0 %2761, %v1799
        %v2763 = vpop.permute.xlu0 %2762
        %v2765 = vunpack.c.l.s4 839922192
        %v2766 = vunpack.c.0.s8 %v2765
        %v2767 = vlaneseq
        %v2768 = vshrl.u32 %v2767, 7
        %v2769 = vsub.s32 %v2766, %v2768
        %v2770 = vrot.slane %v2763, %v2769
        %v2772 = vadd.f32 %v2759, %v2770
        %v2773 = vsub.f32 0.0, %v2772
        %v2774 = vmul.f32 %v2773, 1.442695
        %v2775 = vpow.pop %v2774
        %v2776 = vadd.f32 %v2775, 1.0
        %v2777 = vrcp.pop %v2776
        %v2778 = vmul.f32 1.0, %v2777
        %v2779 = vmul.f32 %v2772, %v2778
        %v2780 = vld [vmem:[%s11] sm:$0xf]
        %2781 = vst.msk [vmem:[#allocation2] sm:$0x3] %vm1015, 0
        %2782 = vst.msk [vmem:[#allocation2 + $0x4] sm:$0x3] %vm1017, 0
        %v2784 = vcombine.high %v2779, %v2779
        %v2786 = vpack.c.bf16 %v2779, %v2779
        %v2787 = vpack.c.bf16 %v2784, %v2784
        %v2790 = vcombine.low %v2786, %v2787
        %v2792 = vunpack.c.l.s4 1983009808
        %v2793 = vunpack.c.0.s8 %v2792
        %v2794 = vlaneseq
        %v2795 = vshrl.u32 %v2794, 7
        %v2796 = vsub.s32 %v2793, %v2795
        %v2797 = vrot.slane %v2790, %v2796
        %2798 = vrot.lane.b32.xlu0 %v2797, 17
        %v2799 = vpop.permute.xlu0 %2798
        %v2800 = vrot.slane %v2799, 6
        %v2801 = vsel %vm1037, %v2800, %v2799
        %2803 = vst.msk [vmem:[#allocation2] sm:$0x3f] %vm1044, %v2801
        %v2804 = vld [vmem:[#allocation2] sm:$0xf]
        %v2805 = vld [vmem:[%s10] sm:$0x3]
        %v2808 = vunpack.c.l.s4 1983009808
        %v2809 = vunpack.c.0.s8 %v2808
        %v2810 = vlaneseq
        %v2811 = vshrl.u32 %v2810, 7
        %v2812 = vsub.s32 %v2809, %v2811
        %v2813 = vrot.slane %v2804, %v2812
        %v2814 = vcombine.high %v2813, %v2813
        %v2816 = vsel %vm1057, %v2805, 0
        %v2819 = vsel %vm1061, %v2813, 0
        %v2822 = vsel %vm1061, %v2814, 0
        %2824 = vmatprep.subr.bf16.mxu0 %v2822
        %2825 = vmatpush1.bf16.msra.mxu0 %v2819
        %2826 = vmatprep.subr.bf16.mxu0 0
        %2827 = vmatpush1.bf16.msra.mxu0 0
        %2828 = vmatprep.subr.bf16.mxu0 0
        %2829 = vmatpush1.bf16.msra.mxu0 0
        %2830 = vmatprep.subr.bf16.mxu0 0
        %2831 = vmatpush1.bf16.msra.mxu0 0
        %2832 = vmatprep.subr.bf16.mxu0 0
        %2833 = vmatpush1.bf16.msra.mxu0 0
        %2834 = vmatprep.subr.bf16.mxu0 0
        %2835 = vmatpush1.bf16.msra.mxu0 0
        %2836 = vmatprep.subr.bf16.mxu0 0
        %2837 = vmatpush1.bf16.msra.mxu0 0
        %2838 = vmatprep.subr.bf16.mxu0 0
        %2839 = vmatpush1.bf16.msra.mxu0 0
        %2840 = vmatprep.subr.bf16.mxu0 0
        %2841 = vmatpush1.bf16.msra.mxu0 0
        %2842 = vmatprep.subr.bf16.mxu0 0
        %2843 = vmatpush1.bf16.msra.mxu0 0
        %2844 = vmatprep.subr.bf16.mxu0 0
        %2845 = vmatpush1.bf16.msra.mxu0 0
        %2846 = vmatprep.subr.bf16.mxu0 0
        %2847 = vmatpush1.bf16.msra.mxu0 0
        %2848 = vmatprep.subr.bf16.mxu0 0
        %2849 = vmatpush1.bf16.msra.mxu0 0
        %2850 = vmatprep.subr.bf16.mxu0 0
        %2851 = vmatpush1.bf16.msra.mxu0 0
        %2852 = vmatprep.subr.bf16.mxu0 0
        %2853 = vmatpush1.bf16.msra.mxu0 0
        %2854 = vmatprep.subr.bf16.mxu0 0
        %2855 = vmatpush1.bf16.msra.mxu0 0
        %2856 = vmatprep.mubr.bf16.mxu0 0
        %2857 = vmatmul.mubr.bf16.gmra.mrb[0].mxu0 %v2816
        %v2858 = vpop.f32.mrb[0].mxu0
        %v2859 = vadd.f32 0.0, %v2858
        %v2860 = vpop.f32.mrb[0].mxu0
        %v2861 = vadd.f32 0.0, %v2860
        %v2862 = vpop.f32.mrb[0].mxu0
        %v2863 = vpop.f32.mrb[0].mxu0
        %2864 = vdwg.mxu0
        %v2865 = vmul.f32 %v2859, %v1113
        %v2866 = vmul.f32 %v2861, %v1117
        %v2867 = vld [vmem:[#allocation2] sm:$0x3f]
        %s2868 = scalar_lea.vmem %s10, 2
        %v2869 = vld [vmem:[%s2868] sm:$0x3]
        %v2871 = vcombine.high %v2867, %v2867
        %v2873 = vunpack.c.l.s4 1983009808
        %v2874 = vunpack.c.0.s8 %v2873
        %v2875 = vlaneseq
        %v2876 = vshrl.u32 %v2875, 7
        %v2877 = vsub.s32 %v2874, %v2876
        %v2878 = vrot.slane %v2867, %v2877
        %v2880 = vunpack.c.l.s4 1983009808
        %v2881 = vunpack.c.0.s8 %v2880
        %v2882 = vlaneseq
        %v2883 = vshrl.u32 %v2882, 7
        %v2884 = vsub.s32 %v2881, %v2883
        %v2885 = vrot.slane %v2871, %v2884
        %v2886 = vcombine.high %v2878, %v2878
        %2887 = vrot.lane.b32.xlu0 %v2878, 127
        %v2888 = vpop.permute.xlu0 %2887
        %2889 = vrot.lane.b32.xlu0 %v2886, 127
        %v2890 = vpop.permute.xlu0 %2889
        %2891 = vrot.lane.b32.xlu0 %v2885, 127
        %v2892 = vpop.permute.xlu0 %2891
        %v2893 = vsel %vm1148, %v2888, %v2890
        %v2894 = vsel %vm1148, %v2890, %v2892
        %v2896 = vsel %vm1057, %v2869, 0
        %v2899 = vsel %vm1061, %v2893, 0
        %v2902 = vsel %vm1061, %v2894, 0
        %2904 = vmatprep.subr.bf16.mxu0 %v2902
        %2905 = vmatpush1.bf16.msra.mxu0 %v2899
        %2906 = vmatprep.subr.bf16.mxu0 0
        %2907 = vmatpush1.bf16.msra.mxu0 0
        %2908 = vmatprep.subr.bf16.mxu0 0
        %2909 = vmatpush1.bf16.msra.mxu0 0
        %2910 = vmatprep.subr.bf16.mxu0 0
        %2911 = vmatpush1.bf16.msra.mxu0 0
        %2912 = vmatprep.subr.bf16.mxu0 0
        %2913 = vmatpush1.bf16.msra.mxu0 0
        %2914 = vmatprep.subr.bf16.mxu0 0
        %2915 = vmatpush1.bf16.msra.mxu0 0
        %2916 = vmatprep.subr.bf16.mxu0 0
        %2917 = vmatpush1.bf16.msra.mxu0 0
        %2918 = vmatprep.subr.bf16.mxu0 0
        %2919 = vmatpush1.bf16.msra.mxu0 0
        %2920 = vmatprep.subr.bf16.mxu0 0
        %2921 = vmatpush1.bf16.msra.mxu0 0
        %2922 = vmatprep.subr.bf16.mxu0 0
        %2923 = vmatpush1.bf16.msra.mxu0 0
        %2924 = vmatprep.subr.bf16.mxu0 0
        %2925 = vmatpush1.bf16.msra.mxu0 0
        %2926 = vmatprep.subr.bf16.mxu0 0
        %2927 = vmatpush1.bf16.msra.mxu0 0
        %2928 = vmatprep.subr.bf16.mxu0 0
        %2929 = vmatpush1.bf16.msra.mxu0 0
        %2930 = vmatprep.subr.bf16.mxu0 0
        %2931 = vmatpush1.bf16.msra.mxu0 0
        %2932 = vmatprep.subr.bf16.mxu0 0
        %2933 = vmatpush1.bf16.msra.mxu0 0
        %2934 = vmatprep.subr.bf16.mxu0 0
        %2935 = vmatpush1.bf16.msra.mxu0 0
        %2936 = vmatprep.mubr.bf16.mxu0 0
        %2937 = vmatmul.mubr.bf16.gmra.mrb[0].mxu0 %v2896
        %v2938 = vpop.f32.mrb[0].mxu0
        %v2939 = vadd.f32 0.0, %v2938
        %v2940 = vpop.f32.mrb[0].mxu0
        %v2941 = vadd.f32 0.0, %v2940
        %v2942 = vpop.f32.mrb[0].mxu0
        %v2943 = vpop.f32.mrb[0].mxu0
        %2944 = vdwg.mxu0
        %v2945 = vadd.f32 %v2865, %v2939
        %v2946 = vadd.f32 %v2866, %v2941
        %v2947 = vld [vmem:[#allocation2] sm:$0x3f]
        %s2948 = scalar_lea.vmem %s10, 4
        %v2949 = vld [vmem:[%s2948] sm:$0x3]
        %v2951 = vcombine.high %v2947, %v2947
        %v2953 = vunpack.c.l.s4 1983009808
        %v2954 = vunpack.c.0.s8 %v2953
        %v2955 = vlaneseq
        %v2956 = vshrl.u32 %v2955, 7
        %v2957 = vsub.s32 %v2954, %v2956
        %v2958 = vrot.slane %v2947, %v2957
        %v2960 = vunpack.c.l.s4 1983009808
        %v2961 = vunpack.c.0.s8 %v2960
        %v2962 = vlaneseq
        %v2963 = vshrl.u32 %v2962, 7
        %v2964 = vsub.s32 %v2961, %v2963
        %v2965 = vrot.slane %v2951, %v2964
        %v2966 = vcombine.high %v2958, %v2958
        %2967 = vrot.lane.b32.xlu0 %v2958, 126
        %v2968 = vpop.permute.xlu0 %2967
        %2969 = vrot.lane.b32.xlu0 %v2966, 126
        %v2970 = vpop.permute.xlu0 %2969
        %2971 = vrot.lane.b32.xlu0 %v2965, 126
        %v2972 = vpop.permute.xlu0 %2971
        %v2973 = vsel %vm1229, %v2968, %v2970
        %v2974 = vsel %vm1229, %v2970, %v2972
        %v2976 = vsel %vm1057, %v2949, 0
        %v2979 = vsel %vm1061, %v2973, 0
        %v2982 = vsel %vm1061, %v2974, 0
        %2984 = vmatprep.subr.bf16.mxu0 %v2982
        %2985 = vmatpush1.bf16.msra.mxu0 %v2979
        %2986 = vmatprep.subr.bf16.mxu0 0
        %2987 = vmatpush1.bf16.msra.mxu0 0
        %2988 = vmatprep.subr.bf16.mxu0 0
        %2989 = vmatpush1.bf16.msra.mxu0 0
        %2990 = vmatprep.subr.bf16.mxu0 0
        %2991 = vmatpush1.bf16.msra.mxu0 0
        %2992 = vmatprep.subr.bf16.mxu0 0
        %2993 = vmatpush1.bf16.msra.mxu0 0
        %2994 = vmatprep.subr.bf16.mxu0 0
        %2995 = vmatpush1.bf16.msra.mxu0 0
        %2996 = vmatprep.subr.bf16.mxu0 0
        %2997 = vmatpush1.bf16.msra.mxu0 0
        %2998 = vmatprep.subr.bf16.mxu0 0
        %2999 = vmatpush1.bf16.msra.mxu0 0
        %3000 = vmatprep.subr.bf16.mxu0 0
        %3001 = vmatpush1.bf16.msra.mxu0 0
        %3002 = vmatprep.subr.bf16.mxu0 0
        %3003 = vmatpush1.bf16.msra.mxu0 0
        %3004 = vmatprep.subr.bf16.mxu0 0
        %3005 = vmatpush1.bf16.msra.mxu0 0
        %3006 = vmatprep.subr.bf16.mxu0 0
        %3007 = vmatpush1.bf16.msra.mxu0 0
        %3008 = vmatprep.subr.bf16.mxu0 0
        %3009 = vmatpush1.bf16.msra.mxu0 0
        %3010 = vmatprep.subr.bf16.mxu0 0
        %3011 = vmatpush1.bf16.msra.mxu0 0
        %3012 = vmatprep.subr.bf16.mxu0 0
        %3013 = vmatpush1.bf16.msra.mxu0 0
        %3014 = vmatprep.subr.bf16.mxu0 0
        %3015 = vmatpush1.bf16.msra.mxu0 0
        %3016 = vmatprep.mubr.bf16.mxu0 0
        %3017 = vmatmul.mubr.bf16.gmra.mrb[0].mxu0 %v2976
        %v3018 = vpop.f32.mrb[0].mxu0
        %v3019 = vadd.f32 0.0, %v3018
        %v3020 = vpop.f32.mrb[0].mxu0
        %v3021 = vadd.f32 0.0, %v3020
        %v3022 = vpop.f32.mrb[0].mxu0
        %v3023 = vpop.f32.mrb[0].mxu0
        %3024 = vdwg.mxu0
        %v3025 = vmul.f32 %v3019, %v1286
        %v3026 = vmul.f32 %v3021, %v1290
        %v3027 = vadd.f32 %v2945, %v3025
        %v3028 = vadd.f32 %v2946, %v3026
        %v3029 = vld [vmem:[#allocation2] sm:$0x3f]
        %s3030 = scalar_lea.vmem %s10, 6
        %v3031 = vld [vmem:[%s3030] sm:$0x3]
        %v3033 = vcombine.high %v3029, %v3029
        %v3035 = vunpack.c.l.s4 1983009808
        %v3036 = vunpack.c.0.s8 %v3035
        %v3037 = vlaneseq
        %v3038 = vshrl.u32 %v3037, 7
        %v3039 = vsub.s32 %v3036, %v3038
        %v3040 = vrot.slane %v3029, %v3039
        %v3042 = vunpack.c.l.s4 1983009808
        %v3043 = vunpack.c.0.s8 %v3042
        %v3044 = vlaneseq
        %v3045 = vshrl.u32 %v3044, 7
        %v3046 = vsub.s32 %v3043, %v3045
        %v3047 = vrot.slane %v3033, %v3046
        %v3048 = vcombine.high %v3040, %v3040
        %3049 = vrot.lane.b32.xlu0 %v3040, 112
        %v3050 = vpop.permute.xlu0 %3049
        %3051 = vrot.lane.b32.xlu0 %v3048, 112
        %v3052 = vpop.permute.xlu0 %3051
        %3053 = vrot.lane.b32.xlu0 %v3047, 112
        %v3054 = vpop.permute.xlu0 %3053
        %v3055 = vsel %vm1323, %v3050, %v3052
        %v3056 = vsel %vm1323, %v3052, %v3054
        %v3058 = vsel %vm1057, %v3031, 0
        %v3061 = vsel %vm1061, %v3055, 0
        %v3064 = vsel %vm1061, %v3056, 0
        %3066 = vmatprep.subr.bf16.mxu0 %v3064
        %3067 = vmatpush1.bf16.msra.mxu0 %v3061
        %3068 = vmatprep.subr.bf16.mxu0 0
        %3069 = vmatpush1.bf16.msra.mxu0 0
        %3070 = vmatprep.subr.bf16.mxu0 0
        %3071 = vmatpush1.bf16.msra.mxu0 0
        %3072 = vmatprep.subr.bf16.mxu0 0
        %3073 = vmatpush1.bf16.msra.mxu0 0
        %3074 = vmatprep.subr.bf16.mxu0 0
        %3075 = vmatpush1.bf16.msra.mxu0 0
        %3076 = vmatprep.subr.bf16.mxu0 0
        %3077 = vmatpush1.bf16.msra.mxu0 0
        %3078 = vmatprep.subr.bf16.mxu0 0
        %3079 = vmatpush1.bf16.msra.mxu0 0
        %3080 = vmatprep.subr.bf16.mxu0 0
        %3081 = vmatpush1.bf16.msra.mxu0 0
        %3082 = vmatprep.subr.bf16.mxu0 0
        %3083 = vmatpush1.bf16.msra.mxu0 0
        %3084 = vmatprep.subr.bf16.mxu0 0
        %3085 = vmatpush1.bf16.msra.mxu0 0
        %3086 = vmatprep.subr.bf16.mxu0 0
        %3087 = vmatpush1.bf16.msra.mxu0 0
        %3088 = vmatprep.subr.bf16.mxu0 0
        %3089 = vmatpush1.bf16.msra.mxu0 0
        %3090 = vmatprep.subr.bf16.mxu0 0
        %3091 = vmatpush1.bf16.msra.mxu0 0
        %3092 = vmatprep.subr.bf16.mxu0 0
        %3093 = vmatpush1.bf16.msra.mxu0 0
        %3094 = vmatprep.subr.bf16.mxu0 0
        %3095 = vmatpush1.bf16.msra.mxu0 0
        %3096 = vmatprep.subr.bf16.mxu0 0
        %3097 = vmatpush1.bf16.msra.mxu0 0
        %3098 = vmatprep.mubr.bf16.mxu0 0
        %3099 = vmatmul.mubr.bf16.gmra.mrb[0].mxu0 %v3058
        %v3100 = vpop.f32.mrb[0].mxu0
        %v3101 = vadd.f32 0.0, %v3100
        %v3102 = vpop.f32.mrb[0].mxu0
        %v3103 = vadd.f32 0.0, %v3102
        %v3104 = vpop.f32.mrb[0].mxu0
        %v3105 = vpop.f32.mrb[0].mxu0
        %3106 = vdwg.mxu0
        %v3107 = vmul.f32 %v3101, %v1113
        %v3108 = vmul.f32 %v3103, %v1117
        %v3109 = vadd.f32 %v3027, %v3107
        %v3110 = vadd.f32 %v3028, %v3108
        %v3111 = vld [vmem:[#allocation2] sm:$0x3f]
        %s3112 = scalar_lea.vmem %s10, 8
        %v3113 = vld [vmem:[%s3112] sm:$0x3]
        %v3115 = vcombine.high %v3111, %v3111
        %v3117 = vunpack.c.l.s4 1983009808
        %v3118 = vunpack.c.0.s8 %v3117
        %v3119 = vlaneseq
        %v3120 = vshrl.u32 %v3119, 7
        %v3121 = vsub.s32 %v3118, %v3120
        %v3122 = vrot.slane %v3111, %v3121
        %v3124 = vunpack.c.l.s4 1983009808
        %v3125 = vunpack.c.0.s8 %v3124
        %v3126 = vlaneseq
        %v3127 = vshrl.u32 %v3126, 7
        %v3128 = vsub.s32 %v3125, %v3127
        %v3129 = vrot.slane %v3115, %v3128
        %v3130 = vcombine.high %v3122, %v3122
        %3131 = vrot.lane.b32.xlu0 %v3122, 111
        %v3132 = vpop.permute.xlu0 %3131
        %3133 = vrot.lane.b32.xlu0 %v3130, 111
        %v3134 = vpop.permute.xlu0 %3133
        %3135 = vrot.lane.b32.xlu0 %v3129, 111
        %v3136 = vpop.permute.xlu0 %3135
        %v3137 = vsel %vm1406, %v3132, %v3134
        %v3138 = vsel %vm1406, %v3134, %v3136
        %v3140 = vsel %vm1057, %v3113, 0
        %v3143 = vsel %vm1061, %v3137, 0
        %v3146 = vsel %vm1061, %v3138, 0
        %3148 = vmatprep.subr.bf16.mxu0 %v3146
        %3149 = vmatpush1.bf16.msra.mxu0 %v3143
        %3150 = vmatprep.subr.bf16.mxu0 0
        %3151 = vmatpush1.bf16.msra.mxu0 0
        %3152 = vmatprep.subr.bf16.mxu0 0
        %3153 = vmatpush1.bf16.msra.mxu0 0
        %3154 = vmatprep.subr.bf16.mxu0 0
        %3155 = vmatpush1.bf16.msra.mxu0 0
        %3156 = vmatprep.subr.bf16.mxu0 0
        %3157 = vmatpush1.bf16.msra.mxu0 0
        %3158 = vmatprep.subr.bf16.mxu0 0
        %3159 = vmatpush1.bf16.msra.mxu0 0
        %3160 = vmatprep.subr.bf16.mxu0 0
        %3161 = vmatpush1.bf16.msra.mxu0 0
        %3162 = vmatprep.subr.bf16.mxu0 0
        %3163 = vmatpush1.bf16.msra.mxu0 0
        %3164 = vmatprep.subr.bf16.mxu0 0
        %3165 = vmatpush1.bf16.msra.mxu0 0
        %3166 = vmatprep.subr.bf16.mxu0 0
        %3167 = vmatpush1.bf16.msra.mxu0 0
        %3168 = vmatprep.subr.bf16.mxu0 0
        %3169 = vmatpush1.bf16.msra.mxu0 0
        %3170 = vmatprep.subr.bf16.mxu0 0
        %3171 = vmatpush1.bf16.msra.mxu0 0
        %3172 = vmatprep.subr.bf16.mxu0 0
        %3173 = vmatpush1.bf16.msra.mxu0 0
        %3174 = vmatprep.subr.bf16.mxu0 0
        %3175 = vmatpush1.bf16.msra.mxu0 0
        %3176 = vmatprep.subr.bf16.mxu0 0
        %3177 = vmatpush1.bf16.msra.mxu0 0
        %3178 = vmatprep.subr.bf16.mxu0 0
        %3179 = vmatpush1.bf16.msra.mxu0 0
        %3180 = vmatprep.mubr.bf16.mxu0 0
        %3181 = vmatmul.mubr.bf16.gmra.mrb[0].mxu0 %v3140
        %v3182 = vpop.f32.mrb[0].mxu0
        %v3183 = vadd.f32 0.0, %v3182
        %v3184 = vpop.f32.mrb[0].mxu0
        %v3185 = vadd.f32 0.0, %v3184
        %v3186 = vpop.f32.mrb[0].mxu0
        %v3187 = vpop.f32.mrb[0].mxu0
        %3188 = vdwg.mxu0
        %v3189 = vadd.f32 %v3109, %v3183
        %v3190 = vadd.f32 %v3110, %v3185
        %v3191 = vld [vmem:[#allocation2] sm:$0x3f]
        %s3192 = scalar_lea.vmem %s10, 10
        %v3193 = vld [vmem:[%s3192] sm:$0x3]
        %v3195 = vcombine.high %v3191, %v3191
        %v3197 = vunpack.c.l.s4 1983009808
        %v3198 = vunpack.c.0.s8 %v3197
        %v3199 = vlaneseq
        %v3200 = vshrl.u32 %v3199, 7
        %v3201 = vsub.s32 %v3198, %v3200
        %v3202 = vrot.slane %v3191, %v3201
        %v3204 = vunpack.c.l.s4 1983009808
        %v3205 = vunpack.c.0.s8 %v3204
        %v3206 = vlaneseq
        %v3207 = vshrl.u32 %v3206, 7
        %v3208 = vsub.s32 %v3205, %v3207
        %v3209 = vrot.slane %v3195, %v3208
        %v3210 = vcombine.high %v3202, %v3202
        %3211 = vrot.lane.b32.xlu0 %v3202, 110
        %v3212 = vpop.permute.xlu0 %3211
        %3213 = vrot.lane.b32.xlu0 %v3210, 110
        %v3214 = vpop.permute.xlu0 %3213
        %3215 = vrot.lane.b32.xlu0 %v3209, 110
        %v3216 = vpop.permute.xlu0 %3215
        %v3217 = vsel %vm1487, %v3212, %v3214
        %v3218 = vsel %vm1487, %v3214, %v3216
        %v3220 = vsel %vm1057, %v3193, 0
        %v3223 = vsel %vm1061, %v3217, 0
        %v3226 = vsel %vm1061, %v3218, 0
        %3228 = vmatprep.subr.bf16.mxu0 %v3226
        %3229 = vmatpush1.bf16.msra.mxu0 %v3223
        %3230 = vmatprep.subr.bf16.mxu0 0
        %3231 = vmatpush1.bf16.msra.mxu0 0
        %3232 = vmatprep.subr.bf16.mxu0 0
        %3233 = vmatpush1.bf16.msra.mxu0 0
        %3234 = vmatprep.subr.bf16.mxu0 0
        %3235 = vmatpush1.bf16.msra.mxu0 0
        %3236 = vmatprep.subr.bf16.mxu0 0
        %3237 = vmatpush1.bf16.msra.mxu0 0
        %3238 = vmatprep.subr.bf16.mxu0 0
        %3239 = vmatpush1.bf16.msra.mxu0 0
        %3240 = vmatprep.subr.bf16.mxu0 0
        %3241 = vmatpush1.bf16.msra.mxu0 0
        %3242 = vmatprep.subr.bf16.mxu0 0
        %3243 = vmatpush1.bf16.msra.mxu0 0
        %3244 = vmatprep.subr.bf16.mxu0 0
        %3245 = vmatpush1.bf16.msra.mxu0 0
        %3246 = vmatprep.subr.bf16.mxu0 0
        %3247 = vmatpush1.bf16.msra.mxu0 0
        %3248 = vmatprep.subr.bf16.mxu0 0
        %3249 = vmatpush1.bf16.msra.mxu0 0
        %3250 = vmatprep.subr.bf16.mxu0 0
        %3251 = vmatpush1.bf16.msra.mxu0 0
        %3252 = vmatprep.subr.bf16.mxu0 0
        %3253 = vmatpush1.bf16.msra.mxu0 0
        %3254 = vmatprep.subr.bf16.mxu0 0
        %3255 = vmatpush1.bf16.msra.mxu0 0
        %3256 = vmatprep.subr.bf16.mxu0 0
        %3257 = vmatpush1.bf16.msra.mxu0 0
        %3258 = vmatprep.subr.bf16.mxu0 0
        %3259 = vmatpush1.bf16.msra.mxu0 0
        %3260 = vmatprep.mubr.bf16.mxu0 0
        %3261 = vmatmul.mubr.bf16.gmra.mrb[0].mxu0 %v3220
        %v3262 = vpop.f32.mrb[0].mxu0
        %v3263 = vadd.f32 0.0, %v3262
        %v3264 = vpop.f32.mrb[0].mxu0
        %v3265 = vadd.f32 0.0, %v3264
        %v3266 = vpop.f32.mrb[0].mxu0
        %v3267 = vpop.f32.mrb[0].mxu0
        %3268 = vdwg.mxu0
        %v3269 = vmul.f32 %v3263, %v1286
        %v3270 = vmul.f32 %v3265, %v1290
        %v3271 = vadd.f32 %v3189, %v3269
        %v3272 = vadd.f32 %v3190, %v3270
        %v3273 = vld [vmem:[#allocation2] sm:$0x3f]
        %s3274 = scalar_lea.vmem %s10, 12
        %v3275 = vld [vmem:[%s3274] sm:$0x3]
        %v3277 = vcombine.high %v3273, %v3273
        %v3279 = vunpack.c.l.s4 1983009808
        %v3280 = vunpack.c.0.s8 %v3279
        %v3281 = vlaneseq
        %v3282 = vshrl.u32 %v3281, 7
        %v3283 = vsub.s32 %v3280, %v3282
        %v3284 = vrot.slane %v3273, %v3283
        %v3286 = vunpack.c.l.s4 1983009808
        %v3287 = vunpack.c.0.s8 %v3286
        %v3288 = vlaneseq
        %v3289 = vshrl.u32 %v3288, 7
        %v3290 = vsub.s32 %v3287, %v3289
        %v3291 = vrot.slane %v3277, %v3290
        %v3292 = vcombine.high %v3284, %v3284
        %3293 = vrot.lane.b32.xlu0 %v3284, 96
        %v3294 = vpop.permute.xlu0 %3293
        %3295 = vrot.lane.b32.xlu0 %v3292, 96
        %v3296 = vpop.permute.xlu0 %3295
        %3297 = vrot.lane.b32.xlu0 %v3291, 96
        %v3298 = vpop.permute.xlu0 %3297
        %v3299 = vsel %vm1570, %v3294, %v3296
        %v3300 = vsel %vm1570, %v3296, %v3298
        %v3302 = vsel %vm1057, %v3275, 0
        %v3305 = vsel %vm1061, %v3299, 0
        %v3308 = vsel %vm1061, %v3300, 0
        %3310 = vmatprep.subr.bf16.mxu0 %v3308
        %3311 = vmatpush1.bf16.msra.mxu0 %v3305
        %3312 = vmatprep.subr.bf16.mxu0 0
        %3313 = vmatpush1.bf16.msra.mxu0 0
        %3314 = vmatprep.subr.bf16.mxu0 0
        %3315 = vmatpush1.bf16.msra.mxu0 0
        %3316 = vmatprep.subr.bf16.mxu0 0
        %3317 = vmatpush1.bf16.msra.mxu0 0
        %3318 = vmatprep.subr.bf16.mxu0 0
        %3319 = vmatpush1.bf16.msra.mxu0 0
        %3320 = vmatprep.subr.bf16.mxu0 0
        %3321 = vmatpush1.bf16.msra.mxu0 0
        %3322 = vmatprep.subr.bf16.mxu0 0
        %3323 = vmatpush1.bf16.msra.mxu0 0
        %3324 = vmatprep.subr.bf16.mxu0 0
        %3325 = vmatpush1.bf16.msra.mxu0 0
        %3326 = vmatprep.subr.bf16.mxu0 0
        %3327 = vmatpush1.bf16.msra.mxu0 0
        %3328 = vmatprep.subr.bf16.mxu0 0
        %3329 = vmatpush1.bf16.msra.mxu0 0
        %3330 = vmatprep.subr.bf16.mxu0 0
        %3331 = vmatpush1.bf16.msra.mxu0 0
        %3332 = vmatprep.subr.bf16.mxu0 0
        %3333 = vmatpush1.bf16.msra.mxu0 0
        %3334 = vmatprep.subr.bf16.mxu0 0
        %3335 = vmatpush1.bf16.msra.mxu0 0
        %3336 = vmatprep.subr.bf16.mxu0 0
        %3337 = vmatpush1.bf16.msra.mxu0 0
        %3338 = vmatprep.subr.bf16.mxu0 0
        %3339 = vmatpush1.bf16.msra.mxu0 0
        %3340 = vmatprep.subr.bf16.mxu0 0
        %3341 = vmatpush1.bf16.msra.mxu0 0
        %3342 = vmatprep.mubr.bf16.mxu0 0
        %3343 = vmatmul.mubr.bf16.gmra.mrb[0].mxu0 %v3302
        %v3344 = vpop.f32.mrb[0].mxu0
        %v3345 = vadd.f32 0.0, %v3344
        %v3346 = vpop.f32.mrb[0].mxu0
        %v3347 = vadd.f32 0.0, %v3346
        %v3348 = vpop.f32.mrb[0].mxu0
        %v3349 = vpop.f32.mrb[0].mxu0
        %3350 = vdwg.mxu0
        %v3351 = vmul.f32 %v3345, %v1113
        %v3352 = vmul.f32 %v3347, %v1117
        %v3353 = vadd.f32 %v3271, %v3351
        %v3354 = vadd.f32 %v3272, %v3352
        %v3355 = vld [vmem:[#allocation2] sm:$0x3f]
        %s3356 = scalar_lea.vmem %s10, 14
        %v3357 = vld [vmem:[%s3356] sm:$0x3]
        %v3359 = vcombine.high %v3355, %v3355
        %v3361 = vunpack.c.l.s4 1983009808
        %v3362 = vunpack.c.0.s8 %v3361
        %v3363 = vlaneseq
        %v3364 = vshrl.u32 %v3363, 7
        %v3365 = vsub.s32 %v3362, %v3364
        %v3366 = vrot.slane %v3355, %v3365
        %v3368 = vunpack.c.l.s4 1983009808
        %v3369 = vunpack.c.0.s8 %v3368
        %v3370 = vlaneseq
        %v3371 = vshrl.u32 %v3370, 7
        %v3372 = vsub.s32 %v3369, %v3371
        %v3373 = vrot.slane %v3359, %v3372
        %v3374 = vcombine.high %v3366, %v3366
        %3375 = vrot.lane.b32.xlu0 %v3366, 95
        %v3376 = vpop.permute.xlu0 %3375
        %3377 = vrot.lane.b32.xlu0 %v3374, 95
        %v3378 = vpop.permute.xlu0 %3377
        %3379 = vrot.lane.b32.xlu0 %v3373, 95
        %v3380 = vpop.permute.xlu0 %3379
        %v3381 = vsel %vm1653, %v3376, %v3378
        %v3382 = vsel %vm1653, %v3378, %v3380
        %v3384 = vsel %vm1057, %v3357, 0
        %v3387 = vsel %vm1061, %v3381, 0
        %v3390 = vsel %vm1061, %v3382, 0
        %3392 = vmatprep.subr.bf16.mxu0 %v3390
        %3393 = vmatpush1.bf16.msra.mxu0 %v3387
        %3394 = vmatprep.subr.bf16.mxu0 0
        %3395 = vmatpush1.bf16.msra.mxu0 0
        %3396 = vmatprep.subr.bf16.mxu0 0
        %3397 = vmatpush1.bf16.msra.mxu0 0
        %3398 = vmatprep.subr.bf16.mxu0 0
        %3399 = vmatpush1.bf16.msra.mxu0 0
        %3400 = vmatprep.subr.bf16.mxu0 0
        %3401 = vmatpush1.bf16.msra.mxu0 0
        %3402 = vmatprep.subr.bf16.mxu0 0
        %3403 = vmatpush1.bf16.msra.mxu0 0
        %3404 = vmatprep.subr.bf16.mxu0 0
        %3405 = vmatpush1.bf16.msra.mxu0 0
        %3406 = vmatprep.subr.bf16.mxu0 0
        %3407 = vmatpush1.bf16.msra.mxu0 0
        %3408 = vmatprep.subr.bf16.mxu0 0
        %3409 = vmatpush1.bf16.msra.mxu0 0
        %3410 = vmatprep.subr.bf16.mxu0 0
        %3411 = vmatpush1.bf16.msra.mxu0 0
        %3412 = vmatprep.subr.bf16.mxu0 0
        %3413 = vmatpush1.bf16.msra.mxu0 0
        %3414 = vmatprep.subr.bf16.mxu0 0
        %3415 = vmatpush1.bf16.msra.mxu0 0
        %3416 = vmatprep.subr.bf16.mxu0 0
        %3417 = vmatpush1.bf16.msra.mxu0 0
        %3418 = vmatprep.subr.bf16.mxu0 0
        %3419 = vmatpush1.bf16.msra.mxu0 0
        %3420 = vmatprep.subr.bf16.mxu0 0
        %3421 = vmatpush1.bf16.msra.mxu0 0
        %3422 = vmatprep.subr.bf16.mxu0 0
        %3423 = vmatpush1.bf16.msra.mxu0 0
        %3424 = vmatprep.mubr.bf16.mxu0 0
        %3425 = vmatmul.mubr.bf16.gmra.mrb[0].mxu0 %v3384
        %v3426 = vpop.f32.mrb[0].mxu0
        %v3427 = vadd.f32 0.0, %v3426
        %v3428 = vpop.f32.mrb[0].mxu0
        %v3429 = vadd.f32 0.0, %v3428
        %v3430 = vpop.f32.mrb[0].mxu0
        %v3431 = vpop.f32.mrb[0].mxu0
        %3432 = vdwg.mxu0
        %v3433 = vadd.f32 %v3353, %v3427
        %v3434 = vadd.f32 %v3354, %v3429
        %v3435 = vld [vmem:[#allocation2] sm:$0x3f]
        %s3436 = scalar_lea.vmem %s10, 16
        %v3437 = vld [vmem:[%s3436] sm:$0x3]
        %v3439 = vcombine.high %v3435, %v3435
        %v3441 = vunpack.c.l.s4 1983009808
        %v3442 = vunpack.c.0.s8 %v3441
        %v3443 = vlaneseq
        %v3444 = vshrl.u32 %v3443, 7
        %v3445 = vsub.s32 %v3442, %v3444
        %v3446 = vrot.slane %v3435, %v3445
        %v3448 = vunpack.c.l.s4 1983009808
        %v3449 = vunpack.c.0.s8 %v3448
        %v3450 = vlaneseq
        %v3451 = vshrl.u32 %v3450, 7
        %v3452 = vsub.s32 %v3449, %v3451
        %v3453 = vrot.slane %v3439, %v3452
        %v3454 = vcombine.high %v3446, %v3446
        %3455 = vrot.lane.b32.xlu0 %v3446, 94
        %v3456 = vpop.permute.xlu0 %3455
        %3457 = vrot.lane.b32.xlu0 %v3454, 94
        %v3458 = vpop.permute.xlu0 %3457
        %3459 = vrot.lane.b32.xlu0 %v3453, 94
        %v3460 = vpop.permute.xlu0 %3459
        %v3461 = vsel %vm1734, %v3456, %v3458
        %v3462 = vsel %vm1734, %v3458, %v3460
        %v3464 = vsel %vm1057, %v3437, 0
        %v3467 = vsel %vm1061, %v3461, 0
        %v3470 = vsel %vm1061, %v3462, 0
        %3472 = vmatprep.subr.bf16.mxu0 %v3470
        %3473 = vmatpush1.bf16.msra.mxu0 %v3467
        %3474 = vmatprep.subr.bf16.mxu0 0
        %3475 = vmatpush1.bf16.msra.mxu0 0
        %3476 = vmatprep.subr.bf16.mxu0 0
        %3477 = vmatpush1.bf16.msra.mxu0 0
        %3478 = vmatprep.subr.bf16.mxu0 0
        %3479 = vmatpush1.bf16.msra.mxu0 0
        %3480 = vmatprep.subr.bf16.mxu0 0
        %3481 = vmatpush1.bf16.msra.mxu0 0
        %3482 = vmatprep.subr.bf16.mxu0 0
        %3483 = vmatpush1.bf16.msra.mxu0 0
        %3484 = vmatprep.subr.bf16.mxu0 0
        %3485 = vmatpush1.bf16.msra.mxu0 0
        %3486 = vmatprep.subr.bf16.mxu0 0
        %3487 = vmatpush1.bf16.msra.mxu0 0
        %3488 = vmatprep.subr.bf16.mxu0 0
        %3489 = vmatpush1.bf16.msra.mxu0 0
        %3490 = vmatprep.subr.bf16.mxu0 0
        %3491 = vmatpush1.bf16.msra.mxu0 0
        %3492 = vmatprep.subr.bf16.mxu0 0
        %3493 = vmatpush1.bf16.msra.mxu0 0
        %3494 = vmatprep.subr.bf16.mxu0 0
        %3495 = vmatpush1.bf16.msra.mxu0 0
        %3496 = vmatprep.subr.bf16.mxu0 0
        %3497 = vmatpush1.bf16.msra.mxu0 0
        %3498 = vmatprep.subr.bf16.mxu0 0
        %3499 = vmatpush1.bf16.msra.mxu0 0
        %3500 = vmatprep.subr.bf16.mxu0 0
        %3501 = vmatpush1.bf16.msra.mxu0 0
        %3502 = vmatprep.subr.bf16.mxu0 0
        %3503 = vmatpush1.bf16.msra.mxu0 0
        %3504 = vmatprep.mubr.bf16.mxu0 0
        %3505 = vmatmul.mubr.bf16.gmra.mrb[0].mxu0 %v3464
        %v3506 = vpop.f32.mrb[0].mxu0
        %v3507 = vadd.f32 0.0, %v3506
        %v3508 = vpop.f32.mrb[0].mxu0
        %v3509 = vadd.f32 0.0, %v3508
        %v3510 = vpop.f32.mrb[0].mxu0
        %v3511 = vpop.f32.mrb[0].mxu0
        %3512 = vdwg.mxu0
        %v3513 = vmul.f32 %v3507, %v1286
        %v3514 = vmul.f32 %v3509, %v1290
        %v3515 = vadd.f32 %v3433, %v3513
        %v3516 = vadd.f32 %v3434, %v3514
        %3518 = vset.pattern.permute.xlu0 0
        %3519 = vperm.xlu0 %3518, %v2780
        %v3520 = vpop.permute.xlu0 %3519
        %v3522 = vadd.f32 %v3515, %v3520
        %v3523 = vadd.f32 %v3516, %v3520
        %v3524 = vld [vmem:[%s7] sm:$0xf]
        %v3525 = vld [vmem:[%s8] sm:$0xf]
        %v3526 = vsel %vm1800, %v3522, 0.0
        %v3527 = vsel %vm1800, %v3523, 0.0
        %v3528 = vadd.f32 %v3526, %v3527
        %3529 = vadd.xlane.f32.xlu0 %v3528
        %v3530 = vpop.xlane.xlu0 %3529
        %v3531 = vld [vmem:[%s9] sm:$0xf]
        %v3533 = vsel %vm1057, %v3531, 0
        %v3536 = vsel %vm1800, %v3530, 0
        %3538 = vmatprep.subr.mxu0 0.0
        %v3539 = vand.u32 %v3536, 4294901760
        %3540 = vmatpush1.msra.mxu0 %v3539
        %3541 = vmatprep.subr.mxu0 0.0
        %3542 = vmatpush1.msra.mxu0 0.0
        %3543 = vmatprep.subr.mxu0 0.0
        %3544 = vmatpush1.msra.mxu0 0.0
        %3545 = vmatprep.subr.mxu0 0.0
        %3546 = vmatpush1.msra.mxu0 0.0
        %3547 = vmatprep.subr.mxu0 0.0
        %3548 = vmatpush1.msra.mxu0 0.0
        %3549 = vmatprep.subr.mxu0 0.0
        %3550 = vmatpush1.msra.mxu0 0.0
        %3551 = vmatprep.subr.mxu0 0.0
        %3552 = vmatpush1.msra.mxu0 0.0
        %3553 = vmatprep.subr.mxu0 0.0
        %3554 = vmatpush1.msra.mxu0 0.0
        %3555 = vmatprep.subr.mxu0 0.0
        %3556 = vmatpush1.msra.mxu0 0.0
        %3557 = vmatprep.subr.mxu0 0.0
        %3558 = vmatpush1.msra.mxu0 0.0
        %3559 = vmatprep.subr.mxu0 0.0
        %3560 = vmatpush1.msra.mxu0 0.0
        %3561 = vmatprep.subr.mxu0 0.0
        %3562 = vmatpush1.msra.mxu0 0.0
        %3563 = vmatprep.subr.mxu0 0.0
        %3564 = vmatpush1.msra.mxu0 0.0
        %3565 = vmatprep.subr.mxu0 0.0
        %3566 = vmatpush1.msra.mxu0 0.0
        %3567 = vmatprep.subr.mxu0 0.0
        %3568 = vmatpush1.msra.mxu0 0.0
        %3569 = vmatprep.subr.mxu0 0.0
        %3570 = vmatpush1.msra.mxu0 0.0
        %3571 = vmatprep.subr.mxu0 0.0
        %3572 = vmatpush1.msra.mxu0 0.0
        %3573 = vmatprep.subr.mxu0 0.0
        %3574 = vmatpush1.msra.mxu0 0.0
        %3575 = vmatprep.subr.mxu0 0.0
        %3576 = vmatpush1.msra.mxu0 0.0
        %3577 = vmatprep.subr.mxu0 0.0
        %3578 = vmatpush1.msra.mxu0 0.0
        %3579 = vmatprep.subr.mxu0 0.0
        %3580 = vmatpush1.msra.mxu0 0.0
        %3581 = vmatprep.subr.mxu0 0.0
        %3582 = vmatpush1.msra.mxu0 0.0
        %3583 = vmatprep.subr.mxu0 0.0
        %3584 = vmatpush1.msra.mxu0 0.0
        %3585 = vmatprep.subr.mxu0 0.0
        %3586 = vmatpush1.msra.mxu0 0.0
        %3587 = vmatprep.subr.mxu0 0.0
        %3588 = vmatpush1.msra.mxu0 0.0
        %3589 = vmatprep.subr.mxu0 0.0
        %3590 = vmatpush1.msra.mxu0 0.0
        %3591 = vmatprep.subr.mxu0 0.0
        %3592 = vmatpush1.msra.mxu0 0.0
        %3593 = vmatprep.subr.mxu0 0.0
        %3594 = vmatpush1.msra.mxu0 0.0
        %3595 = vmatprep.subr.mxu0 0.0
        %3596 = vmatpush1.msra.mxu0 0.0
        %3597 = vmatprep.subr.mxu0 0.0
        %3598 = vmatpush1.msra.mxu0 0.0
        %3599 = vmatprep.subr.mxu0 0.0
        %3600 = vmatpush1.msra.mxu0 0.0
        %3601 = vmatprep.subr.mxu0 0.0
        %3602 = vmatpush1.msra.mxu0 0.0
        %3603 = vmatprep.mubr.f32.mxu0 0.0
        %v3604 = vand.u32 %v3533, 4294901760
        %v3605 = vsub.f32 %v3533, %v3604
        %v3606 = vand.u32 %v3605, 4294901760
        %v3607 = vsub.f32 %v3605, %v3606
        %v3608 = vand.u32 %v3607, 4294901760
        %3609 = vmatmul.mubr.f32.gmra.mrb[0].mxu0 %v3608
        %v3610 = vpop.f32.mrb[0].mxu0
        %v3611 = vadd.f32 0.0, %v3610
        %v3612 = vpop.f32.mrb[0].mxu0
        %3613 = vdwg.mxu0
        %3614 = vmatprep.subr.mxu0 0.0
        %v3615 = vand.u32 %v3536, 4294901760
        %v3616 = vsub.f32 %v3536, %v3615
        %v3617 = vand.u32 %v3616, 4294901760
        %v3618 = vsub.f32 %v3616, %v3617
        %v3619 = vand.u32 %v3618, 4294901760
        %3620 = vmatpush1.msra.mxu0 %v3619
        %3621 = vmatprep.subr.mxu0 0.0
        %3622 = vmatpush1.msra.mxu0 0.0
        %3623 = vmatprep.subr.mxu0 0.0
        %3624 = vmatpush1.msra.mxu0 0.0
        %3625 = vmatprep.subr.mxu0 0.0
        %3626 = vmatpush1.msra.mxu0 0.0
        %3627 = vmatprep.subr.mxu0 0.0
        %3628 = vmatpush1.msra.mxu0 0.0
        %3629 = vmatprep.subr.mxu0 0.0
        %3630 = vmatpush1.msra.mxu0 0.0
        %3631 = vmatprep.subr.mxu0 0.0
        %3632 = vmatpush1.msra.mxu0 0.0
        %3633 = vmatprep.subr.mxu0 0.0
        %3634 = vmatpush1.msra.mxu0 0.0
        %3635 = vmatprep.subr.mxu0 0.0
        %3636 = vmatpush1.msra.mxu0 0.0
        %3637 = vmatprep.subr.mxu0 0.0
        %3638 = vmatpush1.msra.mxu0 0.0
        %3639 = vmatprep.subr.mxu0 0.0
        %3640 = vmatpush1.msra.mxu0 0.0
        %3641 = vmatprep.subr.mxu0 0.0
        %3642 = vmatpush1.msra.mxu0 0.0
        %3643 = vmatprep.subr.mxu0 0.0
        %3644 = vmatpush1.msra.mxu0 0.0
        %3645 = vmatprep.subr.mxu0 0.0
        %3646 = vmatpush1.msra.mxu0 0.0
        %3647 = vmatprep.subr.mxu0 0.0
        %3648 = vmatpush1.msra.mxu0 0.0
        %3649 = vmatprep.subr.mxu0 0.0
        %3650 = vmatpush1.msra.mxu0 0.0
        %3651 = vmatprep.subr.mxu0 0.0
        %3652 = vmatpush1.msra.mxu0 0.0
        %3653 = vmatprep.subr.mxu0 0.0
        %3654 = vmatpush1.msra.mxu0 0.0
        %3655 = vmatprep.subr.mxu0 0.0
        %3656 = vmatpush1.msra.mxu0 0.0
        %3657 = vmatprep.subr.mxu0 0.0
        %3658 = vmatpush1.msra.mxu0 0.0
        %3659 = vmatprep.subr.mxu0 0.0
        %3660 = vmatpush1.msra.mxu0 0.0
        %3661 = vmatprep.subr.mxu0 0.0
        %3662 = vmatpush1.msra.mxu0 0.0
        %3663 = vmatprep.subr.mxu0 0.0
        %3664 = vmatpush1.msra.mxu0 0.0
        %3665 = vmatprep.subr.mxu0 0.0
        %3666 = vmatpush1.msra.mxu0 0.0
        %3667 = vmatprep.subr.mxu0 0.0
        %3668 = vmatpush1.msra.mxu0 0.0
        %3669 = vmatprep.subr.mxu0 0.0
        %3670 = vmatpush1.msra.mxu0 0.0
        %3671 = vmatprep.subr.mxu0 0.0
        %3672 = vmatpush1.msra.mxu0 0.0
        %3673 = vmatprep.subr.mxu0 0.0
        %3674 = vmatpush1.msra.mxu0 0.0
        %3675 = vmatprep.subr.mxu0 0.0
        %3676 = vmatpush1.msra.mxu0 0.0
        %3677 = vmatprep.subr.mxu0 0.0
        %3678 = vmatpush1.msra.mxu0 0.0
        %3679 = vmatprep.subr.mxu0 0.0
        %3680 = vmatpush1.msra.mxu0 0.0
        %3681 = vmatprep.subr.mxu0 0.0
        %3682 = vmatpush1.msra.mxu0 0.0
        %3683 = vmatprep.mubr.f32.mxu0 0.0
        %v3684 = vand.u32 %v3533, 4294901760
        %3685 = vmatmul.mubr.f32.gmra.mrb[0].mxu0 %v3684
        %v3686 = vpop.f32.mrb[0].mxu0
        %v3687 = vadd.f32 %v3611, %v3686
        %v3688 = vpop.f32.mrb[0].mxu0
        %3689 = vdwg.mxu0
        %3690 = vmatprep.subr.mxu0 0.0
        %v3691 = vand.u32 %v3536, 4294901760
        %v3692 = vsub.f32 %v3536, %v3691
        %3693 = vmatpush1.msra.mxu0 %v3692
        %3694 = vmatprep.subr.mxu0 0.0
        %3695 = vmatpush1.msra.mxu0 0.0
        %3696 = vmatprep.subr.mxu0 0.0
        %3697 = vmatpush1.msra.mxu0 0.0
        %3698 = vmatprep.subr.mxu0 0.0
        %3699 = vmatpush1.msra.mxu0 0.0
        %3700 = vmatprep.subr.mxu0 0.0
        %3701 = vmatpush1.msra.mxu0 0.0
        %3702 = vmatprep.subr.mxu0 0.0
        %3703 = vmatpush1.msra.mxu0 0.0
        %3704 = vmatprep.subr.mxu0 0.0
        %3705 = vmatpush1.msra.mxu0 0.0
        %3706 = vmatprep.subr.mxu0 0.0
        %3707 = vmatpush1.msra.mxu0 0.0
        %3708 = vmatprep.subr.mxu0 0.0
        %3709 = vmatpush1.msra.mxu0 0.0
        %3710 = vmatprep.subr.mxu0 0.0
        %3711 = vmatpush1.msra.mxu0 0.0
        %3712 = vmatprep.subr.mxu0 0.0
        %3713 = vmatpush1.msra.mxu0 0.0
        %3714 = vmatprep.subr.mxu0 0.0
        %3715 = vmatpush1.msra.mxu0 0.0
        %3716 = vmatprep.subr.mxu0 0.0
        %3717 = vmatpush1.msra.mxu0 0.0
        %3718 = vmatprep.subr.mxu0 0.0
        %3719 = vmatpush1.msra.mxu0 0.0
        %3720 = vmatprep.subr.mxu0 0.0
        %3721 = vmatpush1.msra.mxu0 0.0
        %3722 = vmatprep.subr.mxu0 0.0
        %3723 = vmatpush1.msra.mxu0 0.0
        %3724 = vmatprep.subr.mxu0 0.0
        %3725 = vmatpush1.msra.mxu0 0.0
        %3726 = vmatprep.subr.mxu0 0.0
        %3727 = vmatpush1.msra.mxu0 0.0
        %3728 = vmatprep.subr.mxu0 0.0
        %3729 = vmatpush1.msra.mxu0 0.0
        %3730 = vmatprep.subr.mxu0 0.0
        %3731 = vmatpush1.msra.mxu0 0.0
        %3732 = vmatprep.subr.mxu0 0.0
        %3733 = vmatpush1.msra.mxu0 0.0
        %3734 = vmatprep.subr.mxu0 0.0
        %3735 = vmatpush1.msra.mxu0 0.0
        %3736 = vmatprep.subr.mxu0 0.0
        %3737 = vmatpush1.msra.mxu0 0.0
        %3738 = vmatprep.subr.mxu0 0.0
        %3739 = vmatpush1.msra.mxu0 0.0
        %3740 = vmatprep.subr.mxu0 0.0
        %3741 = vmatpush1.msra.mxu0 0.0
        %3742 = vmatprep.subr.mxu0 0.0
        %3743 = vmatpush1.msra.mxu0 0.0
        %3744 = vmatprep.subr.mxu0 0.0
        %3745 = vmatpush1.msra.mxu0 0.0
        %3746 = vmatprep.subr.mxu0 0.0
        %3747 = vmatpush1.msra.mxu0 0.0
        %3748 = vmatprep.subr.mxu0 0.0
        %3749 = vmatpush1.msra.mxu0 0.0
        %3750 = vmatprep.subr.mxu0 0.0
        %3751 = vmatpush1.msra.mxu0 0.0
        %3752 = vmatprep.subr.mxu0 0.0
        %3753 = vmatpush1.msra.mxu0 0.0
        %3754 = vmatprep.subr.mxu0 0.0
        %3755 = vmatpush1.msra.mxu0 0.0
        %3756 = vmatprep.mubr.f32.mxu0 0.0
        %v3757 = vand.u32 %v3533, 4294901760
        %v3758 = vsub.f32 %v3533, %v3757
        %3759 = vmatmul.mubr.f32.gmra.mrb[0].mxu0 %v3758
        %v3760 = vpop.f32.mrb[0].mxu0
        %v3761 = vadd.f32 %v3687, %v3760
        %v3762 = vpop.f32.mrb[0].mxu0
        %3763 = vdwg.mxu0
        %3764 = vmatprep.subr.mxu0 0.0
        %v3765 = vand.u32 %v3536, 4294901760
        %3766 = vmatpush1.msra.mxu0 %v3765
        %3767 = vmatprep.subr.mxu0 0.0
        %3768 = vmatpush1.msra.mxu0 0.0
        %3769 = vmatprep.subr.mxu0 0.0
        %3770 = vmatpush1.msra.mxu0 0.0
        %3771 = vmatprep.subr.mxu0 0.0
        %3772 = vmatpush1.msra.mxu0 0.0
        %3773 = vmatprep.subr.mxu0 0.0
        %3774 = vmatpush1.msra.mxu0 0.0
        %3775 = vmatprep.subr.mxu0 0.0
        %3776 = vmatpush1.msra.mxu0 0.0
        %3777 = vmatprep.subr.mxu0 0.0
        %3778 = vmatpush1.msra.mxu0 0.0
        %3779 = vmatprep.subr.mxu0 0.0
        %3780 = vmatpush1.msra.mxu0 0.0
        %3781 = vmatprep.subr.mxu0 0.0
        %3782 = vmatpush1.msra.mxu0 0.0
        %3783 = vmatprep.subr.mxu0 0.0
        %3784 = vmatpush1.msra.mxu0 0.0
        %3785 = vmatprep.subr.mxu0 0.0
        %3786 = vmatpush1.msra.mxu0 0.0
        %3787 = vmatprep.subr.mxu0 0.0
        %3788 = vmatpush1.msra.mxu0 0.0
        %3789 = vmatprep.subr.mxu0 0.0
        %3790 = vmatpush1.msra.mxu0 0.0
        %3791 = vmatprep.subr.mxu0 0.0
        %3792 = vmatpush1.msra.mxu0 0.0
        %3793 = vmatprep.subr.mxu0 0.0
        %3794 = vmatpush1.msra.mxu0 0.0
        %3795 = vmatprep.subr.mxu0 0.0
        %3796 = vmatpush1.msra.mxu0 0.0
        %3797 = vmatprep.subr.mxu0 0.0
        %3798 = vmatpush1.msra.mxu0 0.0
        %3799 = vmatprep.subr.mxu0 0.0
        %3800 = vmatpush1.msra.mxu0 0.0
        %3801 = vmatprep.subr.mxu0 0.0
        %3802 = vmatpush1.msra.mxu0 0.0
        %3803 = vmatprep.subr.mxu0 0.0
        %3804 = vmatpush1.msra.mxu0 0.0
        %3805 = vmatprep.subr.mxu0 0.0
        %3806 = vmatpush1.msra.mxu0 0.0
        %3807 = vmatprep.subr.mxu0 0.0
        %3808 = vmatpush1.msra.mxu0 0.0
        %3809 = vmatprep.subr.mxu0 0.0
        %3810 = vmatpush1.msra.mxu0 0.0
        %3811 = vmatprep.subr.mxu0 0.0
        %3812 = vmatpush1.msra.mxu0 0.0
        %3813 = vmatprep.subr.mxu0 0.0
        %3814 = vmatpush1.msra.mxu0 0.0
        %3815 = vmatprep.subr.mxu0 0.0
        %3816 = vmatpush1.msra.mxu0 0.0
        %3817 = vmatprep.subr.mxu0 0.0
        %3818 = vmatpush1.msra.mxu0 0.0
        %3819 = vmatprep.subr.mxu0 0.0
        %3820 = vmatpush1.msra.mxu0 0.0
        %3821 = vmatprep.subr.mxu0 0.0
        %3822 = vmatpush1.msra.mxu0 0.0
        %3823 = vmatprep.subr.mxu0 0.0
        %3824 = vmatpush1.msra.mxu0 0.0
        %3825 = vmatprep.subr.mxu0 0.0
        %3826 = vmatpush1.msra.mxu0 0.0
        %3827 = vmatprep.subr.mxu0 0.0
        %3828 = vmatpush1.msra.mxu0 0.0
        %3829 = vmatprep.mubr.f32.mxu0 0.0
        %v3830 = vand.u32 %v3533, 4294901760
        %v3831 = vsub.f32 %v3533, %v3830
        %v3832 = vand.u32 %v3831, 4294901760
        %3833 = vmatmul.mubr.f32.gmra.mrb[0].mxu0 %v3832
        %v3834 = vpop.f32.mrb[0].mxu0
        %v3835 = vadd.f32 %v3761, %v3834
        %v3836 = vpop.f32.mrb[0].mxu0
        %3837 = vdwg.mxu0
        %3838 = vmatprep.subr.mxu0 0.0
        %v3839 = vand.u32 %v3536, 4294901760
        %v3840 = vsub.f32 %v3536, %v3839
        %v3841 = vand.u32 %v3840, 4294901760
        %3842 = vmatpush1.msra.mxu0 %v3841
        %3843 = vmatprep.subr.mxu0 0.0
        %3844 = vmatpush1.msra.mxu0 0.0
        %3845 = vmatprep.subr.mxu0 0.0
        %3846 = vmatpush1.msra.mxu0 0.0
        %3847 = vmatprep.subr.mxu0 0.0
        %3848 = vmatpush1.msra.mxu0 0.0
        %3849 = vmatprep.subr.mxu0 0.0
        %3850 = vmatpush1.msra.mxu0 0.0
        %3851 = vmatprep.subr.mxu0 0.0
        %3852 = vmatpush1.msra.mxu0 0.0
        %3853 = vmatprep.subr.mxu0 0.0
        %3854 = vmatpush1.msra.mxu0 0.0
        %3855 = vmatprep.subr.mxu0 0.0
        %3856 = vmatpush1.msra.mxu0 0.0
        %3857 = vmatprep.subr.mxu0 0.0
        %3858 = vmatpush1.msra.mxu0 0.0
        %3859 = vmatprep.subr.mxu0 0.0
        %3860 = vmatpush1.msra.mxu0 0.0
        %3861 = vmatprep.subr.mxu0 0.0
        %3862 = vmatpush1.msra.mxu0 0.0
        %3863 = vmatprep.subr.mxu0 0.0
        %3864 = vmatpush1.msra.mxu0 0.0
        %3865 = vmatprep.subr.mxu0 0.0
        %3866 = vmatpush1.msra.mxu0 0.0
        %3867 = vmatprep.subr.mxu0 0.0
        %3868 = vmatpush1.msra.mxu0 0.0
        %3869 = vmatprep.subr.mxu0 0.0
        %3870 = vmatpush1.msra.mxu0 0.0
        %3871 = vmatprep.subr.mxu0 0.0
        %3872 = vmatpush1.msra.mxu0 0.0
        %3873 = vmatprep.subr.mxu0 0.0
        %3874 = vmatpush1.msra.mxu0 0.0
        %3875 = vmatprep.subr.mxu0 0.0
        %3876 = vmatpush1.msra.mxu0 0.0
        %3877 = vmatprep.subr.mxu0 0.0
        %3878 = vmatpush1.msra.mxu0 0.0
        %3879 = vmatprep.subr.mxu0 0.0
        %3880 = vmatpush1.msra.mxu0 0.0
        %3881 = vmatprep.subr.mxu0 0.0
        %3882 = vmatpush1.msra.mxu0 0.0
        %3883 = vmatprep.subr.mxu0 0.0
        %3884 = vmatpush1.msra.mxu0 0.0
        %3885 = vmatprep.subr.mxu0 0.0
        %3886 = vmatpush1.msra.mxu0 0.0
        %3887 = vmatprep.subr.mxu0 0.0
        %3888 = vmatpush1.msra.mxu0 0.0
        %3889 = vmatprep.subr.mxu0 0.0
        %3890 = vmatpush1.msra.mxu0 0.0
        %3891 = vmatprep.subr.mxu0 0.0
        %3892 = vmatpush1.msra.mxu0 0.0
        %3893 = vmatprep.subr.mxu0 0.0
        %3894 = vmatpush1.msra.mxu0 0.0
        %3895 = vmatprep.subr.mxu0 0.0
        %3896 = vmatpush1.msra.mxu0 0.0
        %3897 = vmatprep.subr.mxu0 0.0
        %3898 = vmatpush1.msra.mxu0 0.0
        %3899 = vmatprep.subr.mxu0 0.0
        %3900 = vmatpush1.msra.mxu0 0.0
        %3901 = vmatprep.subr.mxu0 0.0
        %3902 = vmatpush1.msra.mxu0 0.0
        %3903 = vmatprep.subr.mxu0 0.0
        %3904 = vmatpush1.msra.mxu0 0.0
        %3905 = vmatprep.mubr.f32.mxu0 0.0
        %v3906 = vand.u32 %v3533, 4294901760
        %3907 = vmatmul.mubr.f32.gmra.mrb[0].mxu0 %v3906
        %v3908 = vpop.f32.mrb[0].mxu0
        %v3909 = vadd.f32 %v3835, %v3908
        %v3910 = vpop.f32.mrb[0].mxu0
        %3911 = vdwg.mxu0
        %3912 = vmatprep.subr.mxu0 0.0
        %v3913 = vand.u32 %v3536, 4294901760
        %3914 = vmatpush1.msra.mxu0 %v3913
        %3915 = vmatprep.subr.mxu0 0.0
        %3916 = vmatpush1.msra.mxu0 0.0
        %3917 = vmatprep.subr.mxu0 0.0
        %3918 = vmatpush1.msra.mxu0 0.0
        %3919 = vmatprep.subr.mxu0 0.0
        %3920 = vmatpush1.msra.mxu0 0.0
        %3921 = vmatprep.subr.mxu0 0.0
        %3922 = vmatpush1.msra.mxu0 0.0
        %3923 = vmatprep.subr.mxu0 0.0
        %3924 = vmatpush1.msra.mxu0 0.0
        %3925 = vmatprep.subr.mxu0 0.0
        %3926 = vmatpush1.msra.mxu0 0.0
        %3927 = vmatprep.subr.mxu0 0.0
        %3928 = vmatpush1.msra.mxu0 0.0
        %3929 = vmatprep.subr.mxu0 0.0
        %3930 = vmatpush1.msra.mxu0 0.0
        %3931 = vmatprep.subr.mxu0 0.0
        %3932 = vmatpush1.msra.mxu0 0.0
        %3933 = vmatprep.subr.mxu0 0.0
        %3934 = vmatpush1.msra.mxu0 0.0
        %3935 = vmatprep.subr.mxu0 0.0
        %3936 = vmatpush1.msra.mxu0 0.0
        %3937 = vmatprep.subr.mxu0 0.0
        %3938 = vmatpush1.msra.mxu0 0.0
        %3939 = vmatprep.subr.mxu0 0.0
        %3940 = vmatpush1.msra.mxu0 0.0
        %3941 = vmatprep.subr.mxu0 0.0
        %3942 = vmatpush1.msra.mxu0 0.0
        %3943 = vmatprep.subr.mxu0 0.0
        %3944 = vmatpush1.msra.mxu0 0.0
        %3945 = vmatprep.subr.mxu0 0.0
        %3946 = vmatpush1.msra.mxu0 0.0
        %3947 = vmatprep.subr.mxu0 0.0
        %3948 = vmatpush1.msra.mxu0 0.0
        %3949 = vmatprep.subr.mxu0 0.0
        %3950 = vmatpush1.msra.mxu0 0.0
        %3951 = vmatprep.subr.mxu0 0.0
        %3952 = vmatpush1.msra.mxu0 0.0
        %3953 = vmatprep.subr.mxu0 0.0
        %3954 = vmatpush1.msra.mxu0 0.0
        %3955 = vmatprep.subr.mxu0 0.0
        %3956 = vmatpush1.msra.mxu0 0.0
        %3957 = vmatprep.subr.mxu0 0.0
        %3958 = vmatpush1.msra.mxu0 0.0
        %3959 = vmatprep.subr.mxu0 0.0
        %3960 = vmatpush1.msra.mxu0 0.0
        %3961 = vmatprep.subr.mxu0 0.0
        %3962 = vmatpush1.msra.mxu0 0.0
        %3963 = vmatprep.subr.mxu0 0.0
        %3964 = vmatpush1.msra.mxu0 0.0
        %3965 = vmatprep.subr.mxu0 0.0
        %3966 = vmatpush1.msra.mxu0 0.0
        %3967 = vmatprep.subr.mxu0 0.0
        %3968 = vmatpush1.msra.mxu0 0.0
        %3969 = vmatprep.subr.mxu0 0.0
        %3970 = vmatpush1.msra.mxu0 0.0
        %3971 = vmatprep.subr.mxu0 0.0
        %3972 = vmatpush1.msra.mxu0 0.0
        %3973 = vmatprep.subr.mxu0 0.0
        %3974 = vmatpush1.msra.mxu0 0.0
        %3975 = vmatprep.subr.mxu0 0.0
        %3976 = vmatpush1.msra.mxu0 0.0
        %3977 = vmatprep.mubr.f32.mxu0 0.0
        %v3978 = vand.u32 %v3533, 4294901760
        %3979 = vmatmul.mubr.f32.gmra.mrb[0].mxu0 %v3978
        %v3980 = vpop.f32.mrb[0].mxu0
        %v3981 = vadd.f32 %v3909, %v3980
        %v3982 = vpop.f32.mrb[0].mxu0
        %3983 = vdwg.mxu0
        %v3984 = vmul.f32 %v3981, 0.0009765625
        %3986 = vset.pattern.permute.xlu0 0
        %3987 = vperm.xlu0 %3986, %v3984
        %v3988 = vpop.permute.xlu0 %3987
        %v3990 = vsub.f32 %v3522, %v3988
        %v3991 = vsub.f32 %v3523, %v3988
        %v3992 = vmul.f32 %v3990, %v3990
        %v3993 = vmul.f32 %v3991, %v3991
        %v3994 = vsel %vm1800, %v3992, 0.0
        %v3995 = vsel %vm1800, %v3993, 0.0
        %v3996 = vadd.f32 %v3994, %v3995
        %3997 = vadd.xlane.f32.xlu0 %v3996
        %v3998 = vpop.xlane.xlu0 %3997
        %v4000 = vsel %vm1800, %v3998, 0
        %4002 = vmatprep.subr.mxu0 0.0
        %v4003 = vand.u32 %v4000, 4294901760
        %4004 = vmatpush1.msra.mxu0 %v4003
        %4005 = vmatprep.subr.mxu0 0.0
        %4006 = vmatpush1.msra.mxu0 0.0
        %4007 = vmatprep.subr.mxu0 0.0
        %4008 = vmatpush1.msra.mxu0 0.0
        %4009 = vmatprep.subr.mxu0 0.0
        %4010 = vmatpush1.msra.mxu0 0.0
        %4011 = vmatprep.subr.mxu0 0.0
        %4012 = vmatpush1.msra.mxu0 0.0
        %4013 = vmatprep.subr.mxu0 0.0
        %4014 = vmatpush1.msra.mxu0 0.0
        %4015 = vmatprep.subr.mxu0 0.0
        %4016 = vmatpush1.msra.mxu0 0.0
        %4017 = vmatprep.subr.mxu0 0.0
        %4018 = vmatpush1.msra.mxu0 0.0
        %4019 = vmatprep.subr.mxu0 0.0
        %4020 = vmatpush1.msra.mxu0 0.0
        %4021 = vmatprep.subr.mxu0 0.0
        %4022 = vmatpush1.msra.mxu0 0.0
        %4023 = vmatprep.subr.mxu0 0.0
        %4024 = vmatpush1.msra.mxu0 0.0
        %4025 = vmatprep.subr.mxu0 0.0
        %4026 = vmatpush1.msra.mxu0 0.0
        %4027 = vmatprep.subr.mxu0 0.0
        %4028 = vmatpush1.msra.mxu0 0.0
        %4029 = vmatprep.subr.mxu0 0.0
        %4030 = vmatpush1.msra.mxu0 0.0
        %4031 = vmatprep.subr.mxu0 0.0
        %4032 = vmatpush1.msra.mxu0 0.0
        %4033 = vmatprep.subr.mxu0 0.0
        %4034 = vmatpush1.msra.mxu0 0.0
        %4035 = vmatprep.subr.mxu0 0.0
        %4036 = vmatpush1.msra.mxu0 0.0
        %4037 = vmatprep.subr.mxu0 0.0
        %4038 = vmatpush1.msra.mxu0 0.0
        %4039 = vmatprep.subr.mxu0 0.0
        %4040 = vmatpush1.msra.mxu0 0.0
        %4041 = vmatprep.subr.mxu0 0.0
        %4042 = vmatpush1.msra.mxu0 0.0
        %4043 = vmatprep.subr.mxu0 0.0
        %4044 = vmatpush1.msra.mxu0 0.0
        %4045 = vmatprep.subr.mxu0 0.0
        %4046 = vmatpush1.msra.mxu0 0.0
        %4047 = vmatprep.subr.mxu0 0.0
        %4048 = vmatpush1.msra.mxu0 0.0
        %4049 = vmatprep.subr.mxu0 0.0
        %4050 = vmatpush1.msra.mxu0 0.0
        %4051 = vmatprep.subr.mxu0 0.0
        %4052 = vmatpush1.msra.mxu0 0.0
        %4053 = vmatprep.subr.mxu0 0.0
        %4054 = vmatpush1.msra.mxu0 0.0
        %4055 = vmatprep.subr.mxu0 0.0
        %4056 = vmatpush1.msra.mxu0 0.0
        %4057 = vmatprep.subr.mxu0 0.0
        %4058 = vmatpush1.msra.mxu0 0.0
        %4059 = vmatprep.subr.mxu0 0.0
        %4060 = vmatpush1.msra.mxu0 0.0
        %4061 = vmatprep.subr.mxu0 0.0
        %4062 = vmatpush1.msra.mxu0 0.0
        %4063 = vmatprep.subr.mxu0 0.0
        %4064 = vmatpush1.msra.mxu0 0.0
        %4065 = vmatprep.subr.mxu0 0.0
        %4066 = vmatpush1.msra.mxu0 0.0
        %4067 = vmatprep.mubr.f32.mxu0 0.0
        %v4068 = vand.u32 %v3533, 4294901760
        %v4069 = vsub.f32 %v3533, %v4068
        %v4070 = vand.u32 %v4069, 4294901760
        %v4071 = vsub.f32 %v4069, %v4070
        %v4072 = vand.u32 %v4071, 4294901760
        %4073 = vmatmul.mubr.f32.gmra.mrb[0].mxu0 %v4072
        %v4074 = vpop.f32.mrb[0].mxu0
        %v4075 = vadd.f32 0.0, %v4074
        %v4076 = vpop.f32.mrb[0].mxu0
        %4077 = vdwg.mxu0
        %4078 = vmatprep.subr.mxu0 0.0
        %v4079 = vand.u32 %v4000, 4294901760
        %v4080 = vsub.f32 %v4000, %v4079
        %v4081 = vand.u32 %v4080, 4294901760
        %v4082 = vsub.f32 %v4080, %v4081
        %v4083 = vand.u32 %v4082, 4294901760
        %4084 = vmatpush1.msra.mxu0 %v4083
        %4085 = vmatprep.subr.mxu0 0.0
        %4086 = vmatpush1.msra.mxu0 0.0
        %4087 = vmatprep.subr.mxu0 0.0
        %4088 = vmatpush1.msra.mxu0 0.0
        %4089 = vmatprep.subr.mxu0 0.0
        %4090 = vmatpush1.msra.mxu0 0.0
        %4091 = vmatprep.subr.mxu0 0.0
        %4092 = vmatpush1.msra.mxu0 0.0
        %4093 = vmatprep.subr.mxu0 0.0
        %4094 = vmatpush1.msra.mxu0 0.0
        %4095 = vmatprep.subr.mxu0 0.0
        %4096 = vmatpush1.msra.mxu0 0.0
        %4097 = vmatprep.subr.mxu0 0.0
        %4098 = vmatpush1.msra.mxu0 0.0
        %4099 = vmatprep.subr.mxu0 0.0
        %4100 = vmatpush1.msra.mxu0 0.0
        %4101 = vmatprep.subr.mxu0 0.0
        %4102 = vmatpush1.msra.mxu0 0.0
        %4103 = vmatprep.subr.mxu0 0.0
        %4104 = vmatpush1.msra.mxu0 0.0
        %4105 = vmatprep.subr.mxu0 0.0
        %4106 = vmatpush1.msra.mxu0 0.0
        %4107 = vmatprep.subr.mxu0 0.0
        %4108 = vmatpush1.msra.mxu0 0.0
        %4109 = vmatprep.subr.mxu0 0.0
        %4110 = vmatpush1.msra.mxu0 0.0
        %4111 = vmatprep.subr.mxu0 0.0
        %4112 = vmatpush1.msra.mxu0 0.0
        %4113 = vmatprep.subr.mxu0 0.0
        %4114 = vmatpush1.msra.mxu0 0.0
        %4115 = vmatprep.subr.mxu0 0.0
        %4116 = vmatpush1.msra.mxu0 0.0
        %4117 = vmatprep.subr.mxu0 0.0
        %4118 = vmatpush1.msra.mxu0 0.0
        %4119 = vmatprep.subr.mxu0 0.0
        %4120 = vmatpush1.msra.mxu0 0.0
        %4121 = vmatprep.subr.mxu0 0.0
        %4122 = vmatpush1.msra.mxu0 0.0
        %4123 = vmatprep.subr.mxu0 0.0
        %4124 = vmatpush1.msra.mxu0 0.0
        %4125 = vmatprep.subr.mxu0 0.0
        %4126 = vmatpush1.msra.mxu0 0.0
        %4127 = vmatprep.subr.mxu0 0.0
        %4128 = vmatpush1.msra.mxu0 0.0
        %4129 = vmatprep.subr.mxu0 0.0
        %4130 = vmatpush1.msra.mxu0 0.0
        %4131 = vmatprep.subr.mxu0 0.0
        %4132 = vmatpush1.msra.mxu0 0.0
        %4133 = vmatprep.subr.mxu0 0.0
        %4134 = vmatpush1.msra.mxu0 0.0
        %4135 = vmatprep.subr.mxu0 0.0
        %4136 = vmatpush1.msra.mxu0 0.0
        %4137 = vmatprep.subr.mxu0 0.0
        %4138 = vmatpush1.msra.mxu0 0.0
        %4139 = vmatprep.subr.mxu0 0.0
        %4140 = vmatpush1.msra.mxu0 0.0
        %4141 = vmatprep.subr.mxu0 0.0
        %4142 = vmatpush1.msra.mxu0 0.0
        %4143 = vmatprep.subr.mxu0 0.0
        %4144 = vmatpush1.msra.mxu0 0.0
        %4145 = vmatprep.subr.mxu0 0.0
        %4146 = vmatpush1.msra.mxu0 0.0
        %4147 = vmatprep.mubr.f32.mxu0 0.0
        %v4148 = vand.u32 %v3533, 4294901760
        %4149 = vmatmul.mubr.f32.gmra.mrb[0].mxu0 %v4148
        %v4150 = vpop.f32.mrb[0].mxu0
        %v4151 = vadd.f32 %v4075, %v4150
        %v4152 = vpop.f32.mrb[0].mxu0
        %4153 = vdwg.mxu0
        %4154 = vmatprep.subr.mxu0 0.0
        %v4155 = vand.u32 %v4000, 4294901760
        %v4156 = vsub.f32 %v4000, %v4155
        %4157 = vmatpush1.msra.mxu0 %v4156
        %4158 = vmatprep.subr.mxu0 0.0
        %4159 = vmatpush1.msra.mxu0 0.0
        %4160 = vmatprep.subr.mxu0 0.0
        %4161 = vmatpush1.msra.mxu0 0.0
        %4162 = vmatprep.subr.mxu0 0.0
        %4163 = vmatpush1.msra.mxu0 0.0
        %4164 = vmatprep.subr.mxu0 0.0
        %4165 = vmatpush1.msra.mxu0 0.0
        %4166 = vmatprep.subr.mxu0 0.0
        %4167 = vmatpush1.msra.mxu0 0.0
        %4168 = vmatprep.subr.mxu0 0.0
        %4169 = vmatpush1.msra.mxu0 0.0
        %4170 = vmatprep.subr.mxu0 0.0
        %4171 = vmatpush1.msra.mxu0 0.0
        %4172 = vmatprep.subr.mxu0 0.0
        %4173 = vmatpush1.msra.mxu0 0.0
        %4174 = vmatprep.subr.mxu0 0.0
        %4175 = vmatpush1.msra.mxu0 0.0
        %4176 = vmatprep.subr.mxu0 0.0
        %4177 = vmatpush1.msra.mxu0 0.0
        %4178 = vmatprep.subr.mxu0 0.0
        %4179 = vmatpush1.msra.mxu0 0.0
        %4180 = vmatprep.subr.mxu0 0.0
        %4181 = vmatpush1.msra.mxu0 0.0
        %4182 = vmatprep.subr.mxu0 0.0
        %4183 = vmatpush1.msra.mxu0 0.0
        %4184 = vmatprep.subr.mxu0 0.0
        %4185 = vmatpush1.msra.mxu0 0.0
        %4186 = vmatprep.subr.mxu0 0.0
        %4187 = vmatpush1.msra.mxu0 0.0
        %4188 = vmatprep.subr.mxu0 0.0
        %4189 = vmatpush1.msra.mxu0 0.0
        %4190 = vmatprep.subr.mxu0 0.0
        %4191 = vmatpush1.msra.mxu0 0.0
        %4192 = vmatprep.subr.mxu0 0.0
        %4193 = vmatpush1.msra.mxu0 0.0
        %4194 = vmatprep.subr.mxu0 0.0
        %4195 = vmatpush1.msra.mxu0 0.0
        %4196 = vmatprep.subr.mxu0 0.0
        %4197 = vmatpush1.msra.mxu0 0.0
        %4198 = vmatprep.subr.mxu0 0.0
        %4199 = vmatpush1.msra.mxu0 0.0
        %4200 = vmatprep.subr.mxu0 0.0
        %4201 = vmatpush1.msra.mxu0 0.0
        %4202 = vmatprep.subr.mxu0 0.0
        %4203 = vmatpush1.msra.mxu0 0.0
        %4204 = vmatprep.subr.mxu0 0.0
        %4205 = vmatpush1.msra.mxu0 0.0
        %4206 = vmatprep.subr.mxu0 0.0
        %4207 = vmatpush1.msra.mxu0 0.0
        %4208 = vmatprep.subr.mxu0 0.0
        %4209 = vmatpush1.msra.mxu0 0.0
        %4210 = vmatprep.subr.mxu0 0.0
        %4211 = vmatpush1.msra.mxu0 0.0
        %4212 = vmatprep.subr.mxu0 0.0
        %4213 = vmatpush1.msra.mxu0 0.0
        %4214 = vmatprep.subr.mxu0 0.0
        %4215 = vmatpush1.msra.mxu0 0.0
        %4216 = vmatprep.subr.mxu0 0.0
        %4217 = vmatpush1.msra.mxu0 0.0
        %4218 = vmatprep.subr.mxu0 0.0
        %4219 = vmatpush1.msra.mxu0 0.0
        %4220 = vmatprep.mubr.f32.mxu0 0.0
        %v4221 = vand.u32 %v3533, 4294901760
        %v4222 = vsub.f32 %v3533, %v4221
        %4223 = vmatmul.mubr.f32.gmra.mrb[0].mxu0 %v4222
        %v4224 = vpop.f32.mrb[0].mxu0
        %v4225 = vadd.f32 %v4151, %v4224
        %v4226 = vpop.f32.mrb[0].mxu0
        %4227 = vdwg.mxu0
        %4228 = vmatprep.subr.mxu0 0.0
        %v4229 = vand.u32 %v4000, 4294901760
        %4230 = vmatpush1.msra.mxu0 %v4229
        %4231 = vmatprep.subr.mxu0 0.0
        %4232 = vmatpush1.msra.mxu0 0.0
        %4233 = vmatprep.subr.mxu0 0.0
        %4234 = vmatpush1.msra.mxu0 0.0
        %4235 = vmatprep.subr.mxu0 0.0
        %4236 = vmatpush1.msra.mxu0 0.0
        %4237 = vmatprep.subr.mxu0 0.0
        %4238 = vmatpush1.msra.mxu0 0.0
        %4239 = vmatprep.subr.mxu0 0.0
        %4240 = vmatpush1.msra.mxu0 0.0
        %4241 = vmatprep.subr.mxu0 0.0
        %4242 = vmatpush1.msra.mxu0 0.0
        %4243 = vmatprep.subr.mxu0 0.0
        %4244 = vmatpush1.msra.mxu0 0.0
        %4245 = vmatprep.subr.mxu0 0.0
        %4246 = vmatpush1.msra.mxu0 0.0
        %4247 = vmatprep.subr.mxu0 0.0
        %4248 = vmatpush1.msra.mxu0 0.0
        %4249 = vmatprep.subr.mxu0 0.0
        %4250 = vmatpush1.msra.mxu0 0.0
        %4251 = vmatprep.subr.mxu0 0.0
        %4252 = vmatpush1.msra.mxu0 0.0
        %4253 = vmatprep.subr.mxu0 0.0
        %4254 = vmatpush1.msra.mxu0 0.0
        %4255 = vmatprep.subr.mxu0 0.0
        %4256 = vmatpush1.msra.mxu0 0.0
        %4257 = vmatprep.subr.mxu0 0.0
        %4258 = vmatpush1.msra.mxu0 0.0
        %4259 = vmatprep.subr.mxu0 0.0
        %4260 = vmatpush1.msra.mxu0 0.0
        %4261 = vmatprep.subr.mxu0 0.0
        %4262 = vmatpush1.msra.mxu0 0.0
        %4263 = vmatprep.subr.mxu0 0.0
        %4264 = vmatpush1.msra.mxu0 0.0
        %4265 = vmatprep.subr.mxu0 0.0
        %4266 = vmatpush1.msra.mxu0 0.0
        %4267 = vmatprep.subr.mxu0 0.0
        %4268 = vmatpush1.msra.mxu0 0.0
        %4269 = vmatprep.subr.mxu0 0.0
        %4270 = vmatpush1.msra.mxu0 0.0
        %4271 = vmatprep.subr.mxu0 0.0
        %4272 = vmatpush1.msra.mxu0 0.0
        %4273 = vmatprep.subr.mxu0 0.0
        %4274 = vmatpush1.msra.mxu0 0.0
        %4275 = vmatprep.subr.mxu0 0.0
        %4276 = vmatpush1.msra.mxu0 0.0
        %4277 = vmatprep.subr.mxu0 0.0
        %4278 = vmatpush1.msra.mxu0 0.0
        %4279 = vmatprep.subr.mxu0 0.0
        %4280 = vmatpush1.msra.mxu0 0.0
        %4281 = vmatprep.subr.mxu0 0.0
        %4282 = vmatpush1.msra.mxu0 0.0
        %4283 = vmatprep.subr.mxu0 0.0
        %4284 = vmatpush1.msra.mxu0 0.0
        %4285 = vmatprep.subr.mxu0 0.0
        %4286 = vmatpush1.msra.mxu0 0.0
        %4287 = vmatprep.subr.mxu0 0.0
        %4288 = vmatpush1.msra.mxu0 0.0
        %4289 = vmatprep.subr.mxu0 0.0
        %4290 = vmatpush1.msra.mxu0 0.0
        %4291 = vmatprep.subr.mxu0 0.0
        %4292 = vmatpush1.msra.mxu0 0.0
        %4293 = vmatprep.mubr.f32.mxu0 0.0
        %v4294 = vand.u32 %v3533, 4294901760
        %v4295 = vsub.f32 %v3533, %v4294
        %v4296 = vand.u32 %v4295, 4294901760
        %4297 = vmatmul.mubr.f32.gmra.mrb[0].mxu0 %v4296
        %v4298 = vpop.f32.mrb[0].mxu0
        %v4299 = vadd.f32 %v4225, %v4298
        %v4300 = vpop.f32.mrb[0].mxu0
        %4301 = vdwg.mxu0
        %4302 = vmatprep.subr.mxu0 0.0
        %v4303 = vand.u32 %v4000, 4294901760
        %v4304 = vsub.f32 %v4000, %v4303
        %v4305 = vand.u32 %v4304, 4294901760
        %4306 = vmatpush1.msra.mxu0 %v4305
        %4307 = vmatprep.subr.mxu0 0.0
        %4308 = vmatpush1.msra.mxu0 0.0
        %4309 = vmatprep.subr.mxu0 0.0
        %4310 = vmatpush1.msra.mxu0 0.0
        %4311 = vmatprep.subr.mxu0 0.0
        %4312 = vmatpush1.msra.mxu0 0.0
        %4313 = vmatprep.subr.mxu0 0.0
        %4314 = vmatpush1.msra.mxu0 0.0
        %4315 = vmatprep.subr.mxu0 0.0
        %4316 = vmatpush1.msra.mxu0 0.0
        %4317 = vmatprep.subr.mxu0 0.0
        %4318 = vmatpush1.msra.mxu0 0.0
        %4319 = vmatprep.subr.mxu0 0.0
        %4320 = vmatpush1.msra.mxu0 0.0
        %4321 = vmatprep.subr.mxu0 0.0
        %4322 = vmatpush1.msra.mxu0 0.0
        %4323 = vmatprep.subr.mxu0 0.0
        %4324 = vmatpush1.msra.mxu0 0.0
        %4325 = vmatprep.subr.mxu0 0.0
        %4326 = vmatpush1.msra.mxu0 0.0
        %4327 = vmatprep.subr.mxu0 0.0
        %4328 = vmatpush1.msra.mxu0 0.0
        %4329 = vmatprep.subr.mxu0 0.0
        %4330 = vmatpush1.msra.mxu0 0.0
        %4331 = vmatprep.subr.mxu0 0.0
        %4332 = vmatpush1.msra.mxu0 0.0
        %4333 = vmatprep.subr.mxu0 0.0
        %4334 = vmatpush1.msra.mxu0 0.0
        %4335 = vmatprep.subr.mxu0 0.0
        %4336 = vmatpush1.msra.mxu0 0.0
        %4337 = vmatprep.subr.mxu0 0.0
        %4338 = vmatpush1.msra.mxu0 0.0
        %4339 = vmatprep.subr.mxu0 0.0
        %4340 = vmatpush1.msra.mxu0 0.0
        %4341 = vmatprep.subr.mxu0 0.0
        %4342 = vmatpush1.msra.mxu0 0.0
        %4343 = vmatprep.subr.mxu0 0.0
        %4344 = vmatpush1.msra.mxu0 0.0
        %4345 = vmatprep.subr.mxu0 0.0
        %4346 = vmatpush1.msra.mxu0 0.0
        %4347 = vmatprep.subr.mxu0 0.0
        %4348 = vmatpush1.msra.mxu0 0.0
        %4349 = vmatprep.subr.mxu0 0.0
        %4350 = vmatpush1.msra.mxu0 0.0
        %4351 = vmatprep.subr.mxu0 0.0
        %4352 = vmatpush1.msra.mxu0 0.0
        %4353 = vmatprep.subr.mxu0 0.0
        %4354 = vmatpush1.msra.mxu0 0.0
        %4355 = vmatprep.subr.mxu0 0.0
        %4356 = vmatpush1.msra.mxu0 0.0
        %4357 = vmatprep.subr.mxu0 0.0
        %4358 = vmatpush1.msra.mxu0 0.0
        %4359 = vmatprep.subr.mxu0 0.0
        %4360 = vmatpush1.msra.mxu0 0.0
        %4361 = vmatprep.subr.mxu0 0.0
        %4362 = vmatpush1.msra.mxu0 0.0
        %4363 = vmatprep.subr.mxu0 0.0
        %4364 = vmatpush1.msra.mxu0 0.0
        %4365 = vmatprep.subr.mxu0 0.0
        %4366 = vmatpush1.msra.mxu0 0.0
        %4367 = vmatprep.subr.mxu0 0.0
        %4368 = vmatpush1.msra.mxu0 0.0
        %4369 = vmatprep.mubr.f32.mxu0 0.0
        %v4370 = vand.u32 %v3533, 4294901760
        %4371 = vmatmul.mubr.f32.gmra.mrb[0].mxu0 %v4370
        %v4372 = vpop.f32.mrb[0].mxu0
        %v4373 = vadd.f32 %v4299, %v4372
        %v4374 = vpop.f32.mrb[0].mxu0
        %4375 = vdwg.mxu0
        %4376 = vmatprep.subr.mxu0 0.0
        %v4377 = vand.u32 %v4000, 4294901760
        %4378 = vmatpush1.msra.mxu0 %v4377
        %4379 = vmatprep.subr.mxu0 0.0
        %4380 = vmatpush1.msra.mxu0 0.0
        %4381 = vmatprep.subr.mxu0 0.0
        %4382 = vmatpush1.msra.mxu0 0.0
        %4383 = vmatprep.subr.mxu0 0.0
        %4384 = vmatpush1.msra.mxu0 0.0
        %4385 = vmatprep.subr.mxu0 0.0
        %4386 = vmatpush1.msra.mxu0 0.0
        %4387 = vmatprep.subr.mxu0 0.0
        %4388 = vmatpush1.msra.mxu0 0.0
        %4389 = vmatprep.subr.mxu0 0.0
        %4390 = vmatpush1.msra.mxu0 0.0
        %4391 = vmatprep.subr.mxu0 0.0
        %4392 = vmatpush1.msra.mxu0 0.0
        %4393 = vmatprep.subr.mxu0 0.0
        %4394 = vmatpush1.msra.mxu0 0.0
        %4395 = vmatprep.subr.mxu0 0.0
        %4396 = vmatpush1.msra.mxu0 0.0
        %4397 = vmatprep.subr.mxu0 0.0
        %4398 = vmatpush1.msra.mxu0 0.0
        %4399 = vmatprep.subr.mxu0 0.0
        %4400 = vmatpush1.msra.mxu0 0.0
        %4401 = vmatprep.subr.mxu0 0.0
        %4402 = vmatpush1.msra.mxu0 0.0
        %4403 = vmatprep.subr.mxu0 0.0
        %4404 = vmatpush1.msra.mxu0 0.0
        %4405 = vmatprep.subr.mxu0 0.0
        %4406 = vmatpush1.msra.mxu0 0.0
        %4407 = vmatprep.subr.mxu0 0.0
        %4408 = vmatpush1.msra.mxu0 0.0
        %4409 = vmatprep.subr.mxu0 0.0
        %4410 = vmatpush1.msra.mxu0 0.0
        %4411 = vmatprep.subr.mxu0 0.0
        %4412 = vmatpush1.msra.mxu0 0.0
        %4413 = vmatprep.subr.mxu0 0.0
        %4414 = vmatpush1.msra.mxu0 0.0
        %4415 = vmatprep.subr.mxu0 0.0
        %4416 = vmatpush1.msra.mxu0 0.0
        %4417 = vmatprep.subr.mxu0 0.0
        %4418 = vmatpush1.msra.mxu0 0.0
        %4419 = vmatprep.subr.mxu0 0.0
        %4420 = vmatpush1.msra.mxu0 0.0
        %4421 = vmatprep.subr.mxu0 0.0
        %4422 = vmatpush1.msra.mxu0 0.0
        %4423 = vmatprep.subr.mxu0 0.0
        %4424 = vmatpush1.msra.mxu0 0.0
        %4425 = vmatprep.subr.mxu0 0.0
        %4426 = vmatpush1.msra.mxu0 0.0
        %4427 = vmatprep.subr.mxu0 0.0
        %4428 = vmatpush1.msra.mxu0 0.0
        %4429 = vmatprep.subr.mxu0 0.0
        %4430 = vmatpush1.msra.mxu0 0.0
        %4431 = vmatprep.subr.mxu0 0.0
        %4432 = vmatpush1.msra.mxu0 0.0
        %4433 = vmatprep.subr.mxu0 0.0
        %4434 = vmatpush1.msra.mxu0 0.0
        %4435 = vmatprep.subr.mxu0 0.0
        %4436 = vmatpush1.msra.mxu0 0.0
        %4437 = vmatprep.subr.mxu0 0.0
        %4438 = vmatpush1.msra.mxu0 0.0
        %4439 = vmatprep.subr.mxu0 0.0
        %4440 = vmatpush1.msra.mxu0 0.0
        %4441 = vmatprep.mubr.f32.mxu0 0.0
        %v4442 = vand.u32 %v3533, 4294901760
        %4443 = vmatmul.mubr.f32.gmra.mrb[0].mxu0 %v4442
        %v4444 = vpop.f32.mrb[0].mxu0
        %v4445 = vadd.f32 %v4373, %v4444
        %v4446 = vpop.f32.mrb[0].mxu0
        %4447 = vdwg.mxu0
        %v4448 = vmul.f32 %v4445, 0.0009765625
        %v4449 = vadd.f32 %v4448, 1e-05
        %v4450 = vrsqrt.pop %v4449
        %4452 = vset.pattern.permute.xlu0 0
        %4453 = vperm.xlu0 %4452, %v4450
        %v4454 = vpop.permute.xlu0 %4453
        %v4456 = vmul.f32 %v3990, %v4454
        %v4457 = vmul.f32 %v3991, %v4454
        %4459 = vset.pattern.permute.xlu0 0
        %4460 = vperm.xlu0 %4459, %v3524
        %v4461 = vpop.permute.xlu0 %4460
        %v4463 = vmul.f32 %v4456, %v4461
        %v4464 = vmul.f32 %v4457, %v4461
        %4466 = vset.pattern.permute.xlu0 0
        %4467 = vperm.xlu0 %4466, %v3525
        %v4468 = vpop.permute.xlu0 %4467
        %v4470 = vadd.f32 %v4463, %v4468
        %v4471 = vadd.f32 %v4464, %v4468
        %v4472 = vsub.f32 0.0, %v4470
        %v4473 = vsub.f32 0.0, %v4471
        %v4474 = vmul.f32 %v4472, 1.442695
        %v4475 = vpow.pop %v4474
        %v4476 = vmul.f32 %v4473, 1.442695
        %v4477 = vpow.pop %v4476
        %v4478 = vadd.f32 %v4475, 1.0
        %v4479 = vadd.f32 %v4477, 1.0
        %v4480 = vrcp.pop %v4478
        %v4481 = vmul.f32 1.0, %v4480
        %v4482 = vrcp.pop %v4479
        %v4483 = vmul.f32 1.0, %v4482
        %v4484 = vmul.f32 %v4470, %v4481
        %v4485 = vmul.f32 %v4471, %v4483
        %v4486 = vld [vmem:[%s13] sm:$0xf]
        %4487 = vst.msk [vmem:[#allocation2] sm:$0x3] %vm1015, 0
        %4488 = vst.msk [vmem:[#allocation2 + $0x4] sm:$0x3] %vm1017, 0
        %v4489 = vpack.c.bf16 %v4484, %v4484
        %v4490 = vpack.c.bf16 %v4485, %v4485
        %v4493 = vcombine.low %v4489, %v4490
        %v4495 = vunpack.c.l.s4 1983009808
        %v4496 = vunpack.c.0.s8 %v4495
        %v4497 = vlaneseq
        %v4498 = vshrl.u32 %v4497, 7
        %v4499 = vsub.s32 %v4496, %v4498
        %v4500 = vrot.slane %v4493, %v4499
        %4501 = vrot.lane.b32.xlu0 %v4500, 17
        %v4502 = vpop.permute.xlu0 %4501
        %v4503 = vrot.slane %v4502, 6
        %v4504 = vsel %vm1037, %v4503, %v4502
        %4506 = vst.msk [vmem:[#allocation2] sm:$0x3f] %vm1044, %v4504
        %v4507 = vld [vmem:[#allocation2] sm:$0xf]
        %v4508 = vld [vmem:[%s12] sm:$0x3]
        %v4511 = vunpack.c.l.s4 1983009808
        %v4512 = vunpack.c.0.s8 %v4511
        %v4513 = vlaneseq
        %v4514 = vshrl.u32 %v4513, 7
        %v4515 = vsub.s32 %v4512, %v4514
        %v4516 = vrot.slane %v4507, %v4515
        %v4517 = vcombine.high %v4516, %v4516
        %v4519 = vsel %vm1057, %v4508, 0
        %v4522 = vsel %vm1061, %v4516, 0
        %v4525 = vsel %vm1061, %v4517, 0
        %4527 = vmatprep.subr.bf16.mxu0 %v4525
        %4528 = vmatpush1.bf16.msra.mxu0 %v4522
        %4529 = vmatprep.subr.bf16.mxu0 0
        %4530 = vmatpush1.bf16.msra.mxu0 0
        %4531 = vmatprep.subr.bf16.mxu0 0
        %4532 = vmatpush1.bf16.msra.mxu0 0
        %4533 = vmatprep.subr.bf16.mxu0 0
        %4534 = vmatpush1.bf16.msra.mxu0 0
        %4535 = vmatprep.subr.bf16.mxu0 0
        %4536 = vmatpush1.bf16.msra.mxu0 0
        %4537 = vmatprep.subr.bf16.mxu0 0
        %4538 = vmatpush1.bf16.msra.mxu0 0
        %4539 = vmatprep.subr.bf16.mxu0 0
        %4540 = vmatpush1.bf16.msra.mxu0 0
        %4541 = vmatprep.subr.bf16.mxu0 0
        %4542 = vmatpush1.bf16.msra.mxu0 0
        %4543 = vmatprep.subr.bf16.mxu0 0
        %4544 = vmatpush1.bf16.msra.mxu0 0
        %4545 = vmatprep.subr.bf16.mxu0 0
        %4546 = vmatpush1.bf16.msra.mxu0 0
        %4547 = vmatprep.subr.bf16.mxu0 0
        %4548 = vmatpush1.bf16.msra.mxu0 0
        %4549 = vmatprep.subr.bf16.mxu0 0
        %4550 = vmatpush1.bf16.msra.mxu0 0
        %4551 = vmatprep.subr.bf16.mxu0 0
        %4552 = vmatpush1.bf16.msra.mxu0 0
        %4553 = vmatprep.subr.bf16.mxu0 0
        %4554 = vmatpush1.bf16.msra.mxu0 0
        %4555 = vmatprep.subr.bf16.mxu0 0
        %4556 = vmatpush1.bf16.msra.mxu0 0
        %4557 = vmatprep.subr.bf16.mxu0 0
        %4558 = vmatpush1.bf16.msra.mxu0 0
        %4559 = vmatprep.mubr.bf16.mxu0 0
        %4560 = vmatmul.mubr.bf16.gmra.mrb[0].mxu0 %v4519
        %v4561 = vpop.f32.mrb[0].mxu0
        %v4562 = vadd.f32 0.0, %v4561
        %v4563 = vpop.f32.mrb[0].mxu0
        %v4564 = vadd.f32 0.0, %v4563
        %v4565 = vpop.f32.mrb[0].mxu0
        %v4566 = vpop.f32.mrb[0].mxu0
        %4567 = vdwg.mxu0
        %v4568 = vmul.f32 %v4562, %v1113
        %v4569 = vmul.f32 %v4564, %v1117
        %v4570 = vld [vmem:[#allocation2] sm:$0x3f]
        %s4571 = scalar_lea.vmem %s12, 2
        %v4572 = vld [vmem:[%s4571] sm:$0x3]
        %v4574 = vcombine.high %v4570, %v4570
        %v4576 = vunpack.c.l.s4 1983009808
        %v4577 = vunpack.c.0.s8 %v4576
        %v4578 = vlaneseq
        %v4579 = vshrl.u32 %v4578, 7
        %v4580 = vsub.s32 %v4577, %v4579
        %v4581 = vrot.slane %v4570, %v4580
        %v4583 = vunpack.c.l.s4 1983009808
        %v4584 = vunpack.c.0.s8 %v4583
        %v4585 = vlaneseq
        %v4586 = vshrl.u32 %v4585, 7
        %v4587 = vsub.s32 %v4584, %v4586
        %v4588 = vrot.slane %v4574, %v4587
        %v4589 = vcombine.high %v4581, %v4581
        %4590 = vrot.lane.b32.xlu0 %v4581, 127
        %v4591 = vpop.permute.xlu0 %4590
        %4592 = vrot.lane.b32.xlu0 %v4589, 127
        %v4593 = vpop.permute.xlu0 %4592
        %4594 = vrot.lane.b32.xlu0 %v4588, 127
        %v4595 = vpop.permute.xlu0 %4594
        %v4596 = vsel %vm1148, %v4591, %v4593
        %v4597 = vsel %vm1148, %v4593, %v4595
        %v4599 = vsel %vm1057, %v4572, 0
        %v4602 = vsel %vm1061, %v4596, 0
        %v4605 = vsel %vm1061, %v4597, 0
        %4607 = vmatprep.subr.bf16.mxu0 %v4605
        %4608 = vmatpush1.bf16.msra.mxu0 %v4602
        %4609 = vmatprep.subr.bf16.mxu0 0
        %4610 = vmatpush1.bf16.msra.mxu0 0
        %4611 = vmatprep.subr.bf16.mxu0 0
        %4612 = vmatpush1.bf16.msra.mxu0 0
        %4613 = vmatprep.subr.bf16.mxu0 0
        %4614 = vmatpush1.bf16.msra.mxu0 0
        %4615 = vmatprep.subr.bf16.mxu0 0
        %4616 = vmatpush1.bf16.msra.mxu0 0
        %4617 = vmatprep.subr.bf16.mxu0 0
        %4618 = vmatpush1.bf16.msra.mxu0 0
        %4619 = vmatprep.subr.bf16.mxu0 0
        %4620 = vmatpush1.bf16.msra.mxu0 0
        %4621 = vmatprep.subr.bf16.mxu0 0
        %4622 = vmatpush1.bf16.msra.mxu0 0
        %4623 = vmatprep.subr.bf16.mxu0 0
        %4624 = vmatpush1.bf16.msra.mxu0 0
        %4625 = vmatprep.subr.bf16.mxu0 0
        %4626 = vmatpush1.bf16.msra.mxu0 0
        %4627 = vmatprep.subr.bf16.mxu0 0
        %4628 = vmatpush1.bf16.msra.mxu0 0
        %4629 = vmatprep.subr.bf16.mxu0 0
        %4630 = vmatpush1.bf16.msra.mxu0 0
        %4631 = vmatprep.subr.bf16.mxu0 0
        %4632 = vmatpush1.bf16.msra.mxu0 0
        %4633 = vmatprep.subr.bf16.mxu0 0
        %4634 = vmatpush1.bf16.msra.mxu0 0
        %4635 = vmatprep.subr.bf16.mxu0 0
        %4636 = vmatpush1.bf16.msra.mxu0 0
        %4637 = vmatprep.subr.bf16.mxu0 0
        %4638 = vmatpush1.bf16.msra.mxu0 0
        %4639 = vmatprep.mubr.bf16.mxu0 0
        %4640 = vmatmul.mubr.bf16.gmra.mrb[0].mxu0 %v4599
        %v4641 = vpop.f32.mrb[0].mxu0
        %v4642 = vadd.f32 0.0, %v4641
        %v4643 = vpop.f32.mrb[0].mxu0
        %v4644 = vadd.f32 0.0, %v4643
        %v4645 = vpop.f32.mrb[0].mxu0
        %v4646 = vpop.f32.mrb[0].mxu0
        %4647 = vdwg.mxu0
        %v4648 = vadd.f32 %v4568, %v4642
        %v4649 = vadd.f32 %v4569, %v4644
        %v4650 = vld [vmem:[#allocation2] sm:$0x3f]
        %s4651 = scalar_lea.vmem %s12, 4
        %v4652 = vld [vmem:[%s4651] sm:$0x3]
        %v4654 = vcombine.high %v4650, %v4650
        %v4656 = vunpack.c.l.s4 1983009808
        %v4657 = vunpack.c.0.s8 %v4656
        %v4658 = vlaneseq
        %v4659 = vshrl.u32 %v4658, 7
        %v4660 = vsub.s32 %v4657, %v4659
        %v4661 = vrot.slane %v4650, %v4660
        %v4663 = vunpack.c.l.s4 1983009808
        %v4664 = vunpack.c.0.s8 %v4663
        %v4665 = vlaneseq
        %v4666 = vshrl.u32 %v4665, 7
        %v4667 = vsub.s32 %v4664, %v4666
        %v4668 = vrot.slane %v4654, %v4667
        %v4669 = vcombine.high %v4661, %v4661
        %4670 = vrot.lane.b32.xlu0 %v4661, 126
        %v4671 = vpop.permute.xlu0 %4670
        %4672 = vrot.lane.b32.xlu0 %v4669, 126
        %v4673 = vpop.permute.xlu0 %4672
        %4674 = vrot.lane.b32.xlu0 %v4668, 126
        %v4675 = vpop.permute.xlu0 %4674
        %v4676 = vsel %vm1229, %v4671, %v4673
        %v4677 = vsel %vm1229, %v4673, %v4675
        %v4679 = vsel %vm1057, %v4652, 0
        %v4682 = vsel %vm1061, %v4676, 0
        %v4685 = vsel %vm1061, %v4677, 0
        %4687 = vmatprep.subr.bf16.mxu0 %v4685
        %4688 = vmatpush1.bf16.msra.mxu0 %v4682
        %4689 = vmatprep.subr.bf16.mxu0 0
        %4690 = vmatpush1.bf16.msra.mxu0 0
        %4691 = vmatprep.subr.bf16.mxu0 0
        %4692 = vmatpush1.bf16.msra.mxu0 0
        %4693 = vmatprep.subr.bf16.mxu0 0
        %4694 = vmatpush1.bf16.msra.mxu0 0
        %4695 = vmatprep.subr.bf16.mxu0 0
        %4696 = vmatpush1.bf16.msra.mxu0 0
        %4697 = vmatprep.subr.bf16.mxu0 0
        %4698 = vmatpush1.bf16.msra.mxu0 0
        %4699 = vmatprep.subr.bf16.mxu0 0
        %4700 = vmatpush1.bf16.msra.mxu0 0
        %4701 = vmatprep.subr.bf16.mxu0 0
        %4702 = vmatpush1.bf16.msra.mxu0 0
        %4703 = vmatprep.subr.bf16.mxu0 0
        %4704 = vmatpush1.bf16.msra.mxu0 0
        %4705 = vmatprep.subr.bf16.mxu0 0
        %4706 = vmatpush1.bf16.msra.mxu0 0
        %4707 = vmatprep.subr.bf16.mxu0 0
        %4708 = vmatpush1.bf16.msra.mxu0 0
        %4709 = vmatprep.subr.bf16.mxu0 0
        %4710 = vmatpush1.bf16.msra.mxu0 0
        %4711 = vmatprep.subr.bf16.mxu0 0
        %4712 = vmatpush1.bf16.msra.mxu0 0
        %4713 = vmatprep.subr.bf16.mxu0 0
        %4714 = vmatpush1.bf16.msra.mxu0 0
        %4715 = vmatprep.subr.bf16.mxu0 0
        %4716 = vmatpush1.bf16.msra.mxu0 0
        %4717 = vmatprep.subr.bf16.mxu0 0
        %4718 = vmatpush1.bf16.msra.mxu0 0
        %4719 = vmatprep.mubr.bf16.mxu0 0
        %4720 = vmatmul.mubr.bf16.gmra.mrb[0].mxu0 %v4679
        %v4721 = vpop.f32.mrb[0].mxu0
        %v4722 = vadd.f32 0.0, %v4721
        %v4723 = vpop.f32.mrb[0].mxu0
        %v4724 = vadd.f32 0.0, %v4723
        %v4725 = vpop.f32.mrb[0].mxu0
        %v4726 = vpop.f32.mrb[0].mxu0
        %4727 = vdwg.mxu0
        %v4728 = vmul.f32 %v4722, %v1286
        %v4729 = vmul.f32 %v4724, %v1290
        %v4730 = vadd.f32 %v4648, %v4728
        %v4731 = vadd.f32 %v4649, %v4729
        %v4732 = vld [vmem:[#allocation2] sm:$0x3f]
        %s4733 = scalar_lea.vmem %s12, 6
        %v4734 = vld [vmem:[%s4733] sm:$0x3]
        %v4736 = vcombine.high %v4732, %v4732
        %v4738 = vunpack.c.l.s4 1983009808
        %v4739 = vunpack.c.0.s8 %v4738
        %v4740 = vlaneseq
        %v4741 = vshrl.u32 %v4740, 7
        %v4742 = vsub.s32 %v4739, %v4741
        %v4743 = vrot.slane %v4732, %v4742
        %v4745 = vunpack.c.l.s4 1983009808
        %v4746 = vunpack.c.0.s8 %v4745
        %v4747 = vlaneseq
        %v4748 = vshrl.u32 %v4747, 7
        %v4749 = vsub.s32 %v4746, %v4748
        %v4750 = vrot.slane %v4736, %v4749
        %v4751 = vcombine.high %v4743, %v4743
        %4752 = vrot.lane.b32.xlu0 %v4743, 112
        %v4753 = vpop.permute.xlu0 %4752
        %4754 = vrot.lane.b32.xlu0 %v4751, 112
        %v4755 = vpop.permute.xlu0 %4754
        %4756 = vrot.lane.b32.xlu0 %v4750, 112
        %v4757 = vpop.permute.xlu0 %4756
        %v4758 = vsel %vm1323, %v4753, %v4755
        %v4759 = vsel %vm1323, %v4755, %v4757
        %v4761 = vsel %vm1057, %v4734, 0
        %v4764 = vsel %vm1061, %v4758, 0
        %v4767 = vsel %vm1061, %v4759, 0
        %4769 = vmatprep.subr.bf16.mxu0 %v4767
        %4770 = vmatpush1.bf16.msra.mxu0 %v4764
        %4771 = vmatprep.subr.bf16.mxu0 0
        %4772 = vmatpush1.bf16.msra.mxu0 0
        %4773 = vmatprep.subr.bf16.mxu0 0
        %4774 = vmatpush1.bf16.msra.mxu0 0
        %4775 = vmatprep.subr.bf16.mxu0 0
        %4776 = vmatpush1.bf16.msra.mxu0 0
        %4777 = vmatprep.subr.bf16.mxu0 0
        %4778 = vmatpush1.bf16.msra.mxu0 0
        %4779 = vmatprep.subr.bf16.mxu0 0
        %4780 = vmatpush1.bf16.msra.mxu0 0
        %4781 = vmatprep.subr.bf16.mxu0 0
        %4782 = vmatpush1.bf16.msra.mxu0 0
        %4783 = vmatprep.subr.bf16.mxu0 0
        %4784 = vmatpush1.bf16.msra.mxu0 0
        %4785 = vmatprep.subr.bf16.mxu0 0
        %4786 = vmatpush1.bf16.msra.mxu0 0
        %4787 = vmatprep.subr.bf16.mxu0 0
        %4788 = vmatpush1.bf16.msra.mxu0 0
        %4789 = vmatprep.subr.bf16.mxu0 0
        %4790 = vmatpush1.bf16.msra.mxu0 0
        %4791 = vmatprep.subr.bf16.mxu0 0
        %4792 = vmatpush1.bf16.msra.mxu0 0
        %4793 = vmatprep.subr.bf16.mxu0 0
        %4794 = vmatpush1.bf16.msra.mxu0 0
        %4795 = vmatprep.subr.bf16.mxu0 0
        %4796 = vmatpush1.bf16.msra.mxu0 0
        %4797 = vmatprep.subr.bf16.mxu0 0
        %4798 = vmatpush1.bf16.msra.mxu0 0
        %4799 = vmatprep.subr.bf16.mxu0 0
        %4800 = vmatpush1.bf16.msra.mxu0 0
        %4801 = vmatprep.mubr.bf16.mxu0 0
        %4802 = vmatmul.mubr.bf16.gmra.mrb[0].mxu0 %v4761
        %v4803 = vpop.f32.mrb[0].mxu0
        %v4804 = vadd.f32 0.0, %v4803
        %v4805 = vpop.f32.mrb[0].mxu0
        %v4806 = vadd.f32 0.0, %v4805
        %v4807 = vpop.f32.mrb[0].mxu0
        %v4808 = vpop.f32.mrb[0].mxu0
        %4809 = vdwg.mxu0
        %v4810 = vmul.f32 %v4804, %v1113
        %v4811 = vmul.f32 %v4806, %v1117
        %v4812 = vadd.f32 %v4730, %v4810
        %v4813 = vadd.f32 %v4731, %v4811
        %v4814 = vld [vmem:[#allocation2] sm:$0x3f]
        %s4815 = scalar_lea.vmem %s12, 8
        %v4816 = vld [vmem:[%s4815] sm:$0x3]
        %v4818 = vcombine.high %v4814, %v4814
        %v4820 = vunpack.c.l.s4 1983009808
        %v4821 = vunpack.c.0.s8 %v4820
        %v4822 = vlaneseq
        %v4823 = vshrl.u32 %v4822, 7
        %v4824 = vsub.s32 %v4821, %v4823
        %v4825 = vrot.slane %v4814, %v4824
        %v4827 = vunpack.c.l.s4 1983009808
        %v4828 = vunpack.c.0.s8 %v4827
        %v4829 = vlaneseq
        %v4830 = vshrl.u32 %v4829, 7
        %v4831 = vsub.s32 %v4828, %v4830
        %v4832 = vrot.slane %v4818, %v4831
        %v4833 = vcombine.high %v4825, %v4825
        %4834 = vrot.lane.b32.xlu0 %v4825, 111
        %v4835 = vpop.permute.xlu0 %4834
        %4836 = vrot.lane.b32.xlu0 %v4833, 111
        %v4837 = vpop.permute.xlu0 %4836
        %4838 = vrot.lane.b32.xlu0 %v4832, 111
        %v4839 = vpop.permute.xlu0 %4838
        %v4840 = vsel %vm1406, %v4835, %v4837
        %v4841 = vsel %vm1406, %v4837, %v4839
        %v4843 = vsel %vm1057, %v4816, 0
        %v4846 = vsel %vm1061, %v4840, 0
        %v4849 = vsel %vm1061, %v4841, 0
        %4851 = vmatprep.subr.bf16.mxu0 %v4849
        %4852 = vmatpush1.bf16.msra.mxu0 %v4846
        %4853 = vmatprep.subr.bf16.mxu0 0
        %4854 = vmatpush1.bf16.msra.mxu0 0
        %4855 = vmatprep.subr.bf16.mxu0 0
        %4856 = vmatpush1.bf16.msra.mxu0 0
        %4857 = vmatprep.subr.bf16.mxu0 0
        %4858 = vmatpush1.bf16.msra.mxu0 0
        %4859 = vmatprep.subr.bf16.mxu0 0
        %4860 = vmatpush1.bf16.msra.mxu0 0
        %4861 = vmatprep.subr.bf16.mxu0 0
        %4862 = vmatpush1.bf16.msra.mxu0 0
        %4863 = vmatprep.subr.bf16.mxu0 0
        %4864 = vmatpush1.bf16.msra.mxu0 0
        %4865 = vmatprep.subr.bf16.mxu0 0
        %4866 = vmatpush1.bf16.msra.mxu0 0
        %4867 = vmatprep.subr.bf16.mxu0 0
        %4868 = vmatpush1.bf16.msra.mxu0 0
        %4869 = vmatprep.subr.bf16.mxu0 0
        %4870 = vmatpush1.bf16.msra.mxu0 0
        %4871 = vmatprep.subr.bf16.mxu0 0
        %4872 = vmatpush1.bf16.msra.mxu0 0
        %4873 = vmatprep.subr.bf16.mxu0 0
        %4874 = vmatpush1.bf16.msra.mxu0 0
        %4875 = vmatprep.subr.bf16.mxu0 0
        %4876 = vmatpush1.bf16.msra.mxu0 0
        %4877 = vmatprep.subr.bf16.mxu0 0
        %4878 = vmatpush1.bf16.msra.mxu0 0
        %4879 = vmatprep.subr.bf16.mxu0 0
        %4880 = vmatpush1.bf16.msra.mxu0 0
        %4881 = vmatprep.subr.bf16.mxu0 0
        %4882 = vmatpush1.bf16.msra.mxu0 0
        %4883 = vmatprep.mubr.bf16.mxu0 0
        %4884 = vmatmul.mubr.bf16.gmra.mrb[0].mxu0 %v4843
        %v4885 = vpop.f32.mrb[0].mxu0
        %v4886 = vadd.f32 0.0, %v4885
        %v4887 = vpop.f32.mrb[0].mxu0
        %v4888 = vadd.f32 0.0, %v4887
        %v4889 = vpop.f32.mrb[0].mxu0
        %v4890 = vpop.f32.mrb[0].mxu0
        %4891 = vdwg.mxu0
        %v4892 = vadd.f32 %v4812, %v4886
        %v4893 = vadd.f32 %v4813, %v4888
        %v4894 = vld [vmem:[#allocation2] sm:$0x3f]
        %s4895 = scalar_lea.vmem %s12, 10
        %v4896 = vld [vmem:[%s4895] sm:$0x3]
        %v4898 = vcombine.high %v4894, %v4894
        %v4900 = vunpack.c.l.s4 1983009808
        %v4901 = vunpack.c.0.s8 %v4900
        %v4902 = vlaneseq
        %v4903 = vshrl.u32 %v4902, 7
        %v4904 = vsub.s32 %v4901, %v4903
        %v4905 = vrot.slane %v4894, %v4904
        %v4907 = vunpack.c.l.s4 1983009808
        %v4908 = vunpack.c.0.s8 %v4907
        %v4909 = vlaneseq
        %v4910 = vshrl.u32 %v4909, 7
        %v4911 = vsub.s32 %v4908, %v4910
        %v4912 = vrot.slane %v4898, %v4911
        %v4913 = vcombine.high %v4905, %v4905
        %4914 = vrot.lane.b32.xlu0 %v4905, 110
        %v4915 = vpop.permute.xlu0 %4914
        %4916 = vrot.lane.b32.xlu0 %v4913, 110
        %v4917 = vpop.permute.xlu0 %4916
        %4918 = vrot.lane.b32.xlu0 %v4912, 110
        %v4919 = vpop.permute.xlu0 %4918
        %v4920 = vsel %vm1487, %v4915, %v4917
        %v4921 = vsel %vm1487, %v4917, %v4919
        %v4923 = vsel %vm1057, %v4896, 0
        %v4926 = vsel %vm1061, %v4920, 0
        %v4929 = vsel %vm1061, %v4921, 0
        %4931 = vmatprep.subr.bf16.mxu0 %v4929
        %4932 = vmatpush1.bf16.msra.mxu0 %v4926
        %4933 = vmatprep.subr.bf16.mxu0 0
        %4934 = vmatpush1.bf16.msra.mxu0 0
        %4935 = vmatprep.subr.bf16.mxu0 0
        %4936 = vmatpush1.bf16.msra.mxu0 0
        %4937 = vmatprep.subr.bf16.mxu0 0
        %4938 = vmatpush1.bf16.msra.mxu0 0
        %4939 = vmatprep.subr.bf16.mxu0 0
        %4940 = vmatpush1.bf16.msra.mxu0 0
        %4941 = vmatprep.subr.bf16.mxu0 0
        %4942 = vmatpush1.bf16.msra.mxu0 0
        %4943 = vmatprep.subr.bf16.mxu0 0
        %4944 = vmatpush1.bf16.msra.mxu0 0
        %4945 = vmatprep.subr.bf16.mxu0 0
        %4946 = vmatpush1.bf16.msra.mxu0 0
        %4947 = vmatprep.subr.bf16.mxu0 0
        %4948 = vmatpush1.bf16.msra.mxu0 0
        %4949 = vmatprep.subr.bf16.mxu0 0
        %4950 = vmatpush1.bf16.msra.mxu0 0
        %4951 = vmatprep.subr.bf16.mxu0 0
        %4952 = vmatpush1.bf16.msra.mxu0 0
        %4953 = vmatprep.subr.bf16.mxu0 0
        %4954 = vmatpush1.bf16.msra.mxu0 0
        %4955 = vmatprep.subr.bf16.mxu0 0
        %4956 = vmatpush1.bf16.msra.mxu0 0
        %4957 = vmatprep.subr.bf16.mxu0 0
        %4958 = vmatpush1.bf16.msra.mxu0 0
        %4959 = vmatprep.subr.bf16.mxu0 0
        %4960 = vmatpush1.bf16.msra.mxu0 0
        %4961 = vmatprep.subr.bf16.mxu0 0
        %4962 = vmatpush1.bf16.msra.mxu0 0
        %4963 = vmatprep.mubr.bf16.mxu0 0
        %4964 = vmatmul.mubr.bf16.gmra.mrb[0].mxu0 %v4923
        %v4965 = vpop.f32.mrb[0].mxu0
        %v4966 = vadd.f32 0.0, %v4965
        %v4967 = vpop.f32.mrb[0].mxu0
        %v4968 = vadd.f32 0.0, %v4967
        %v4969 = vpop.f32.mrb[0].mxu0
        %v4970 = vpop.f32.mrb[0].mxu0
        %4971 = vdwg.mxu0
        %v4972 = vmul.f32 %v4966, %v1286
        %v4973 = vmul.f32 %v4968, %v1290
        %v4974 = vadd.f32 %v4892, %v4972
        %v4975 = vadd.f32 %v4893, %v4973
        %v4976 = vld [vmem:[#allocation2] sm:$0x3f]
        %s4977 = scalar_lea.vmem %s12, 12
        %v4978 = vld [vmem:[%s4977] sm:$0x3]
        %v4980 = vcombine.high %v4976, %v4976
        %v4982 = vunpack.c.l.s4 1983009808
        %v4983 = vunpack.c.0.s8 %v4982
        %v4984 = vlaneseq
        %v4985 = vshrl.u32 %v4984, 7
        %v4986 = vsub.s32 %v4983, %v4985
        %v4987 = vrot.slane %v4976, %v4986
        %v4989 = vunpack.c.l.s4 1983009808
        %v4990 = vunpack.c.0.s8 %v4989
        %v4991 = vlaneseq
        %v4992 = vshrl.u32 %v4991, 7
        %v4993 = vsub.s32 %v4990, %v4992
        %v4994 = vrot.slane %v4980, %v4993
        %v4995 = vcombine.high %v4987, %v4987
        %4996 = vrot.lane.b32.xlu0 %v4987, 96
        %v4997 = vpop.permute.xlu0 %4996
        %4998 = vrot.lane.b32.xlu0 %v4995, 96
        %v4999 = vpop.permute.xlu0 %4998
        %5000 = vrot.lane.b32.xlu0 %v4994, 96
        %v5001 = vpop.permute.xlu0 %5000
        %v5002 = vsel %vm1570, %v4997, %v4999
        %v5003 = vsel %vm1570, %v4999, %v5001
        %v5005 = vsel %vm1057, %v4978, 0
        %v5008 = vsel %vm1061, %v5002, 0
        %v5011 = vsel %vm1061, %v5003, 0
        %5013 = vmatprep.subr.bf16.mxu0 %v5011
        %5014 = vmatpush1.bf16.msra.mxu0 %v5008
        %5015 = vmatprep.subr.bf16.mxu0 0
        %5016 = vmatpush1.bf16.msra.mxu0 0
        %5017 = vmatprep.subr.bf16.mxu0 0
        %5018 = vmatpush1.bf16.msra.mxu0 0
        %5019 = vmatprep.subr.bf16.mxu0 0
        %5020 = vmatpush1.bf16.msra.mxu0 0
        %5021 = vmatprep.subr.bf16.mxu0 0
        %5022 = vmatpush1.bf16.msra.mxu0 0
        %5023 = vmatprep.subr.bf16.mxu0 0
        %5024 = vmatpush1.bf16.msra.mxu0 0
        %5025 = vmatprep.subr.bf16.mxu0 0
        %5026 = vmatpush1.bf16.msra.mxu0 0
        %5027 = vmatprep.subr.bf16.mxu0 0
        %5028 = vmatpush1.bf16.msra.mxu0 0
        %5029 = vmatprep.subr.bf16.mxu0 0
        %5030 = vmatpush1.bf16.msra.mxu0 0
        %5031 = vmatprep.subr.bf16.mxu0 0
        %5032 = vmatpush1.bf16.msra.mxu0 0
        %5033 = vmatprep.subr.bf16.mxu0 0
        %5034 = vmatpush1.bf16.msra.mxu0 0
        %5035 = vmatprep.subr.bf16.mxu0 0
        %5036 = vmatpush1.bf16.msra.mxu0 0
        %5037 = vmatprep.subr.bf16.mxu0 0
        %5038 = vmatpush1.bf16.msra.mxu0 0
        %5039 = vmatprep.subr.bf16.mxu0 0
        %5040 = vmatpush1.bf16.msra.mxu0 0
        %5041 = vmatprep.subr.bf16.mxu0 0
        %5042 = vmatpush1.bf16.msra.mxu0 0
        %5043 = vmatprep.subr.bf16.mxu0 0
        %5044 = vmatpush1.bf16.msra.mxu0 0
        %5045 = vmatprep.mubr.bf16.mxu0 0
        %5046 = vmatmul.mubr.bf16.gmra.mrb[0].mxu0 %v5005
        %v5047 = vpop.f32.mrb[0].mxu0
        %v5048 = vadd.f32 0.0, %v5047
        %v5049 = vpop.f32.mrb[0].mxu0
        %v5050 = vadd.f32 0.0, %v5049
        %v5051 = vpop.f32.mrb[0].mxu0
        %v5052 = vpop.f32.mrb[0].mxu0
        %5053 = vdwg.mxu0
        %v5054 = vmul.f32 %v5048, %v1113
        %v5055 = vmul.f32 %v5050, %v1117
        %v5056 = vadd.f32 %v4974, %v5054
        %v5057 = vadd.f32 %v4975, %v5055
        %v5058 = vld [vmem:[#allocation2] sm:$0x3f]
        %s5059 = scalar_lea.vmem %s12, 14
        %v5060 = vld [vmem:[%s5059] sm:$0x3]
        %v5062 = vcombine.high %v5058, %v5058
        %v5064 = vunpack.c.l.s4 1983009808
        %v5065 = vunpack.c.0.s8 %v5064
        %v5066 = vlaneseq
        %v5067 = vshrl.u32 %v5066, 7
        %v5068 = vsub.s32 %v5065, %v5067
        %v5069 = vrot.slane %v5058, %v5068
        %v5071 = vunpack.c.l.s4 1983009808
        %v5072 = vunpack.c.0.s8 %v5071
        %v5073 = vlaneseq
        %v5074 = vshrl.u32 %v5073, 7
        %v5075 = vsub.s32 %v5072, %v5074
        %v5076 = vrot.slane %v5062, %v5075
        %v5077 = vcombine.high %v5069, %v5069
        %5078 = vrot.lane.b32.xlu0 %v5069, 95
        %v5079 = vpop.permute.xlu0 %5078
        %5080 = vrot.lane.b32.xlu0 %v5077, 95
        %v5081 = vpop.permute.xlu0 %5080
        %5082 = vrot.lane.b32.xlu0 %v5076, 95
        %v5083 = vpop.permute.xlu0 %5082
        %v5084 = vsel %vm1653, %v5079, %v5081
        %v5085 = vsel %vm1653, %v5081, %v5083
        %v5087 = vsel %vm1057, %v5060, 0
        %v5090 = vsel %vm1061, %v5084, 0
        %v5093 = vsel %vm1061, %v5085, 0
        %5095 = vmatprep.subr.bf16.mxu0 %v5093
        %5096 = vmatpush1.bf16.msra.mxu0 %v5090
        %5097 = vmatprep.subr.bf16.mxu0 0
        %5098 = vmatpush1.bf16.msra.mxu0 0
        %5099 = vmatprep.subr.bf16.mxu0 0
        %5100 = vmatpush1.bf16.msra.mxu0 0
        %5101 = vmatprep.subr.bf16.mxu0 0
        %5102 = vmatpush1.bf16.msra.mxu0 0
        %5103 = vmatprep.subr.bf16.mxu0 0
        %5104 = vmatpush1.bf16.msra.mxu0 0
        %5105 = vmatprep.subr.bf16.mxu0 0
        %5106 = vmatpush1.bf16.msra.mxu0 0
        %5107 = vmatprep.subr.bf16.mxu0 0
        %5108 = vmatpush1.bf16.msra.mxu0 0
        %5109 = vmatprep.subr.bf16.mxu0 0
        %5110 = vmatpush1.bf16.msra.mxu0 0
        %5111 = vmatprep.subr.bf16.mxu0 0
        %5112 = vmatpush1.bf16.msra.mxu0 0
        %5113 = vmatprep.subr.bf16.mxu0 0
        %5114 = vmatpush1.bf16.msra.mxu0 0
        %5115 = vmatprep.subr.bf16.mxu0 0
        %5116 = vmatpush1.bf16.msra.mxu0 0
        %5117 = vmatprep.subr.bf16.mxu0 0
        %5118 = vmatpush1.bf16.msra.mxu0 0
        %5119 = vmatprep.subr.bf16.mxu0 0
        %5120 = vmatpush1.bf16.msra.mxu0 0
        %5121 = vmatprep.subr.bf16.mxu0 0
        %5122 = vmatpush1.bf16.msra.mxu0 0
        %5123 = vmatprep.subr.bf16.mxu0 0
        %5124 = vmatpush1.bf16.msra.mxu0 0
        %5125 = vmatprep.subr.bf16.mxu0 0
        %5126 = vmatpush1.bf16.msra.mxu0 0
        %5127 = vmatprep.mubr.bf16.mxu0 0
        %5128 = vmatmul.mubr.bf16.gmra.mrb[0].mxu0 %v5087
        %v5129 = vpop.f32.mrb[0].mxu0
        %v5130 = vadd.f32 0.0, %v5129
        %v5131 = vpop.f32.mrb[0].mxu0
        %v5132 = vadd.f32 0.0, %v5131
        %v5133 = vpop.f32.mrb[0].mxu0
        %v5134 = vpop.f32.mrb[0].mxu0
        %5135 = vdwg.mxu0
        %v5136 = vadd.f32 %v5056, %v5130
        %v5137 = vadd.f32 %v5057, %v5132
        %v5138 = vld [vmem:[#allocation2] sm:$0x3f]
        %s5139 = scalar_lea.vmem %s12, 16
        %v5140 = vld [vmem:[%s5139] sm:$0x3]
        %v5142 = vcombine.high %v5138, %v5138
        %v5144 = vunpack.c.l.s4 1983009808
        %v5145 = vunpack.c.0.s8 %v5144
        %v5146 = vlaneseq
        %v5147 = vshrl.u32 %v5146, 7
        %v5148 = vsub.s32 %v5145, %v5147
        %v5149 = vrot.slane %v5138, %v5148
        %v5151 = vunpack.c.l.s4 1983009808
        %v5152 = vunpack.c.0.s8 %v5151
        %v5153 = vlaneseq
        %v5154 = vshrl.u32 %v5153, 7
        %v5155 = vsub.s32 %v5152, %v5154
        %v5156 = vrot.slane %v5142, %v5155
        %v5157 = vcombine.high %v5149, %v5149
        %5158 = vrot.lane.b32.xlu0 %v5149, 94
        %v5159 = vpop.permute.xlu0 %5158
        %5160 = vrot.lane.b32.xlu0 %v5157, 94
        %v5161 = vpop.permute.xlu0 %5160
        %5162 = vrot.lane.b32.xlu0 %v5156, 94
        %v5163 = vpop.permute.xlu0 %5162
        %v5164 = vsel %vm1734, %v5159, %v5161
        %v5165 = vsel %vm1734, %v5161, %v5163
        %v5167 = vsel %vm1057, %v5140, 0
        %v5170 = vsel %vm1061, %v5164, 0
        %v5173 = vsel %vm1061, %v5165, 0
        %5175 = vmatprep.subr.bf16.mxu0 %v5173
        %5176 = vmatpush1.bf16.msra.mxu0 %v5170
        %5177 = vmatprep.subr.bf16.mxu0 0
        %5178 = vmatpush1.bf16.msra.mxu0 0
        %5179 = vmatprep.subr.bf16.mxu0 0
        %5180 = vmatpush1.bf16.msra.mxu0 0
        %5181 = vmatprep.subr.bf16.mxu0 0
        %5182 = vmatpush1.bf16.msra.mxu0 0
        %5183 = vmatprep.subr.bf16.mxu0 0
        %5184 = vmatpush1.bf16.msra.mxu0 0
        %5185 = vmatprep.subr.bf16.mxu0 0
        %5186 = vmatpush1.bf16.msra.mxu0 0
        %5187 = vmatprep.subr.bf16.mxu0 0
        %5188 = vmatpush1.bf16.msra.mxu0 0
        %5189 = vmatprep.subr.bf16.mxu0 0
        %5190 = vmatpush1.bf16.msra.mxu0 0
        %5191 = vmatprep.subr.bf16.mxu0 0
        %5192 = vmatpush1.bf16.msra.mxu0 0
        %5193 = vmatprep.subr.bf16.mxu0 0
        %5194 = vmatpush1.bf16.msra.mxu0 0
        %5195 = vmatprep.subr.bf16.mxu0 0
        %5196 = vmatpush1.bf16.msra.mxu0 0
        %5197 = vmatprep.subr.bf16.mxu0 0
        %5198 = vmatpush1.bf16.msra.mxu0 0
        %5199 = vmatprep.subr.bf16.mxu0 0
        %5200 = vmatpush1.bf16.msra.mxu0 0
        %5201 = vmatprep.subr.bf16.mxu0 0
        %5202 = vmatpush1.bf16.msra.mxu0 0
        %5203 = vmatprep.subr.bf16.mxu0 0
        %5204 = vmatpush1.bf16.msra.mxu0 0
        %5205 = vmatprep.subr.bf16.mxu0 0
        %5206 = vmatpush1.bf16.msra.mxu0 0
        %5207 = vmatprep.mubr.bf16.mxu0 0
        %5208 = vmatmul.mubr.bf16.gmra.mrb[0].mxu0 %v5167
        %v5209 = vpop.f32.mrb[0].mxu0
        %v5210 = vadd.f32 0.0, %v5209
        %v5211 = vpop.f32.mrb[0].mxu0
        %v5212 = vadd.f32 0.0, %v5211
        %v5213 = vpop.f32.mrb[0].mxu0
        %v5214 = vpop.f32.mrb[0].mxu0
        %5215 = vdwg.mxu0
        %v5216 = vmul.f32 %v5210, %v1286
        %v5217 = vmul.f32 %v5212, %v1290
        %v5218 = vadd.f32 %v5136, %v5216
        %v5219 = vadd.f32 %v5137, %v5217
        %5221 = vset.pattern.permute.xlu0 0
        %5222 = vperm.xlu0 %5221, %v4486
        %v5223 = vpop.permute.xlu0 %5222
        %v5225 = vadd.f32 %v5218, %v5223
        %v5226 = vadd.f32 %v5219, %v5223
        %v5227 = vadd.f32 %v1796, %v5225
        %v5228 = vadd.f32 %v1797, %v5226
        %v5231 = vcombine.low %v5227, %v5228
        %5233 = vst [vmem:[%s527] sm:$0xff] %v5231
        %s5234 = sand.u32 %s384, 1
        %s5235 = scalar_lea.sflag [#allocation4], %s5234
        %s5236 = sand.u32 %s384, 1
        %s5237 = smul.addr %s5236, 8
        %s5238 = scalar_lea.vmem [#allocation3], %s5237
        // Predicated region
        $region85: #{tpu_custom_call.1} parent=83 // pred_check
          %p5239 = pneg %p394
        $region86: #{tpu_custom_call.1} parent=83 // pred_check_branch
          %5241 = sbr.rel (%p5239) target = $region88
        $region87: #{tpu_custom_call.1} parent=83 // pred_region
          %s5243 = ssub.s32 128, 128
          %5244 = vsyncadd %s5235, %s5243
          %s5245 = smul.addr %s30, 2
          %s5246 = smul.addr %s5245, 64
          %s5247 = scalar_lea.hbm %s16, %s5246
          %s5249 = sshll.u32 %s5238, 4
          %s5250 = int_to_ptr.vmem [resolvable:$true] %s5249
          %5252 = dma.vmem_to_hbm [thread:$0]  %s5250, 128, %s5247, %s5235
        $region88: #{tpu_custom_call.1} parent=83 // pred_fallthru
          _
      $region84: #{tpu_custom_call.1} parent=5 // pred_fallthru
        _
      %p5253 = scmp.le.s32.totalorder 2, %s25
      // Predicated region
      $region89: #{tpu_custom_call.1} parent=5 // pred_check
        %p5254 = pneg %p5253
      $region90: #{tpu_custom_call.1} parent=5 // pred_check_branch
        %5256 = sbr.rel (%p5254) target = $region92
      $region91: #{tpu_custom_call.1} parent=5 // pred_region
        %s5257 = ssub.s32 %s25, 2
        // Predicated region
        $region93: #{tpu_custom_call.1} parent=91 // pred_check
          %p5258 = pneg %p400
        $region94: #{tpu_custom_call.1} parent=91 // pred_check_branch
          %5260 = sbr.rel (%p5258) target = $region96
        $region95: #{tpu_custom_call.1} parent=91 // pred_region
          %s5261 = sand.u32 %s385, 1
          %s5262 = scalar_lea.sflag [#allocation4], %s5261
          %s5263 = sand.u32 %s385, 1
          %s5264 = smul.addr %s5263, 8
          %s5265 = scalar_lea.vmem [#allocation3], %s5264
          %5266 = dma.done %s5262, 128
        $region96: #{tpu_custom_call.1} parent=91 // pred_fallthru
          _
      $region92: #{tpu_custom_call.1} parent=5 // pred_fallthru
        _
    $region6: #{tpu_custom_call.1} parent=1 // loop_footer
      %s29 = sadd.s32 1, %s25
    $region7: #{tpu_custom_call.1} parent=1 // loop_footer_branch
      %24 = sbr.rel target = $region3
    $region8: #{tpu_custom_call.1} parent=1 // loop_exit
      _
    %5267 = vsyncpa [#allocation4], 1
    %s5268 = scalar_lea.sflag [#allocation4], 1
    %5269 = vsyncpa %s5268, 1

</llo_original>
